<compile_context>
chip_gen: v5e
topology: v5e:2x2
jax: 0.10.0
libtpu: 0.0.40
codegen_flags: <defaults>
</compile_context>

<pallas_src>
import jax
import jax.numpy as jnp
from jax.experimental import pallas as pl
from jax.experimental.pallas import tpu as pltpu

EPS = 1e-5  # BatchNorm2d default eps


def _pick_row_tile(rows, cap=2048):
    """Largest row tile <= cap dividing `rows` (multiple of 8); full extent if rows <= cap."""
    if rows <= cap:
        return rows
    best = None
    for d in range(8, cap + 1, 8):
        if rows % d == 0:
            best = d
    # TODO(synk): if rows is huge and has no nice divisor, pad rows instead of full-extent.
    return best if best is not None else rows


def _make_conv_stats_kernel(W, HR, Cp):
    """Per-image transposed-conv (9 tap matmuls, phases packed in channels) + BN stat partials."""
    wp2 = W + 2

    def kernel(x_ref, w_ref, mask_ref, y_ref, s_ref, ss_ref, acc_ref):
        # x_ref:   (1, Rin, Cin) bf16  zero-padded image flattened over (H+2, W+2)
        # w_ref:   (9, Cin, Cp)  f32   block-structured per-tap weights (phases packed)
        # mask_ref:(HR, 1)       f32   1.0 for valid rows (col < W), 0.0 for wrap rows
        # y_ref:   (1, HR, Cp)   bf16  conv output slab (4 phases packed in channels)
        # s_ref / ss_ref: (1, 1, Cp) f32  per-image channel sum / sum-of-squares partials
        # acc_ref: (HR, Cp)      f32   VMEM accumulator
        x2 = x_ref[0].astype(jnp.float32)            # unpack once; 32-bit slicing below
        acc_ref[...] = jnp.dot(x2[0:HR, :], w_ref[0],
                               preferred_element_type=jnp.float32)
        for t in range(1, 9):                        # static unroll over the 3x3 taps
            ti, tj = divmod(t, 3)
            off = ti * wp2 + tj
            acc_ref[...] += jnp.dot(x2[off:off + HR, :], w_ref[t],
                                    preferred_element_type=jnp.float32)
        acc = acc_ref[...]
        y_ref[0] = acc.astype(y_ref.dtype)
        m = mask_ref[...]                            # (HR, 1) broadcasts over lanes
        s_ref[0] = jnp.sum(acc * m, axis=0, keepdims=True)
        ss_ref[0] = jnp.sum(acc * acc * m, axis=0, keepdims=True)

    return kernel


def _bn_relu_kernel(y_ref, scale_ref, shift_ref, o_ref):
    """Fused folded-BatchNorm + ReLU: relu(y * scale + shift), bf16 in / bf16 out."""
    y = y_ref[...].astype(jnp.float32)
    o_ref[...] = jnp.maximum(y * scale_ref[...] + shift_ref[...], 0.0).astype(o_ref.dtype)


@jax.jit
def trans_conv_layer(x, wt, gamma, beta):
    """x: (N, Cin, H, W) NCHW; wt: (Cin, Cout, 4, 4) ConvTranspose2d weight; gamma/beta: (Cout,)."""
    N, Cin, H, W = x.shape
    Cout = wt.shape[1]
    OH, OW = 2 * H, 2 * W
    wp2 = W + 2
    HR = H * wp2                                    # rows per image in the flattened slab
    Cpack = 4 * Cout                                # 4 parity phases packed into channels
    Cp = ((Cpack + 127) // 128) * 128               # lane-dense channel count
    base = (H + 2) * wp2
    Rin = ((base + 2 + 7) // 8) * 8                 # +2 overrun guard rows for tap (2,2)

    # ---- glue: early bf16 cast, NCHW -> NHWC, pad by 1, flatten spatial ----
    xh = x.astype(jnp.bfloat16).transpose(0, 2, 3, 1)            # (N, H, W, Cin)
    xp = jnp.pad(xh, ((0, 0), (1, 1), (1, 1), (0, 0)))           # (N, H+2, W+2, Cin)
    xf = jnp.pad(xp.reshape(N, base, Cin), ((0, 0), (0, Rin - base), (0, 0)))

    # Block-structured per-tap weight: out[n, 2a+ph, 2b+pw, oc] uses padded input row a+ti,
    # col b+tj (ti=ph+di, tj=pw+dj; di,dj in {0,1}) with wt[ic, oc, 3+ph-2ti, 3+pw-2tj].
    w32 = wt.astype(jnp.float32)                                 # (Cin, Cout, 4, 4)
    zero = jnp.zeros((Cin, Cout), jnp.float32)
    taps = []
    for ti in range(3):
        for tj in range(3):
            cols = []
            for ph in range(2):
                for pw in range(2):
                    if 0 <= ti - ph <= 1 and 0 <= tj - pw <= 1:
                        cols.append(w32[:, :, 3 + ph - 2 * ti, 3 + pw - 2 * tj])
                    else:
                        cols.append(zero)
            taps.append(jnp.concatenate(cols, axis=1))           # (Cin, 4*Cout)
    w9 = jnp.stack(taps, axis=0)                                 # (9, Cin, 4*Cout)
    w9 = jnp.pad(w9, ((0, 0), (0, 0), (0, Cp - Cpack)))          # f32 (tiny; K=4 MXU anyway)

    # validity mask for the flattened rows (col < W); wrap rows excluded from BN stats
    col_idx = jnp.tile(jnp.arange(wp2, dtype=jnp.int32), H)
    row_mask = (col_idx < W).astype(jnp.float32).reshape(HR, 1)

    # ---- kernel 1: per-image conv-as-9-matmuls + fused BN stat partials ----
    # TODO(synk): for large H*W add row-block tiling with a +1-row halo (manual DMA) and a
    # K grid axis for very large Cin; unnecessary at these sizes (per-image slab << VMEM).
    flops1 = 2 * N * HR * 9 * Cin * Cp
    bytes1 = 2 * (N * Rin * Cin + N * HR * Cp) + 4 * (9 * Cin * Cp + 2 * N * Cp + HR)
    conv_kernel = _make_conv_stats_kernel(W, HR, Cp)
    y, s_p, ss_p = pl.pallas_call(
        conv_kernel,
        out_shape=(
            jax.ShapeDtypeStruct((N, HR, Cp), jnp.bfloat16),
            jax.ShapeDtypeStruct((N, 1, Cp), jnp.float32),
            jax.ShapeDtypeStruct((N, 1, Cp), jnp.float32),
        ),
        grid_spec=pltpu.PrefetchScalarGridSpec(
            num_scalar_prefetch=0,
            grid=(N,),
            in_specs=[
                pl.BlockSpec((1, Rin, Cin), lambda n: (n, 0, 0)),
                pl.BlockSpec((9, Cin, Cp), lambda n: (0, 0, 0)),
                pl.BlockSpec((HR, 1), lambda n: (0, 0)),
            ],
            out_specs=[
                pl.BlockSpec((1, HR, Cp), lambda n: (n, 0, 0)),
                pl.BlockSpec((1, 1, Cp), lambda n: (n, 0, 0)),
                pl.BlockSpec((1, 1, Cp), lambda n: (n, 0, 0)),
            ],
            scratch_shapes=[pltpu.VMEM((HR, Cp), jnp.float32)],
        ),
        # TODO(synk): use pltpu.CORE_PARALLEL on v7x to force sharding across the 2 TCs.
        compiler_params=pltpu.CompilerParams(dimension_semantics=("parallel",)),
        cost_estimate=pl.CostEstimate(flops=int(flops1), transcendentals=0,
                                      bytes_accessed=int(bytes1)),
    )(xf, w9, row_mask)

    # ---- BatchNorm2d training-mode stats; fold affine into scale/shift ----
    m_true = float(N * OH * OW)
    s_oc = jnp.sum(s_p, axis=(0, 1))[:Cpack].reshape(4, Cout).sum(axis=0)
    ss_oc = jnp.sum(ss_p, axis=(0, 1))[:Cpack].reshape(4, Cout).sum(axis=0)
    mean = s_oc / m_true
    var = ss_oc / m_true - mean * mean
    # TODO(synk): one-pass E[y^2]-E[y]^2 can cancel when |mean| >> std; use Welford if needed.
    inv = jax.lax.rsqrt(var + EPS)
    scale_oc = gamma.astype(jnp.float32) * inv
    shift_oc = beta.astype(jnp.float32) - mean * scale_oc
    scale = jnp.pad(jnp.tile(scale_oc, 4), (0, Cp - Cpack)).reshape(1, 1, Cp)
    shift = jnp.pad(jnp.tile(shift_oc, 4), (0, Cp - Cpack)).reshape(1, 1, Cp)

    # ---- kernel 2: fused folded-BN + ReLU over large lane-dense row tiles, bf16 out ----
    th2 = _pick_row_tile(HR)
    flops2 = 2 * N * HR * Cp
    bytes2 = 4 * N * HR * Cp + 8 * Cp
    out = pl.pallas_call(
        _bn_relu_kernel,
        out_shape=jax.ShapeDtypeStruct((N, HR, Cp), jnp.bfloat16),
        grid_spec=pltpu.PrefetchScalarGridSpec(
            num_scalar_prefetch=0,
            grid=(N, HR // th2),
            in_specs=[
                pl.BlockSpec((1, th2, Cp), lambda n, i: (n, i, 0)),
                pl.BlockSpec((1, 1, Cp), lambda n, i: (0, 0, 0)),
                pl.BlockSpec((1, 1, Cp), lambda n, i: (0, 0, 0)),
            ],
            out_specs=pl.BlockSpec((1, th2, Cp), lambda n, i: (n, i, 0)),
        ),
        compiler_params=pltpu.CompilerParams(
            dimension_semantics=("parallel", "parallel")),
        cost_estimate=pl.CostEstimate(flops=int(flops2), transcendentals=0,
                                      bytes_accessed=int(bytes2)),
    )(y, scale, shift)

    # ---- reassemble: drop lane padding + wrap cols, interleave phases, back to NCHW ----
    o = out[:, :, :Cpack]                                        # (N, HR, 4*Cout)
    o = o.reshape(N, H, wp2, 2, 2, Cout)[:, :, :W]               # (N, H, W, 2, 2, Cout)
    o = o.transpose(0, 1, 3, 2, 4, 5).reshape(N, OH, OW, Cout)   # (N, 2H, 2W, Cout)
    return o.transpose(0, 3, 1, 2).astype(jnp.float32)           # NCHW (PyTorch parity)


def reference(x, wt, gamma, beta):
    """Pure-JAX f32 reference of the PyTorch forward (training-mode BatchNorm)."""
    w_conv = jnp.flip(wt, axis=(2, 3)).transpose(1, 0, 2, 3)     # (Cout, Cin, 4, 4)
    y = jax.lax.conv_general_dilated(
        x.astype(jnp.float32), w_conv.astype(jnp.float32),
        window_strides=(1, 1), padding=[(2, 2), (2, 2)],
        lhs_dilation=(2, 2),
        dimension_numbers=('NCHW', 'OIHW', 'NCHW'))
    mean = jnp.mean(y, axis=(0, 2, 3), keepdims=True)
    var = jnp.mean((y - mean) ** 2, axis=(0, 2, 3), keepdims=True)
    yn = (y - mean) * jax.lax.rsqrt(var + EPS)
    yn = yn * gamma.reshape(1, -1, 1, 1) + beta.reshape(1, -1, 1, 1)
    return jnp.maximum(yn, 0.0)


if __name__ == "__main__":
    key = jax.random.PRNGKey(0)
    k1, k2 = jax.random.split(key)

    N, Cin, H, W = 2, 4, 16, 16
    Cout = 8

    x = jax.random.normal(k1, (N, Cin, H, W), jnp.float32)
    # ConvTranspose2d weight shape: (in_planes, out_planes, kH, kW); deterministic init.
    wt = 0.1 * jax.random.normal(k2, (Cin, Cout, 4, 4), jnp.float32)
    gamma = jnp.ones((Cout,), jnp.float32)   # BatchNorm2d weight init
    beta = jnp.zeros((Cout,), jnp.float32)   # BatchNorm2d bias init

    out = trans_conv_layer(x, wt, gamma, beta)
    out = jax.block_until_ready(out)

    ref = reference(x, wt, gamma, beta)
    assert out.shape == (N, Cout, 2 * H, 2 * W), out.shape
    max_err = float(jnp.max(jnp.abs(out - ref)))
    # bf16 input/activation round-trips -> bf16-level tolerance vs the f32 reference.
    assert jnp.allclose(out, ref, atol=3e-2, rtol=3e-2), max_err
    print("KERNEL_OK")
</pallas_src>

<mosaic_0001>
module attributes {stable_mosaic.version = 11 : i64} {
  func.func @kernel(%arg0: i32, %arg1: memref<1x328x4xbf16, #tpu.memory_space<vmem>>, %arg2: memref<9x4x128xf32, #tpu.memory_space<vmem>>, %arg3: memref<288x1xf32, #tpu.memory_space<vmem>>, %arg4: memref<1x288x128xbf16, #tpu.memory_space<vmem>>, %arg5: memref<1x1x128xf32, #tpu.memory_space<vmem>>, %arg6: memref<1x1x128xf32, #tpu.memory_space<vmem>>, %arg7: memref<288x128xf32, #tpu.memory_space<vmem>>) attributes {dimension_semantics = [#tpu.dimension_semantics<parallel>], iteration_bounds = array<i64: 2>, scalar_prefetch = 0 : i64, scratch_operands = 1 : i64, tpu.core_type = #tpu.core_type<tc>, window_params = [{transform_indices = @transform_0, window_bounds = array<i64: 1, 328, 4>}, {pipeline_mode = #tpu.pipeline_mode<synchronous>, transform_indices = @transform_1, window_bounds = array<i64: 9, 4, 128>}, {pipeline_mode = #tpu.pipeline_mode<synchronous>, transform_indices = @transform_2, window_bounds = array<i64: 288, 1>}, {transform_indices = @transform_3, window_bounds = array<i64: 1, 288, 128>}, {transform_indices = @transform_4, window_bounds = array<i64: 1, 1, 128>}, {transform_indices = @transform_5, window_bounds = array<i64: 1, 1, 128>}]} {
    %c0 = arith.constant 0 : index
    %c0_0 = arith.constant 0 : index
    %c0_1 = arith.constant 0 : index
    %0 = vector.load %arg1[%c0, %c0_0, %c0_1] : memref<1x328x4xbf16, #tpu.memory_space<vmem>>, vector<1x328x4xbf16>
    %1 = vector.shape_cast %0 : vector<1x328x4xbf16> to vector<328x4xbf16>
    %2 = arith.extf %1 : vector<328x4xbf16> to vector<328x4xf32>
    %3 = vector.extract_strided_slice %2 {offsets = [0, 0], sizes = [288, 4], strides = [1, 1]} : vector<328x4xf32> to vector<288x4xf32>
    %c0_2 = arith.constant 0 : index
    %c0_3 = arith.constant 0 : index
    %c0_4 = arith.constant 0 : index
    %4 = vector.load %arg2[%c0_2, %c0_3, %c0_4] : memref<9x4x128xf32, #tpu.memory_space<vmem>>, vector<1x4x128xf32>
    %5 = vector.shape_cast %4 : vector<1x4x128xf32> to vector<4x128xf32>
    %cst = arith.constant dense<0.000000e+00> : vector<288x128xf32>
    %6 = tpu.matmul %3, %5, %cst {dimension_numbers = #tpu.dot_dimension_numbers<[1], [0], [0], [1], [0, 0, 1, 1], [], []>} : vector<288x4xf32>, vector<4x128xf32>, vector<288x128xf32> -> vector<288x128xf32>
    %c0_5 = arith.constant 0 : index
    %c0_6 = arith.constant 0 : index
    %7 = vector.load %arg7[%c0_5, %c0_6] : memref<288x128xf32, #tpu.memory_space<vmem>>, vector<288x128xf32>
    tpu.vector_store %arg7[%c0_5, %c0_6], %6 {strides = array<i32>} : memref<288x128xf32, #tpu.memory_space<vmem>>, vector<288x128xf32>,
    %c0_7 = arith.constant 0 : index
    %c0_8 = arith.constant 0 : index
    %8 = vector.load %arg7[%c0_7, %c0_8] : memref<288x128xf32, #tpu.memory_space<vmem>>, vector<288x128xf32>
    %9 = vector.extract_strided_slice %2 {offsets = [1, 0], sizes = [288, 4], strides = [1, 1]} : vector<328x4xf32> to vector<288x4xf32>
    %c1 = arith.constant 1 : index
    %c0_9 = arith.constant 0 : index
    %c0_10 = arith.constant 0 : index
    %10 = vector.load %arg2[%c1, %c0_9, %c0_10] : memref<9x4x128xf32, #tpu.memory_space<vmem>>, vector<1x4x128xf32>
    %11 = vector.shape_cast %10 : vector<1x4x128xf32> to vector<4x128xf32>
    %cst_11 = arith.constant dense<0.000000e+00> : vector<288x128xf32>
    %12 = tpu.matmul %9, %11, %cst_11 {dimension_numbers = #tpu.dot_dimension_numbers<[1], [0], [0], [1], [0, 0, 1, 1], [], []>} : vector<288x4xf32>, vector<4x128xf32>, vector<288x128xf32> -> vector<288x128xf32>
    %13 = arith.addf %8, %12 : vector<288x128xf32>
    %c0_12 = arith.constant 0 : index
    %c0_13 = arith.constant 0 : index
    %14 = vector.load %arg7[%c0_12, %c0_13] : memref<288x128xf32, #tpu.memory_space<vmem>>, vector<288x128xf32>
    tpu.vector_store %arg7[%c0_12, %c0_13], %13 {strides = array<i32>} : memref<288x128xf32, #tpu.memory_space<vmem>>, vector<288x128xf32>,
    %c0_14 = arith.constant 0 : index
    %c0_15 = arith.constant 0 : index
    %15 = vector.load %arg7[%c0_14, %c0_15] : memref<288x128xf32, #tpu.memory_space<vmem>>, vector<288x128xf32>
    %16 = vector.extract_strided_slice %2 {offsets = [2, 0], sizes = [288, 4], strides = [1, 1]} : vector<328x4xf32> to vector<288x4xf32>
    %c2 = arith.constant 2 : index
    %c0_16 = arith.constant 0 : index
    %c0_17 = arith.constant 0 : index
    %17 = vector.load %arg2[%c2, %c0_16, %c0_17] : memref<9x4x128xf32, #tpu.memory_space<vmem>>, vector<1x4x128xf32>
    %18 = vector.shape_cast %17 : vector<1x4x128xf32> to vector<4x128xf32>
    %cst_18 = arith.constant dense<0.000000e+00> : vector<288x128xf32>
    %19 = tpu.matmul %16, %18, %cst_18 {dimension_numbers = #tpu.dot_dimension_numbers<[1], [0], [0], [1], [0, 0, 1, 1], [], []>} : vector<288x4xf32>, vector<4x128xf32>, vector<288x128xf32> -> vector<288x128xf32>
    %20 = arith.addf %15, %19 : vector<288x128xf32>
    %c0_19 = arith.constant 0 : index
    %c0_20 = arith.constant 0 : index
    %21 = vector.load %arg7[%c0_19, %c0_20] : memref<288x128xf32, #tpu.memory_space<vmem>>, vector<288x128xf32>
    tpu.vector_store %arg7[%c0_19, %c0_20], %20 {strides = array<i32>} : memref<288x128xf32, #tpu.memory_space<vmem>>, vector<288x128xf32>,
    %c0_21 = arith.constant 0 : index
    %c0_22 = arith.constant 0 : index
    %22 = vector.load %arg7[%c0_21, %c0_22] : memref<288x128xf32, #tpu.memory_space<vmem>>, vector<288x128xf32>
    %23 = vector.extract_strided_slice %2 {offsets = [18, 0], sizes = [288, 4], strides = [1, 1]} : vector<328x4xf32> to vector<288x4xf32>
    %c3 = arith.constant 3 : index
    %c0_23 = arith.constant 0 : index
    %c0_24 = arith.constant 0 : index
    %24 = vector.load %arg2[%c3, %c0_23, %c0_24] : memref<9x4x128xf32, #tpu.memory_space<vmem>>, vector<1x4x128xf32>
    %25 = vector.shape_cast %24 : vector<1x4x128xf32> to vector<4x128xf32>
    %cst_25 = arith.constant dense<0.000000e+00> : vector<288x128xf32>
    %26 = tpu.matmul %23, %25, %cst_25 {dimension_numbers = #tpu.dot_dimension_numbers<[1], [0], [0], [1], [0, 0, 1, 1], [], []>} : vector<288x4xf32>, vector<4x128xf32>, vector<288x128xf32> -> vector<288x128xf32>
    %27 = arith.addf %22, %26 : vector<288x128xf32>
    %c0_26 = arith.constant 0 : index
    %c0_27 = arith.constant 0 : index
    %28 = vector.load %arg7[%c0_26, %c0_27] : memref<288x128xf32, #tpu.memory_space<vmem>>, vector<288x128xf32>
    tpu.vector_store %arg7[%c0_26, %c0_27], %27 {strides = array<i32>} : memref<288x128xf32, #tpu.memory_space<vmem>>, vector<288x128xf32>,
    %c0_28 = arith.constant 0 : index
    %c0_29 = arith.constant 0 : index
    %29 = vector.load %arg7[%c0_28, %c0_29] : memref<288x128xf32, #tpu.memory_space<vmem>>, vector<288x128xf32>
    %30 = vector.extract_strided_slice %2 {offsets = [19, 0], sizes = [288, 4], strides = [1, 1]} : vector<328x4xf32> to vector<288x4xf32>
    %c4 = arith.constant 4 : index
    %c0_30 = arith.constant 0 : index
    %c0_31 = arith.constant 0 : index
    %31 = vector.load %arg2[%c4, %c0_30, %c0_31] : memref<9x4x128xf32, #tpu.memory_space<vmem>>, vector<1x4x128xf32>
    %32 = vector.shape_cast %31 : vector<1x4x128xf32> to vector<4x128xf32>
    %cst_32 = arith.constant dense<0.000000e+00> : vector<288x128xf32>
    %33 = tpu.matmul %30, %32, %cst_32 {dimension_numbers = #tpu.dot_dimension_numbers<[1], [0], [0], [1], [0, 0, 1, 1], [], []>} : vector<288x4xf32>, vector<4x128xf32>, vector<288x128xf32> -> vector<288x128xf32>
    %34 = arith.addf %29, %33 : vector<288x128xf32>
    %c0_33 = arith.constant 0 : index
    %c0_34 = arith.constant 0 : index
    %35 = vector.load %arg7[%c0_33, %c0_34] : memref<288x128xf32, #tpu.memory_space<vmem>>, vector<288x128xf32>
    tpu.vector_store %arg7[%c0_33, %c0_34], %34 {strides = array<i32>} : memref<288x128xf32, #tpu.memory_space<vmem>>, vector<288x128xf32>,
    %c0_35 = arith.constant 0 : index
    %c0_36 = arith.constant 0 : index
    %36 = vector.load %arg7[%c0_35, %c0_36] : memref<288x128xf32, #tpu.memory_space<vmem>>, vector<288x128xf32>
    %37 = vector.extract_strided_slice %2 {offsets = [20, 0], sizes = [288, 4], strides = [1, 1]} : vector<328x4xf32> to vector<288x4xf32>
    %c5 = arith.constant 5 : index
    %c0_37 = arith.constant 0 : index
    %c0_38 = arith.constant 0 : index
    %38 = vector.load %arg2[%c5, %c0_37, %c0_38] : memref<9x4x128xf32, #tpu.memory_space<vmem>>, vector<1x4x128xf32>
    %39 = vector.shape_cast %38 : vector<1x4x128xf32> to vector<4x128xf32>
    %cst_39 = arith.constant dense<0.000000e+00> : vector<288x128xf32>
    %40 = tpu.matmul %37, %39, %cst_39 {dimension_numbers = #tpu.dot_dimension_numbers<[1], [0], [0], [1], [0, 0, 1, 1], [], []>} : vector<288x4xf32>, vector<4x128xf32>, vector<288x128xf32> -> vector<288x128xf32>
    %41 = arith.addf %36, %40 : vector<288x128xf32>
    %c0_40 = arith.constant 0 : index
    %c0_41 = arith.constant 0 : index
    %42 = vector.load %arg7[%c0_40, %c0_41] : memref<288x128xf32, #tpu.memory_space<vmem>>, vector<288x128xf32>
    tpu.vector_store %arg7[%c0_40, %c0_41], %41 {strides = array<i32>} : memref<288x128xf32, #tpu.memory_space<vmem>>, vector<288x128xf32>,
    %c0_42 = arith.constant 0 : index
    %c0_43 = arith.constant 0 : index
    %43 = vector.load %arg7[%c0_42, %c0_43] : memref<288x128xf32, #tpu.memory_space<vmem>>, vector<288x128xf32>
    %44 = vector.extract_strided_slice %2 {offsets = [36, 0], sizes = [288, 4], strides = [1, 1]} : vector<328x4xf32> to vector<288x4xf32>
    %c6 = arith.constant 6 : index
    %c0_44 = arith.constant 0 : index
    %c0_45 = arith.constant 0 : index
    %45 = vector.load %arg2[%c6, %c0_44, %c0_45] : memref<9x4x128xf32, #tpu.memory_space<vmem>>, vector<1x4x128xf32>
    %46 = vector.shape_cast %45 : vector<1x4x128xf32> to vector<4x128xf32>
    %cst_46 = arith.constant dense<0.000000e+00> : vector<288x128xf32>
    %47 = tpu.matmul %44, %46, %cst_46 {dimension_numbers = #tpu.dot_dimension_numbers<[1], [0], [0], [1], [0, 0, 1, 1], [], []>} : vector<288x4xf32>, vector<4x128xf32>, vector<288x128xf32> -> vector<288x128xf32>
    %48 = arith.addf %43, %47 : vector<288x128xf32>
    %c0_47 = arith.constant 0 : index
    %c0_48 = arith.constant 0 : index
    %49 = vector.load %arg7[%c0_47, %c0_48] : memref<288x128xf32, #tpu.memory_space<vmem>>, vector<288x128xf32>
    tpu.vector_store %arg7[%c0_47, %c0_48], %48 {strides = array<i32>} : memref<288x128xf32, #tpu.memory_space<vmem>>, vector<288x128xf32>,
    %c0_49 = arith.constant 0 : index
    %c0_50 = arith.constant 0 : index
    %50 = vector.load %arg7[%c0_49, %c0_50] : memref<288x128xf32, #tpu.memory_space<vmem>>, vector<288x128xf32>
    %51 = vector.extract_strided_slice %2 {offsets = [37, 0], sizes = [288, 4], strides = [1, 1]} : vector<328x4xf32> to vector<288x4xf32>
    %c7 = arith.constant 7 : index
    %c0_51 = arith.constant 0 : index
    %c0_52 = arith.constant 0 : index
    %52 = vector.load %arg2[%c7, %c0_51, %c0_52] : memref<9x4x128xf32, #tpu.memory_space<vmem>>, vector<1x4x128xf32>
    %53 = vector.shape_cast %52 : vector<1x4x128xf32> to vector<4x128xf32>
    %cst_53 = arith.constant dense<0.000000e+00> : vector<288x128xf32>
    %54 = tpu.matmul %51, %53, %cst_53 {dimension_numbers = #tpu.dot_dimension_numbers<[1], [0], [0], [1], [0, 0, 1, 1], [], []>} : vector<288x4xf32>, vector<4x128xf32>, vector<288x128xf32> -> vector<288x128xf32>
    %55 = arith.addf %50, %54 : vector<288x128xf32>
    %c0_54 = arith.constant 0 : index
    %c0_55 = arith.constant 0 : index
    %56 = vector.load %arg7[%c0_54, %c0_55] : memref<288x128xf32, #tpu.memory_space<vmem>>, vector<288x128xf32>
    tpu.vector_store %arg7[%c0_54, %c0_55], %55 {strides = array<i32>} : memref<288x128xf32, #tpu.memory_space<vmem>>, vector<288x128xf32>,
    %c0_56 = arith.constant 0 : index
    %c0_57 = arith.constant 0 : index
    %57 = vector.load %arg7[%c0_56, %c0_57] : memref<288x128xf32, #tpu.memory_space<vmem>>, vector<288x128xf32>
    %58 = vector.extract_strided_slice %2 {offsets = [38, 0], sizes = [288, 4], strides = [1, 1]} : vector<328x4xf32> to vector<288x4xf32>
    %c8 = arith.constant 8 : index
    %c0_58 = arith.constant 0 : index
    %c0_59 = arith.constant 0 : index
    %59 = vector.load %arg2[%c8, %c0_58, %c0_59] : memref<9x4x128xf32, #tpu.memory_space<vmem>>, vector<1x4x128xf32>
    %60 = vector.shape_cast %59 : vector<1x4x128xf32> to vector<4x128xf32>
    %cst_60 = arith.constant dense<0.000000e+00> : vector<288x128xf32>
    %61 = tpu.matmul %58, %60, %cst_60 {dimension_numbers = #tpu.dot_dimension_numbers<[1], [0], [0], [1], [0, 0, 1, 1], [], []>} : vector<288x4xf32>, vector<4x128xf32>, vector<288x128xf32> -> vector<288x128xf32>
    %62 = arith.addf %57, %61 : vector<288x128xf32>
    %c0_61 = arith.constant 0 : index
    %c0_62 = arith.constant 0 : index
    %63 = vector.load %arg7[%c0_61, %c0_62] : memref<288x128xf32, #tpu.memory_space<vmem>>, vector<288x128xf32>
    tpu.vector_store %arg7[%c0_61, %c0_62], %62 {strides = array<i32>} : memref<288x128xf32, #tpu.memory_space<vmem>>, vector<288x128xf32>,
    %c0_63 = arith.constant 0 : index
    %c0_64 = arith.constant 0 : index
    %64 = vector.load %arg7[%c0_63, %c0_64] : memref<288x128xf32, #tpu.memory_space<vmem>>, vector<288x128xf32>
    %65 = arith.truncf %64 : vector<288x128xf32> to vector<288x128xbf16>
    %c0_65 = arith.constant 0 : index
    %c0_66 = arith.constant 0 : index
    %c0_67 = arith.constant 0 : index
    %66 = vector.load %arg4[%c0_65, %c0_66, %c0_67] : memref<1x288x128xbf16, #tpu.memory_space<vmem>>, vector<1x288x128xbf16>
    %67 = vector.shape_cast %66 : vector<1x288x128xbf16> to vector<288x128xbf16>
    %68 = vector.shape_cast %65 : vector<288x128xbf16> to vector<1x288x128xbf16>
    tpu.vector_store %arg4[%c0_65, %c0_66, %c0_67], %68 {strides = array<i32>} : memref<1x288x128xbf16, #tpu.memory_space<vmem>>, vector<1x288x128xbf16>,
    %c0_68 = arith.constant 0 : index
    %c0_69 = arith.constant 0 : index
    %69 = vector.load %arg3[%c0_68, %c0_69] : memref<288x1xf32, #tpu.memory_space<vmem>>, vector<288x1xf32>
    %70 = vector.broadcast %69 : vector<288x1xf32> to vector<288x128xf32>
    %71 = arith.mulf %64, %70 : vector<288x128xf32>
    %cst_70 = arith.constant dense<0.000000e+00> : vector<128xf32>
    %72 = vector.multi_reduction <add>, %71, %cst_70 [0] : vector<288x128xf32> to vector<128xf32>
    %73 = vector.shape_cast %72 : vector<128xf32> to vector<1x128xf32>
    %c0_71 = arith.constant 0 : index
    %c0_72 = arith.constant 0 : index
    %c0_73 = arith.constant 0 : index
    %74 = vector.load %arg5[%c0_71, %c0_72, %c0_73] : memref<1x1x128xf32, #tpu.memory_space<vmem>>, vector<1x1x128xf32>
    %75 = vector.shape_cast %74 : vector<1x1x128xf32> to vector<1x128xf32>
    %76 = vector.shape_cast %73 : vector<1x128xf32> to vector<1x1x128xf32>
    tpu.vector_store %arg5[%c0_71, %c0_72, %c0_73], %76 {strides = array<i32>} : memref<1x1x128xf32, #tpu.memory_space<vmem>>, vector<1x1x128xf32>,
    %77 = arith.mulf %64, %64 : vector<288x128xf32>
    %78 = vector.broadcast %69 : vector<288x1xf32> to vector<288x128xf32>
    %79 = arith.mulf %77, %78 : vector<288x128xf32>
    %cst_74 = arith.constant dense<0.000000e+00> : vector<128xf32>
    %80 = vector.multi_reduction <add>, %79, %cst_74 [0] : vector<288x128xf32> to vector<128xf32>
    %81 = vector.shape_cast %80 : vector<128xf32> to vector<1x128xf32>
    %c0_75 = arith.constant 0 : index
    %c0_76 = arith.constant 0 : index
    %c0_77 = arith.constant 0 : index
    %82 = vector.load %arg6[%c0_75, %c0_76, %c0_77] : memref<1x1x128xf32, #tpu.memory_space<vmem>>, vector<1x1x128xf32>
    %83 = vector.shape_cast %82 : vector<1x1x128xf32> to vector<1x128xf32>
    %84 = vector.shape_cast %81 : vector<1x128xf32> to vector<1x1x128xf32>
    tpu.vector_store %arg6[%c0_75, %c0_76, %c0_77], %84 {strides = array<i32>} : memref<1x1x128xf32, #tpu.memory_space<vmem>>, vector<1x1x128xf32>,
    return
  }
  func.func @transform_0(%arg0: i32) -> (i32, i32, i32) {
    %c0_i32 = arith.constant 0 : i32
    %c0_i32_0 = arith.constant 0 : i32
    %c0_i32_1 = arith.constant 0 : i32
    return %arg0, %c0_i32, %c0_i32_0 : i32, i32, i32
  }
  func.func @transform_1(%arg0: i32) -> (i32, i32, i32) {
    %c0_i32 = arith.constant 0 : i32
    %c0_i32_0 = arith.constant 0 : i32
    %c0_i32_1 = arith.constant 0 : i32
    %c0_i32_2 = arith.constant 0 : i32
    return %c0_i32, %c0_i32_0, %c0_i32_1 : i32, i32, i32
  }
  func.func @transform_2(%arg0: i32) -> (i32, i32) {
    %c0_i32 = arith.constant 0 : i32
    %c0_i32_0 = arith.constant 0 : i32
    %c0_i32_1 = arith.constant 0 : i32
    return %c0_i32, %c0_i32_0 : i32, i32
  }
  func.func @transform_3(%arg0: i32) -> (i32, i32, i32) {
    %c0_i32 = arith.constant 0 : i32
    %c0_i32_0 = arith.constant 0 : i32
    %c0_i32_1 = arith.constant 0 : i32
    return %arg0, %c0_i32, %c0_i32_0 : i32, i32, i32
  }
  func.func @transform_4(%arg0: i32) -> (i32, i32, i32) {
    %c0_i32 = arith.constant 0 : i32
    %c0_i32_0 = arith.constant 0 : i32
    %c0_i32_1 = arith.constant 0 : i32
    return %arg0, %c0_i32, %c0_i32_0 : i32, i32, i32
  }
  func.func @transform_5(%arg0: i32) -> (i32, i32, i32) {
    %c0_i32 = arith.constant 0 : i32
    %c0_i32_0 = arith.constant 0 : i32
    %c0_i32_1 = arith.constant 0 : i32
    return %arg0, %c0_i32, %c0_i32_0 : i32, i32, i32
  }
}

module attributes {stable_mosaic.version = 11 : i64} {
  func.func @_bn_relu_kernel(%arg0: i32, %arg1: i32, %arg2: memref<1x288x128xbf16, #tpu.memory_space<vmem>>, %arg3: memref<1x1x128xf32, #tpu.memory_space<vmem>>, %arg4: memref<1x1x128xf32, #tpu.memory_space<vmem>>, %arg5: memref<1x288x128xbf16, #tpu.memory_space<vmem>>) attributes {dimension_semantics = [#tpu.dimension_semantics<parallel>, #tpu.dimension_semantics<parallel>], iteration_bounds = array<i64: 2, 1>, scalar_prefetch = 0 : i64, scratch_operands = 0 : i64, tpu.core_type = #tpu.core_type<tc>, window_params = [{transform_indices = @transform_0, window_bounds = array<i64: 1, 288, 128>}, {pipeline_mode = #tpu.pipeline_mode<synchronous>, transform_indices = @transform_1, window_bounds = array<i64: 1, 1, 128>}, {pipeline_mode = #tpu.pipeline_mode<synchronous>, transform_indices = @transform_2, window_bounds = array<i64: 1, 1, 128>}, {transform_indices = @transform_3, window_bounds = array<i64: 1, 288, 128>}]} {
    %c0 = arith.constant 0 : index
    %c0_0 = arith.constant 0 : index
    %c0_1 = arith.constant 0 : index
    %0 = vector.load %arg2[%c0, %c0_0, %c0_1] : memref<1x288x128xbf16, #tpu.memory_space<vmem>>, vector<1x288x128xbf16>
    %1 = arith.extf %0 : vector<1x288x128xbf16> to vector<1x288x128xf32>
    %c0_2 = arith.constant 0 : index
    %c0_3 = arith.constant 0 : index
    %c0_4 = arith.constant 0 : index
    %2 = vector.load %arg3[%c0_2, %c0_3, %c0_4] : memref<1x1x128xf32, #tpu.memory_space<vmem>>, vector<1x1x128xf32>
    %3 = vector.broadcast %2 : vector<1x1x128xf32> to vector<1x288x128xf32>
    %4 = arith.mulf %1, %3 : vector<1x288x128xf32>
    %c0_5 = arith.constant 0 : index
    %c0_6 = arith.constant 0 : index
    %c0_7 = arith.constant 0 : index
    %5 = vector.load %arg4[%c0_5, %c0_6, %c0_7] : memref<1x1x128xf32, #tpu.memory_space<vmem>>, vector<1x1x128xf32>
    %6 = vector.broadcast %5 : vector<1x1x128xf32> to vector<1x288x128xf32>
    %7 = arith.addf %4, %6 : vector<1x288x128xf32>
    %cst = arith.constant 0.000000e+00 : f32
    %8 = vector.broadcast %cst : f32 to vector<1x288x128xf32>
    %9 = arith.maximumf %7, %8 : vector<1x288x128xf32>
    %10 = arith.truncf %9 : vector<1x288x128xf32> to vector<1x288x128xbf16>
    %c0_8 = arith.constant 0 : index
    %c0_9 = arith.constant 0 : index
    %c0_10 = arith.constant 0 : index
    %11 = vector.load %arg5[%c0_8, %c0_9, %c0_10] : memref<1x288x128xbf16, #tpu.memory_space<vmem>>, vector<1x288x128xbf16>
    tpu.vector_store %arg5[%c0_8, %c0_9, %c0_10], %10 {strides = array<i32>} : memref<1x288x128xbf16, #tpu.memory_space<vmem>>, vector<1x288x128xbf16>,
    return
  }
  func.func @transform_0(%arg0: i32, %arg1: i32) -> (i32, i32, i32) {
    %c0_i32 = arith.constant 0 : i32
    %c0_i32_0 = arith.constant 0 : i32
    return %arg0, %arg1, %c0_i32 : i32, i32, i32
  }
  func.func @transform_1(%arg0: i32, %arg1: i32) -> (i32, i32, i32) {
    %c0_i32 = arith.constant 0 : i32
    %c0_i32_0 = arith.constant 0 : i32
    %c0_i32_1 = arith.constant 0 : i32
    %c0_i32_2 = arith.constant 0 : i32
    return %c0_i32, %c0_i32_0, %c0_i32_1 : i32, i32, i32
  }
  func.func @transform_2(%arg0: i32, %arg1: i32) -> (i32, i32, i32) {
    %c0_i32 = arith.constant 0 : i32
    %c0_i32_0 = arith.constant 0 : i32
    %c0_i32_1 = arith.constant 0 : i32
    %c0_i32_2 = arith.constant 0 : i32
    return %c0_i32, %c0_i32_0, %c0_i32_1 : i32, i32, i32
  }
  func.func @transform_3(%arg0: i32, %arg1: i32) -> (i32, i32, i32) {
    %c0_i32 = arith.constant 0 : i32
    %c0_i32_0 = arith.constant 0 : i32
    return %arg0, %arg1, %c0_i32 : i32, i32, i32
  }
}

</mosaic_0001>

<llo_original>
// kernel: tile.28
$region0: #{tile.28}
  #allocation0 [shape = 's32[1]{0}', space=sflag, size = 0x4, scoped, tag = 'scoped memory for tile.28']
  %s0 = inlined_call_operand.vmem [shape: f32[8], index: 0, kind: input, shape index: {}]
  %s1 = inlined_call_operand.vmem [shape: f32[4,8], index: 1, kind: output, shape index: {}]
  // Predicated region
  $region2: #{tile.28} parent=0 // pred_check
    _
  $region3: #{tile.28} parent=0 // pred_check_branch
    %3 = sbr.rel (0) target = $region5
  $region4: #{tile.28} parent=0 // pred_region
    _
  $region5: #{tile.28} parent=0 // pred_fallthru
    _
  %v4 = vld [vmem:[%s0] ss:$0 sm:$0xff]
  %5 = vst [vmem:[%s1] sm:$0xf] %v4

// kernel: tile.29
$region0: #{tile.29}
  %s0 = inlined_call_operand.vmem [shape: f32[4,8], index: 0, kind: input, shape index: {}]
  %s1 = inlined_call_operand.vmem [shape: f32[32], index: 1, kind: output, shape index: {}]
  $region1: #{tile.29} parent=0
    #allocation0 [shape = 'u8[4096]{0}', space=vmem, size = 0x1000, scoped, tag = 'scoped mem for output reshape']
    #allocation1 [shape = 'u8[4096]{0}', space=vmem, size = 0x1000, scoped, tag = 'scoped mem for input reshape']
    %s3 = ssub.s32 16, 1
    %v4 = vld [vmem:[%s0] sm:%s3]
    %5 = vst [vmem:[#allocation1] sm:%s3] %v4
    %v6 = vld [vmem:[#allocation1] sm:$0x1]
    %vm7 = vcmask 64512
    %8 = vst.msk [vmem:[#allocation0] sm:$0x1] %vm7, %v6
    %s9 = scalar_lea.vmem [#allocation1], 3
    %v10 = vld [vmem:[%s9] sm:$0x1]
    %11 = vrot.lane.b32.xlu0 %v10, 24
    %v12 = vpop.permute.xlu0 %11
    %vm13 = vcmask 261312
    %14 = vst.msk [vmem:[#allocation0] sm:$0x1] %vm13, %v12
    %s15 = scalar_lea.vmem [#allocation1], 2
    %v16 = vld [vmem:[%s15] sm:$0x1]
    %17 = vrot.lane.b32.xlu0 %v16, 16
    %v18 = vpop.permute.xlu0 %17
    %vm19 = vcmask 195712
    %20 = vst.msk [vmem:[#allocation0] sm:$0x1] %vm19, %v18
    %s21 = scalar_lea.vmem [#allocation1], 1
    %v22 = vld [vmem:[%s21] sm:$0x1]
    %23 = vrot.lane.b32.xlu0 %v22, 8
    %v24 = vpop.permute.xlu0 %23
    %vm25 = vcmask 130112
    %26 = vst.msk [vmem:[#allocation0] sm:$0x1] %vm25, %v24
    %s28 = ssub.s32 2, 1
    %v29 = vld [vmem:[#allocation0] sm:%s28]
    %s31 = ssub.s32 2, 1
    %32 = vst [vmem:[%s1] sm:%s31] %v29

// kernel: trans_conv_layer.3
$region0: #{trans_conv_layer.3}
  #allocation0 [shape = 'u32[]', space=smem, size = 0x4, offset = 0x4, fixed_abs, tag = 'smem constant byte address 0x4 - core index']
  #allocation1 [shape = 'u32[72,128]{1,0:T(1,128)}', space=vmem, size = 0x9000, scoped, tag = 'internal scratch']
  %s0 = inlined_call_operand.vmem [shape: bf16[2,288,128], index: 0, kind: input, shape index: {}]
  %s1 = inlined_call_operand.vmem [shape: f32[1,1,128], index: 1, kind: input, shape index: {}]
  %s2 = inlined_call_operand.vmem [shape: f32[1,1,128], index: 2, kind: input, shape index: {}]
  %s3 = inlined_call_operand.vmem [shape: bf16[2,288,128], index: 3, kind: output, shape index: {}]
  %s4 = sld [smem:[#allocation0]]
  $region45: #{trans_conv_layer.3} parent=0
    _
  %s6 = ssub.s32 1, %s4
  %s7 = scalar_select 0, %s6, %s4
  loop: start=0, step=1, limit=4
  $region2: #{trans_conv_layer.3} parent=0 // loop_pre_header
    _
  $region3: #{trans_conv_layer.3} parent=0 // loop_header
    %s9 = sphi 0, %s13
    %p10 = scmp.ge.s32.totalorder %s9, 4
    %s16 = sphi 0, %s28
    %s17 = sphi 0, %s24
    %s18 = sphi 0, %s16
    %s19 = sphi 0, %s17
    %s20 = sphi 0, %s18
    %s21 = sphi 0, %s19
    %s33 = sphi 0, %s35
    %s36 = sphi 0, %s33
    %s37 = sphi 0, %s36
    %s53 = sphi 0, %s37
    %s57 = sphi 0, %s57
    %s59 = sphi 0, %s57
    %s60 = sphi 0, %s59
    %s74 = sphi 0, %s60
    %s78 = sphi 0, %s78
    %s80 = sphi 0, %s78
    %s81 = sphi 0, %s80
    %s95 = sphi 0, %s81
    %s103 = sphi 0, %s105
    %s106 = sphi 0, %s103
    %s107 = sphi 0, %s106
    %s123 = sphi 0, %s107
  $region4: #{trans_conv_layer.3} parent=0 // loop_header_branch
    %12 = sbr.rel (%p10) target = $region8
  $region5: #{trans_conv_layer.3} parent=0 // loop_body
    %s14 = ssub.s32 %s9, 1
    %s15 = ssub.s32 %s9, 2
    %s22 = sadd.s32 1, %s17
    %p23 = scmp.ge.s32.totalorder %s22, 1
    %s24 = scalar_select %p23, 0, %s22
    %s25 = sadd.s32 1, %s16
    %s26 = scalar_select %p23, %s25, %s16
    %p27 = scmp.ge.s32.totalorder %s26, 2
    %s28 = scalar_select %p27, 0, %s26
    %s29 = ssub.s32 %s16, %s28
    %s30 = ssub.s32 %s17, %s24
    %s31 = sor.u32 %s29, %s30
    %p32 = scmp.eq.s32.totalorder %s31, 0
    %s34 = sadd.s32 %s33, 1
    %s35 = scalar_select %p32, %s33, %s34
    %p38 = pneg %p32
    %p39 = scmp.eq.s32.totalorder %s9, 1
    %p40 = por %p38, %p39
    %p41 = scmp.ne.s32.totalorder %s33, %s36
    %p42 = scmp.eq.s32.totalorder %s9, 0
    %p43 = por %p41, %p42
    %p44 = scmp.ne.s32.totalorder %s33, %s36
    %p45 = scmp.eq.s32.totalorder %s14, 1
    %p46 = por %p44, %p45
    %p47 = scmp.ne.s32.totalorder %s36, %s37
    %p48 = scmp.eq.s32.totalorder %s14, 0
    %p49 = por %p47, %p48
    %p50 = scmp.ne.s32.totalorder %s36, %s37
    %p51 = scmp.eq.s32.totalorder %s15, 1
    %p52 = por %p50, %p51
    %p54 = scmp.ne.s32.totalorder %s37, %s53
    %p55 = scmp.eq.s32.totalorder %s15, 0
    %p56 = por %p54, %p55
    %s58 = sadd.s32 %s57, 1
    %p61 = scmp.eq.s32.totalorder %s9, 1
    %p62 = scmp.ne.s32.totalorder %s57, %s59
    %p63 = scmp.eq.s32.totalorder %s9, 0
    %p64 = por %p62, %p63
    %p65 = scmp.ne.s32.totalorder %s57, %s59
    %p66 = scmp.eq.s32.totalorder %s14, 1
    %p67 = por %p65, %p66
    %p68 = scmp.ne.s32.totalorder %s59, %s60
    %p69 = scmp.eq.s32.totalorder %s14, 0
    %p70 = por %p68, %p69
    %p71 = scmp.ne.s32.totalorder %s59, %s60
    %p72 = scmp.eq.s32.totalorder %s15, 1
    %p73 = por %p71, %p72
    %p75 = scmp.ne.s32.totalorder %s60, %s74
    %p76 = scmp.eq.s32.totalorder %s15, 0
    %p77 = por %p75, %p76
    %s79 = sadd.s32 %s78, 1
    %p82 = scmp.eq.s32.totalorder %s9, 1
    %p83 = scmp.ne.s32.totalorder %s78, %s80
    %p84 = scmp.eq.s32.totalorder %s9, 0
    %p85 = por %p83, %p84
    %p86 = scmp.ne.s32.totalorder %s78, %s80
    %p87 = scmp.eq.s32.totalorder %s14, 1
    %p88 = por %p86, %p87
    %p89 = scmp.ne.s32.totalorder %s80, %s81
    %p90 = scmp.eq.s32.totalorder %s14, 0
    %p91 = por %p89, %p90
    %p92 = scmp.ne.s32.totalorder %s80, %s81
    %p93 = scmp.eq.s32.totalorder %s15, 1
    %p94 = por %p92, %p93
    %p96 = scmp.ne.s32.totalorder %s81, %s95
    %p97 = scmp.eq.s32.totalorder %s15, 0
    %p98 = por %p96, %p97
    %s99 = ssub.s32 %s16, %s28
    %s100 = ssub.s32 %s17, %s24
    %s101 = sor.u32 %s99, %s100
    %p102 = scmp.eq.s32.totalorder %s101, 0
    %s104 = sadd.s32 %s103, 1
    %s105 = scalar_select %p102, %s103, %s104
    %p108 = pneg %p102
    %p109 = scmp.eq.s32.totalorder %s9, 1
    %p110 = por %p108, %p109
    %p111 = scmp.ne.s32.totalorder %s103, %s106
    %p112 = scmp.eq.s32.totalorder %s9, 0
    %p113 = por %p111, %p112
    %p114 = scmp.ne.s32.totalorder %s103, %s106
    %p115 = scmp.eq.s32.totalorder %s14, 1
    %p116 = por %p114, %p115
    %p117 = scmp.ne.s32.totalorder %s106, %s107
    %p118 = scmp.eq.s32.totalorder %s14, 0
    %p119 = por %p117, %p118
    %p120 = scmp.ne.s32.totalorder %s106, %s107
    %p121 = scmp.eq.s32.totalorder %s15, 1
    %p122 = por %p120, %p121
    %p124 = scmp.ne.s32.totalorder %s107, %s123
    %p125 = scmp.eq.s32.totalorder %s15, 0
    %p126 = por %p124, %p125
    %p127 = scmp.le.s32.totalorder 1, %s9
    %p128 = scmp.lt.s32.totalorder %s9, 3
    %p129 = pnand %p127, %p128
    %p130 = pneg %p129
    // Predicated region
    $region9: #{trans_conv_layer.3} parent=5 // pred_check
      _
    $region10: #{trans_conv_layer.3} parent=5 // pred_check_branch
      %132 = sbr.rel (%p129) target = $region12
    $region11: #{trans_conv_layer.3} parent=5 // pred_region
      %s133 = ssub.s32 %s9, 1
      // Predicated region
      $region13: #{trans_conv_layer.3} parent=11 // pred_check
        %p134 = pneg %p70
      $region14: #{trans_conv_layer.3} parent=11 // pred_check_branch
        %136 = sbr.rel (%p134) target = $region16
      $region15: #{trans_conv_layer.3} parent=11 // pred_region
        _
      $region16: #{trans_conv_layer.3} parent=11 // pred_fallthru
        _
      // Predicated region
      $region17: #{trans_conv_layer.3} parent=11 // pred_check
        %p137 = pneg %p91
      $region18: #{trans_conv_layer.3} parent=11 // pred_check_branch
        %139 = sbr.rel (%p137) target = $region20
      $region19: #{trans_conv_layer.3} parent=11 // pred_region
        _
      $region20: #{trans_conv_layer.3} parent=11 // pred_fallthru
        _
    $region12: #{trans_conv_layer.3} parent=5 // pred_fallthru
      _
    %p140 = scmp.lt.s32.totalorder %s9, 2
    // Predicated region
    $region21: #{trans_conv_layer.3} parent=5 // pred_check
      %p141 = pneg %p140
    $region22: #{trans_conv_layer.3} parent=5 // pred_check_branch
      %143 = sbr.rel (%p141) target = $region24
    $region23: #{trans_conv_layer.3} parent=5 // pred_region
      // Predicated region
      $region25: #{trans_conv_layer.3} parent=23 // pred_check
        %p144 = pneg %p43
      $region26: #{trans_conv_layer.3} parent=23 // pred_check_branch
        %146 = sbr.rel (%p144) target = $region28
      $region27: #{trans_conv_layer.3} parent=23 // pred_region
        %s147 = smul.u32 36, %s17
        %p148 = scmp.lt.s32.totalorder %s16, 1
        %s149 = scalar_select %p148, %s16, 1
        %p150 = scmp.lt.s32.totalorder %s147, 35
        %s151 = scalar_select %p150, %s147, 35
        %s152 = smul.addr %s149, 36
        %s153 = sadd.s32 %s151, %s152
        %s154 = smul.addr %s153, 4
        %s155 = scalar_lea.vmem %s0, %s154
        %s156 = smul.u32 36, %s17
      $region28: #{trans_conv_layer.3} parent=23 // pred_fallthru
        _
    $region24: #{trans_conv_layer.3} parent=5 // pred_fallthru
      _
    %p157 = scmp.le.s32.totalorder 1, %s9
    %p158 = scmp.lt.s32.totalorder %s9, 3
    %p159 = pnand %p157, %p158
    %p160 = pneg %p159
    // Predicated region
    $region29: #{trans_conv_layer.3} parent=5 // pred_check
      _
    $region30: #{trans_conv_layer.3} parent=5 // pred_check_branch
      %162 = sbr.rel (%p159) target = $region32
    $region31: #{trans_conv_layer.3} parent=5 // pred_region
      %s163 = ssub.s32 %s9, 1
      %s164 = smul.u32 36, %s19
      %p165 = scmp.lt.s32.totalorder %s18, 1
      %s166 = scalar_select %p165, %s18, 1
      %p167 = scmp.lt.s32.totalorder %s164, 35
      %s168 = scalar_select %p167, %s164, 35
      %s169 = smul.addr %s166, 36
      %s170 = sadd.s32 %s168, %s169
      %s171 = smul.addr %s170, 4
      %s172 = scalar_lea.vmem %s0, %s171
      %p173 = pneg %p49
      %p174 = pneg %p46
      %p175 = pneg %p70
      %p176 = pneg %p67
      %p177 = pneg %p91
      %p178 = pneg %p88
      %p179 = pneg %p119
      %p180 = pneg %p116
      %s181 = smul.u32 36, %s19
      %p182 = scmp.lt.s32.totalorder %s18, 1
      %s183 = scalar_select %p182, %s18, 1
      %p184 = scmp.lt.s32.totalorder %s181, 35
      %s185 = scalar_select %p184, %s181, 35
      %s186 = smul.addr %s183, 36
      %s187 = sadd.s32 %s185, %s186
      %s188 = smul.addr %s187, 4
      %s189 = scalar_lea.vmem %s3, %s188
      %s190 = smul.u32 36, %s19
      %p191 = scmp.lt.s32.totalorder %s18, 1
      %s192 = scalar_select %p191, %s18, 1
      %p193 = scmp.lt.s32.totalorder %s190, 35
      %s194 = scalar_select %p193, %s190, 35
      %s195 = smul.addr %s192, 36
      %s196 = sadd.s32 %s194, %s195
      %s197 = smul.addr %s196, 4
      %s198 = scalar_lea.vmem %s0, %s197
      %s199 = smul.u32 36, %s19
      %s200 = smul.u32 36, %s19
      %p201 = scmp.lt.s32.totalorder %s18, 1
      %s202 = scalar_select %p201, %s18, 1
      %p203 = scmp.lt.s32.totalorder %s200, 35
      %s204 = scalar_select %p203, %s200, 35
      %s205 = smul.addr %s202, 36
      %s206 = sadd.s32 %s204, %s205
      %s207 = smul.addr %s206, 4
      %s208 = scalar_lea.vmem %s3, %s207
      %s209 = smul.u32 36, %s19
      %v210 = vld [vmem:[%s198] sm:$0xf]
      %v211 = vld [vmem:[%s198 + $0x4] sm:$0xf]
      %v212 = vld [vmem:[%s198 + $0x8] sm:$0xf]
      %v213 = vld [vmem:[%s198 + $0xc] sm:$0xf]
      %v214 = vld [vmem:[%s198 + $0x10] sm:$0xf]
      %v215 = vld [vmem:[%s198 + $0x14] sm:$0xf]
      %v216 = vld [vmem:[%s198 + $0x18] sm:$0xf]
      %v217 = vld [vmem:[%s198 + $0x1c] sm:$0xf]
      %v218 = vld [vmem:[%s198 + $0x20] sm:$0xf]
      %v219 = vld [vmem:[%s198 + $0x24] sm:$0xf]
      %v220 = vld [vmem:[%s198 + $0x28] sm:$0xf]
      %v221 = vld [vmem:[%s198 + $0x2c] sm:$0xf]
      %v222 = vld [vmem:[%s198 + $0x30] sm:$0xf]
      %v223 = vld [vmem:[%s198 + $0x34] sm:$0xf]
      %v224 = vld [vmem:[%s198 + $0x38] sm:$0xf]
      %v225 = vld [vmem:[%s198 + $0x3c] sm:$0xf]
      %v226 = vld [vmem:[%s198 + $0x40] sm:$0xf]
      %v227 = vld [vmem:[%s198 + $0x44] sm:$0xf]
      %v228 = vld [vmem:[%s198 + $0x48] sm:$0xf]
      %v229 = vld [vmem:[%s198 + $0x4c] sm:$0xf]
      %v230 = vld [vmem:[%s198 + $0x50] sm:$0xf]
      %v231 = vld [vmem:[%s198 + $0x54] sm:$0xf]
      %v232 = vld [vmem:[%s198 + $0x58] sm:$0xf]
      %v233 = vld [vmem:[%s198 + $0x5c] sm:$0xf]
      %v234 = vld [vmem:[%s198 + $0x60] sm:$0xf]
      %v235 = vld [vmem:[%s198 + $0x64] sm:$0xf]
      %v236 = vld [vmem:[%s198 + $0x68] sm:$0xf]
      %v237 = vld [vmem:[%s198 + $0x6c] sm:$0xf]
      %v238 = vld [vmem:[%s198 + $0x70] sm:$0xf]
      %v239 = vld [vmem:[%s198 + $0x74] sm:$0xf]
      %v240 = vld [vmem:[%s198 + $0x78] sm:$0xf]
      %v241 = vld [vmem:[%s198 + $0x7c] sm:$0xf]
      %v242 = vld [vmem:[%s198 + $0x80] sm:$0xf]
      %v243 = vld [vmem:[%s198 + $0x84] sm:$0xf]
      %v244 = vld [vmem:[%s198 + $0x88] sm:$0xf]
      %v245 = vld [vmem:[%s198 + $0x8c] sm:$0xf]
      %v246 = vunpack.c.l.bf16 %v210
      %v247 = vunpack.c.l.bf16 %v211
      %v248 = vunpack.c.l.bf16 %v212
      %v249 = vunpack.c.l.bf16 %v213
      %v250 = vunpack.c.l.bf16 %v214
      %v251 = vunpack.c.l.bf16 %v215
      %v252 = vunpack.c.l.bf16 %v216
      %v253 = vunpack.c.l.bf16 %v217
      %v254 = vunpack.c.l.bf16 %v218
      %v255 = vunpack.c.l.bf16 %v219
      %v256 = vunpack.c.l.bf16 %v220
      %v257 = vunpack.c.l.bf16 %v221
      %v258 = vunpack.c.l.bf16 %v222
      %v259 = vunpack.c.l.bf16 %v223
      %v260 = vunpack.c.l.bf16 %v224
      %v261 = vunpack.c.l.bf16 %v225
      %v262 = vunpack.c.l.bf16 %v226
      %v263 = vunpack.c.l.bf16 %v227
      %v264 = vunpack.c.l.bf16 %v228
      %v265 = vunpack.c.l.bf16 %v229
      %v266 = vunpack.c.l.bf16 %v230
      %v267 = vunpack.c.l.bf16 %v231
      %v268 = vunpack.c.l.bf16 %v232
      %v269 = vunpack.c.l.bf16 %v233
      %v270 = vunpack.c.l.bf16 %v234
      %v271 = vunpack.c.l.bf16 %v235
      %v272 = vunpack.c.l.bf16 %v236
      %v273 = vunpack.c.l.bf16 %v237
      %v274 = vunpack.c.l.bf16 %v238
      %v275 = vunpack.c.l.bf16 %v239
      %v276 = vunpack.c.l.bf16 %v240
      %v277 = vunpack.c.l.bf16 %v241
      %v278 = vunpack.c.l.bf16 %v242
      %v279 = vunpack.c.l.bf16 %v243
      %v280 = vunpack.c.l.bf16 %v244
      %v281 = vunpack.c.l.bf16 %v245
      %v282 = vld [vmem:[%s1] sm:$0x1]
      %v284 = vperm.slane %v282, 0
      %v286 = vmul.f32 %v246, %v284
      %v287 = vmul.f32 %v247, %v284
      %v288 = vmul.f32 %v248, %v284
      %v289 = vmul.f32 %v249, %v284
      %v290 = vmul.f32 %v250, %v284
      %v291 = vmul.f32 %v251, %v284
      %v292 = vmul.f32 %v252, %v284
      %v293 = vmul.f32 %v253, %v284
      %v294 = vmul.f32 %v254, %v284
      %v295 = vmul.f32 %v255, %v284
      %v296 = vmul.f32 %v256, %v284
      %v297 = vmul.f32 %v257, %v284
      %v298 = vmul.f32 %v258, %v284
      %v299 = vmul.f32 %v259, %v284
      %v300 = vmul.f32 %v260, %v284
      %v301 = vmul.f32 %v261, %v284
      %v302 = vmul.f32 %v262, %v284
      %v303 = vmul.f32 %v263, %v284
      %v304 = vmul.f32 %v264, %v284
      %v305 = vmul.f32 %v265, %v284
      %v306 = vmul.f32 %v266, %v284
      %v307 = vmul.f32 %v267, %v284
      %v308 = vmul.f32 %v268, %v284
      %v309 = vmul.f32 %v269, %v284
      %v310 = vmul.f32 %v270, %v284
      %v311 = vmul.f32 %v271, %v284
      %v312 = vmul.f32 %v272, %v284
      %v313 = vmul.f32 %v273, %v284
      %v314 = vmul.f32 %v274, %v284
      %v315 = vmul.f32 %v275, %v284
      %v316 = vmul.f32 %v276, %v284
      %v317 = vmul.f32 %v277, %v284
      %v318 = vmul.f32 %v278, %v284
      %v319 = vmul.f32 %v279, %v284
      %v320 = vmul.f32 %v280, %v284
      %v321 = vmul.f32 %v281, %v284
      %v322 = vld [vmem:[%s2] sm:$0x1]
      %v324 = vperm.slane %v322, 0
      %v326 = vadd.f32 %v286, %v324
      %v327 = vadd.f32 %v287, %v324
      %v328 = vadd.f32 %v288, %v324
      %v329 = vadd.f32 %v289, %v324
      %v330 = vadd.f32 %v290, %v324
      %v331 = vadd.f32 %v291, %v324
      %v332 = vadd.f32 %v292, %v324
      %v333 = vadd.f32 %v293, %v324
      %v334 = vadd.f32 %v294, %v324
      %v335 = vadd.f32 %v295, %v324
      %v336 = vadd.f32 %v296, %v324
      %v337 = vadd.f32 %v297, %v324
      %v338 = vadd.f32 %v298, %v324
      %v339 = vadd.f32 %v299, %v324
      %v340 = vadd.f32 %v300, %v324
      %v341 = vadd.f32 %v301, %v324
      %v342 = vadd.f32 %v302, %v324
      %v343 = vadd.f32 %v303, %v324
      %v344 = vadd.f32 %v304, %v324
      %v345 = vadd.f32 %v305, %v324
      %v346 = vadd.f32 %v306, %v324
      %v347 = vadd.f32 %v307, %v324
      %v348 = vadd.f32 %v308, %v324
      %v349 = vadd.f32 %v309, %v324
      %v350 = vadd.f32 %v310, %v324
      %v351 = vadd.f32 %v311, %v324
      %v352 = vadd.f32 %v312, %v324
      %v353 = vadd.f32 %v313, %v324
      %v354 = vadd.f32 %v314, %v324
      %v355 = vadd.f32 %v315, %v324
      %v356 = vadd.f32 %v316, %v324
      %v357 = vadd.f32 %v317, %v324
      %v358 = vadd.f32 %v318, %v324
      %v359 = vadd.f32 %v319, %v324
      %v360 = vadd.f32 %v320, %v324
      %v361 = vadd.f32 %v321, %v324
      %v362 = vmax.f32 %v326, 0.0
      %v363 = vmax.f32 %v327, 0.0
      %v364 = vmax.f32 %v328, 0.0
      %v365 = vmax.f32 %v329, 0.0
      %v366 = vmax.f32 %v330, 0.0
      %v367 = vmax.f32 %v331, 0.0
      %v368 = vmax.f32 %v332, 0.0
      %v369 = vmax.f32 %v333, 0.0
      %v370 = vmax.f32 %v334, 0.0
      %v371 = vmax.f32 %v335, 0.0
      %v372 = vmax.f32 %v336, 0.0
      %v373 = vmax.f32 %v337, 0.0
      %v374 = vmax.f32 %v338, 0.0
      %v375 = vmax.f32 %v339, 0.0
      %v376 = vmax.f32 %v340, 0.0
      %v377 = vmax.f32 %v341, 0.0
      %v378 = vmax.f32 %v342, 0.0
      %v379 = vmax.f32 %v343, 0.0
      %v380 = vmax.f32 %v344, 0.0
      %v381 = vmax.f32 %v345, 0.0
      %v382 = vmax.f32 %v346, 0.0
      %v383 = vmax.f32 %v347, 0.0
      %v384 = vmax.f32 %v348, 0.0
      %v385 = vmax.f32 %v349, 0.0
      %v386 = vmax.f32 %v350, 0.0
      %v387 = vmax.f32 %v351, 0.0
      %v388 = vmax.f32 %v352, 0.0
      %v389 = vmax.f32 %v353, 0.0
      %v390 = vmax.f32 %v354, 0.0
      %v391 = vmax.f32 %v355, 0.0
      %v392 = vmax.f32 %v356, 0.0
      %v393 = vmax.f32 %v357, 0.0
      %v394 = vmax.f32 %v358, 0.0
      %v395 = vmax.f32 %v359, 0.0
      %v396 = vmax.f32 %v360, 0.0
      %v397 = vmax.f32 %v361, 0.0
      %v398 = vpack.c.bf16 %v362, %v362
      %v399 = vpack.c.bf16 %v363, %v363
      %v400 = vpack.c.bf16 %v364, %v364
      %v401 = vpack.c.bf16 %v365, %v365
      %v402 = vpack.c.bf16 %v366, %v366
      %v403 = vpack.c.bf16 %v367, %v367
      %v404 = vpack.c.bf16 %v368, %v368
      %v405 = vpack.c.bf16 %v369, %v369
      %v406 = vpack.c.bf16 %v370, %v370
      %v407 = vpack.c.bf16 %v371, %v371
      %v408 = vpack.c.bf16 %v372, %v372
      %v409 = vpack.c.bf16 %v373, %v373
      %v410 = vpack.c.bf16 %v374, %v374
      %v411 = vpack.c.bf16 %v375, %v375
      %v412 = vpack.c.bf16 %v376, %v376
      %v413 = vpack.c.bf16 %v377, %v377
      %v414 = vpack.c.bf16 %v378, %v378
      %v415 = vpack.c.bf16 %v379, %v379
      %v416 = vpack.c.bf16 %v380, %v380
      %v417 = vpack.c.bf16 %v381, %v381
      %v418 = vpack.c.bf16 %v382, %v382
      %v419 = vpack.c.bf16 %v383, %v383
      %v420 = vpack.c.bf16 %v384, %v384
      %v421 = vpack.c.bf16 %v385, %v385
      %v422 = vpack.c.bf16 %v386, %v386
      %v423 = vpack.c.bf16 %v387, %v387
      %v424 = vpack.c.bf16 %v388, %v388
      %v425 = vpack.c.bf16 %v389, %v389
      %v426 = vpack.c.bf16 %v390, %v390
      %v427 = vpack.c.bf16 %v391, %v391
      %v428 = vpack.c.bf16 %v392, %v392
      %v429 = vpack.c.bf16 %v393, %v393
      %v430 = vpack.c.bf16 %v394, %v394
      %v431 = vpack.c.bf16 %v395, %v395
      %v432 = vpack.c.bf16 %v396, %v396
      %v433 = vpack.c.bf16 %v397, %v397
      %434 = vst [vmem:[%s208] sm:$0xf] %v398
      %435 = vst [vmem:[%s208 + $0x4] sm:$0xf] %v399
      %436 = vst [vmem:[%s208 + $0x8] sm:$0xf] %v400
      %437 = vst [vmem:[%s208 + $0xc] sm:$0xf] %v401
      %438 = vst [vmem:[%s208 + $0x10] sm:$0xf] %v402
      %439 = vst [vmem:[%s208 + $0x14] sm:$0xf] %v403
      %440 = vst [vmem:[%s208 + $0x18] sm:$0xf] %v404
      %441 = vst [vmem:[%s208 + $0x1c] sm:$0xf] %v405
      %442 = vst [vmem:[%s208 + $0x20] sm:$0xf] %v406
      %443 = vst [vmem:[%s208 + $0x24] sm:$0xf] %v407
      %444 = vst [vmem:[%s208 + $0x28] sm:$0xf] %v408
      %445 = vst [vmem:[%s208 + $0x2c] sm:$0xf] %v409
      %446 = vst [vmem:[%s208 + $0x30] sm:$0xf] %v410
      %447 = vst [vmem:[%s208 + $0x34] sm:$0xf] %v411
      %448 = vst [vmem:[%s208 + $0x38] sm:$0xf] %v412
      %449 = vst [vmem:[%s208 + $0x3c] sm:$0xf] %v413
      %450 = vst [vmem:[%s208 + $0x40] sm:$0xf] %v414
      %451 = vst [vmem:[%s208 + $0x44] sm:$0xf] %v415
      %452 = vst [vmem:[%s208 + $0x48] sm:$0xf] %v416
      %453 = vst [vmem:[%s208 + $0x4c] sm:$0xf] %v417
      %454 = vst [vmem:[%s208 + $0x50] sm:$0xf] %v418
      %455 = vst [vmem:[%s208 + $0x54] sm:$0xf] %v419
      %456 = vst [vmem:[%s208 + $0x58] sm:$0xf] %v420
      %457 = vst [vmem:[%s208 + $0x5c] sm:$0xf] %v421
      %458 = vst [vmem:[%s208 + $0x60] sm:$0xf] %v422
      %459 = vst [vmem:[%s208 + $0x64] sm:$0xf] %v423
      %460 = vst [vmem:[%s208 + $0x68] sm:$0xf] %v424
      %461 = vst [vmem:[%s208 + $0x6c] sm:$0xf] %v425
      %462 = vst [vmem:[%s208 + $0x70] sm:$0xf] %v426
      %463 = vst [vmem:[%s208 + $0x74] sm:$0xf] %v427
      %464 = vst [vmem:[%s208 + $0x78] sm:$0xf] %v428
      %465 = vst [vmem:[%s208 + $0x7c] sm:$0xf] %v429
      %466 = vst [vmem:[%s208 + $0x80] sm:$0xf] %v430
      %467 = vst [vmem:[%s208 + $0x84] sm:$0xf] %v431
      %468 = vst [vmem:[%s208 + $0x88] sm:$0xf] %v432
      %469 = vst [vmem:[%s208 + $0x8c] sm:$0xf] %v433
      %s470 = smul.u32 36, %s19
      %p471 = scmp.lt.s32.totalorder %s18, 1
      %s472 = scalar_select %p471, %s18, 1
      %p473 = scmp.lt.s32.totalorder %s470, 35
      %s474 = scalar_select %p473, %s470, 35
      %s475 = smul.addr %s472, 36
      %s476 = sadd.s32 %s474, %s475
      %s477 = smul.addr %s476, 4
      %s478 = scalar_lea.vmem %s3, %s477
      // Predicated region
      $region33: #{trans_conv_layer.3} parent=31 // pred_check
        %p479 = pneg %p116
      $region34: #{trans_conv_layer.3} parent=31 // pred_check_branch
        %481 = sbr.rel (%p479) target = $region36
      $region35: #{trans_conv_layer.3} parent=31 // pred_region
        %s482 = smul.u32 36, %s19
      $region36: #{trans_conv_layer.3} parent=31 // pred_fallthru
        _
    $region32: #{trans_conv_layer.3} parent=5 // pred_fallthru
      _
    %p483 = scmp.le.s32.totalorder 2, %s9
    // Predicated region
    $region37: #{trans_conv_layer.3} parent=5 // pred_check
      %p484 = pneg %p483
    $region38: #{trans_conv_layer.3} parent=5 // pred_check_branch
      %486 = sbr.rel (%p484) target = $region40
    $region39: #{trans_conv_layer.3} parent=5 // pred_region
      %s487 = ssub.s32 %s9, 2
      // Predicated region
      $region41: #{trans_conv_layer.3} parent=39 // pred_check
        %p488 = pneg %p122
      $region42: #{trans_conv_layer.3} parent=39 // pred_check_branch
        %490 = sbr.rel (%p488) target = $region44
      $region43: #{trans_conv_layer.3} parent=39 // pred_region
        %s491 = smul.u32 36, %s21
        %p492 = scmp.lt.s32.totalorder %s20, 1
        %s493 = scalar_select %p492, %s20, 1
        %p494 = scmp.lt.s32.totalorder %s491, 35
        %s495 = scalar_select %p494, %s491, 35
        %s496 = smul.addr %s493, 36
        %s497 = sadd.s32 %s495, %s496
        %s498 = smul.addr %s497, 4
        %s499 = scalar_lea.vmem %s3, %s498
      $region44: #{trans_conv_layer.3} parent=39 // pred_fallthru
        _
    $region40: #{trans_conv_layer.3} parent=5 // pred_fallthru
      _
  $region6: #{trans_conv_layer.3} parent=0 // loop_footer
    %s13 = sadd.s32 1, %s9
  $region7: #{trans_conv_layer.3} parent=0 // loop_footer_branch
    %8 = sbr.rel target = $region3
  $region8: #{trans_conv_layer.3} parent=0 // loop_exit
    _

// kernel: trans_conv_layer.2
$region0: #{trans_conv_layer.2}
  #allocation0 [shape = 'u32[]', space=smem, size = 0x4, offset = 0x4, fixed_abs, tag = 'smem constant byte address 0x4 - core index']
  #allocation1 [shape = 'u32[72,128]{1,0:T(1,128)}', space=vmem, size = 0x9000, scoped, tag = 'internal scratch']
  #allocation2 [shape = 'f32[288,128]{1,0:T(8,128)}', space=vmem, size = 0x24000, scoped, tag = 'scratch operand']
  %s0 = inlined_call_operand.vmem [shape: bf16[2,328,4], index: 0, kind: input, shape index: {}]
  %s1 = inlined_call_operand.vmem [shape: f32[9,4,128], index: 1, kind: input, shape index: {}]
  %s2 = inlined_call_operand.vmem [shape: f32[288,1], index: 2, kind: input, shape index: {}]
  %s3 = inlined_call_operand.vmem [shape: bf16[2,288,128], index: 3, kind: output, shape index: {0}]
  %s4 = inlined_call_operand.vmem [shape: f32[2,1,128], index: 4, kind: output, shape index: {1}]
  %s5 = inlined_call_operand.vmem [shape: f32[2,1,128], index: 5, kind: output, shape index: {2}]
  %6 = xla_tuple %s3, %s4, %s5
  %s7 = sld [smem:[#allocation0]]
  $region61: #{trans_conv_layer.2} parent=0
    _
  %s9 = ssub.s32 1, %s7
  %s10 = scalar_select 0, %s9, %s7
  loop: start=0, step=1, limit=4
  $region2: #{trans_conv_layer.2} parent=0 // loop_pre_header
    _
  $region3: #{trans_conv_layer.2} parent=0 // loop_header
    %s12 = sphi 0, %s16
    %p13 = scmp.ge.s32.totalorder %s12, 4
    %s22 = sphi 0, %s24
    %s25 = sphi 0, %s22
    %s26 = sphi 0, %s25
    %s42 = sphi 0, %s26
    %s46 = sphi 0, %s46
    %s48 = sphi 0, %s46
    %s49 = sphi 0, %s48
    %s63 = sphi 0, %s49
    %s67 = sphi 0, %s67
    %s69 = sphi 0, %s67
    %s70 = sphi 0, %s69
    %s84 = sphi 0, %s70
    %s90 = sphi 0, %s92
    %s93 = sphi 0, %s90
    %s94 = sphi 0, %s93
    %s110 = sphi 0, %s94
    %s116 = sphi 0, %s118
    %s119 = sphi 0, %s116
    %s120 = sphi 0, %s119
    %s136 = sphi 0, %s120
    %s142 = sphi 0, %s144
    %s145 = sphi 0, %s142
    %s146 = sphi 0, %s145
    %s162 = sphi 0, %s146
  $region4: #{trans_conv_layer.2} parent=0 // loop_header_branch
    %15 = sbr.rel (%p13) target = $region8
  $region5: #{trans_conv_layer.2} parent=0 // loop_body
    %s17 = ssub.s32 %s12, 1
    %s18 = ssub.s32 %s12, 2
    %s19 = sadd.s32 %s12, 1
    %s20 = ssub.s32 %s12, %s19
    %p21 = scmp.eq.s32.totalorder %s20, 0
    %s23 = sadd.s32 %s22, 1
    %s24 = scalar_select %p21, %s22, %s23
    %p27 = pneg %p21
    %p28 = scmp.eq.s32.totalorder %s12, 1
    %p29 = por %p27, %p28
    %p30 = scmp.ne.s32.totalorder %s22, %s25
    %p31 = scmp.eq.s32.totalorder %s12, 0
    %p32 = por %p30, %p31
    %p33 = scmp.ne.s32.totalorder %s22, %s25
    %p34 = scmp.eq.s32.totalorder %s17, 1
    %p35 = por %p33, %p34
    %p36 = scmp.ne.s32.totalorder %s25, %s26
    %p37 = scmp.eq.s32.totalorder %s17, 0
    %p38 = por %p36, %p37
    %p39 = scmp.ne.s32.totalorder %s25, %s26
    %p40 = scmp.eq.s32.totalorder %s18, 1
    %p41 = por %p39, %p40
    %p43 = scmp.ne.s32.totalorder %s26, %s42
    %p44 = scmp.eq.s32.totalorder %s18, 0
    %p45 = por %p43, %p44
    %s47 = sadd.s32 %s46, 1
    %p50 = scmp.eq.s32.totalorder %s12, 1
    %p51 = scmp.ne.s32.totalorder %s46, %s48
    %p52 = scmp.eq.s32.totalorder %s12, 0
    %p53 = por %p51, %p52
    %p54 = scmp.ne.s32.totalorder %s46, %s48
    %p55 = scmp.eq.s32.totalorder %s17, 1
    %p56 = por %p54, %p55
    %p57 = scmp.ne.s32.totalorder %s48, %s49
    %p58 = scmp.eq.s32.totalorder %s17, 0
    %p59 = por %p57, %p58
    %p60 = scmp.ne.s32.totalorder %s48, %s49
    %p61 = scmp.eq.s32.totalorder %s18, 1
    %p62 = por %p60, %p61
    %p64 = scmp.ne.s32.totalorder %s49, %s63
    %p65 = scmp.eq.s32.totalorder %s18, 0
    %p66 = por %p64, %p65
    %s68 = sadd.s32 %s67, 1
    %p71 = scmp.eq.s32.totalorder %s12, 1
    %p72 = scmp.ne.s32.totalorder %s67, %s69
    %p73 = scmp.eq.s32.totalorder %s12, 0
    %p74 = por %p72, %p73
    %p75 = scmp.ne.s32.totalorder %s67, %s69
    %p76 = scmp.eq.s32.totalorder %s17, 1
    %p77 = por %p75, %p76
    %p78 = scmp.ne.s32.totalorder %s69, %s70
    %p79 = scmp.eq.s32.totalorder %s17, 0
    %p80 = por %p78, %p79
    %p81 = scmp.ne.s32.totalorder %s69, %s70
    %p82 = scmp.eq.s32.totalorder %s18, 1
    %p83 = por %p81, %p82
    %p85 = scmp.ne.s32.totalorder %s70, %s84
    %p86 = scmp.eq.s32.totalorder %s18, 0
    %p87 = por %p85, %p86
    %s88 = ssub.s32 %s12, %s19
    %p89 = scmp.eq.s32.totalorder %s88, 0
    %s91 = sadd.s32 %s90, 1
    %s92 = scalar_select %p89, %s90, %s91
    %p95 = pneg %p89
    %p96 = scmp.eq.s32.totalorder %s12, 1
    %p97 = por %p95, %p96
    %p98 = scmp.ne.s32.totalorder %s90, %s93
    %p99 = scmp.eq.s32.totalorder %s12, 0
    %p100 = por %p98, %p99
    %p101 = scmp.ne.s32.totalorder %s90, %s93
    %p102 = scmp.eq.s32.totalorder %s17, 1
    %p103 = por %p101, %p102
    %p104 = scmp.ne.s32.totalorder %s93, %s94
    %p105 = scmp.eq.s32.totalorder %s17, 0
    %p106 = por %p104, %p105
    %p107 = scmp.ne.s32.totalorder %s93, %s94
    %p108 = scmp.eq.s32.totalorder %s18, 1
    %p109 = por %p107, %p108
    %p111 = scmp.ne.s32.totalorder %s94, %s110
    %p112 = scmp.eq.s32.totalorder %s18, 0
    %p113 = por %p111, %p112
    %s114 = ssub.s32 %s12, %s19
    %p115 = scmp.eq.s32.totalorder %s114, 0
    %s117 = sadd.s32 %s116, 1
    %s118 = scalar_select %p115, %s116, %s117
    %p121 = pneg %p115
    %p122 = scmp.eq.s32.totalorder %s12, 1
    %p123 = por %p121, %p122
    %p124 = scmp.ne.s32.totalorder %s116, %s119
    %p125 = scmp.eq.s32.totalorder %s12, 0
    %p126 = por %p124, %p125
    %p127 = scmp.ne.s32.totalorder %s116, %s119
    %p128 = scmp.eq.s32.totalorder %s17, 1
    %p129 = por %p127, %p128
    %p130 = scmp.ne.s32.totalorder %s119, %s120
    %p131 = scmp.eq.s32.totalorder %s17, 0
    %p132 = por %p130, %p131
    %p133 = scmp.ne.s32.totalorder %s119, %s120
    %p134 = scmp.eq.s32.totalorder %s18, 1
    %p135 = por %p133, %p134
    %p137 = scmp.ne.s32.totalorder %s120, %s136
    %p138 = scmp.eq.s32.totalorder %s18, 0
    %p139 = por %p137, %p138
    %s140 = ssub.s32 %s12, %s19
    %p141 = scmp.eq.s32.totalorder %s140, 0
    %s143 = sadd.s32 %s142, 1
    %s144 = scalar_select %p141, %s142, %s143
    %p147 = pneg %p141
    %p148 = scmp.eq.s32.totalorder %s12, 1
    %p149 = por %p147, %p148
    %p150 = scmp.ne.s32.totalorder %s142, %s145
    %p151 = scmp.eq.s32.totalorder %s12, 0
    %p152 = por %p150, %p151
    %p153 = scmp.ne.s32.totalorder %s142, %s145
    %p154 = scmp.eq.s32.totalorder %s17, 1
    %p155 = por %p153, %p154
    %p156 = scmp.ne.s32.totalorder %s145, %s146
    %p157 = scmp.eq.s32.totalorder %s17, 0
    %p158 = por %p156, %p157
    %p159 = scmp.ne.s32.totalorder %s145, %s146
    %p160 = scmp.eq.s32.totalorder %s18, 1
    %p161 = por %p159, %p160
    %p163 = scmp.ne.s32.totalorder %s146, %s162
    %p164 = scmp.eq.s32.totalorder %s18, 0
    %p165 = por %p163, %p164
    %p166 = scmp.le.s32.totalorder 1, %s12
    %p167 = scmp.lt.s32.totalorder %s12, 3
    %p168 = pnand %p166, %p167
    %p169 = pneg %p168
    // Predicated region
    $region9: #{trans_conv_layer.2} parent=5 // pred_check
      _
    $region10: #{trans_conv_layer.2} parent=5 // pred_check_branch
      %171 = sbr.rel (%p168) target = $region12
    $region11: #{trans_conv_layer.2} parent=5 // pred_region
      %s172 = ssub.s32 %s12, 1
      // Predicated region
      $region13: #{trans_conv_layer.2} parent=11 // pred_check
        %p173 = pneg %p59
      $region14: #{trans_conv_layer.2} parent=11 // pred_check_branch
        %175 = sbr.rel (%p173) target = $region16
      $region15: #{trans_conv_layer.2} parent=11 // pred_region
        _
      $region16: #{trans_conv_layer.2} parent=11 // pred_fallthru
        _
      // Predicated region
      $region17: #{trans_conv_layer.2} parent=11 // pred_check
        %p176 = pneg %p80
      $region18: #{trans_conv_layer.2} parent=11 // pred_check_branch
        %178 = sbr.rel (%p176) target = $region20
      $region19: #{trans_conv_layer.2} parent=11 // pred_region
        _
      $region20: #{trans_conv_layer.2} parent=11 // pred_fallthru
        _
    $region12: #{trans_conv_layer.2} parent=5 // pred_fallthru
      _
    %p179 = scmp.lt.s32.totalorder %s12, 2
    // Predicated region
    $region21: #{trans_conv_layer.2} parent=5 // pred_check
      %p180 = pneg %p179
    $region22: #{trans_conv_layer.2} parent=5 // pred_check_branch
      %182 = sbr.rel (%p180) target = $region24
    $region23: #{trans_conv_layer.2} parent=5 // pred_region
      // Predicated region
      $region25: #{trans_conv_layer.2} parent=23 // pred_check
        %p183 = pneg %p32
      $region26: #{trans_conv_layer.2} parent=23 // pred_check_branch
        %185 = sbr.rel (%p183) target = $region28
      $region27: #{trans_conv_layer.2} parent=23 // pred_region
        %p186 = scmp.lt.s32.totalorder %s12, 1
        %s187 = scalar_select %p186, %s12, 1
        %s188 = smul.addr %s187, 41
        %s189 = smul.addr %s188, 4
        %s190 = scalar_lea.vmem %s0, %s189
      $region28: #{trans_conv_layer.2} parent=23 // pred_fallthru
        _
    $region24: #{trans_conv_layer.2} parent=5 // pred_fallthru
      _
    %p191 = scmp.le.s32.totalorder 1, %s12
    %p192 = scmp.lt.s32.totalorder %s12, 3
    %p193 = pnand %p191, %p192
    %p194 = pneg %p193
    // Predicated region
    $region29: #{trans_conv_layer.2} parent=5 // pred_check
      _
    $region30: #{trans_conv_layer.2} parent=5 // pred_check_branch
      %196 = sbr.rel (%p193) target = $region32
    $region31: #{trans_conv_layer.2} parent=5 // pred_region
      %s197 = ssub.s32 %s12, 1
      %p198 = scmp.lt.s32.totalorder %s17, 1
      %s199 = scalar_select %p198, %s17, 1
      %s200 = smul.addr %s199, 41
      %s201 = smul.addr %s200, 4
      %s202 = scalar_lea.vmem %s0, %s201
      %p203 = pneg %p38
      %p204 = pneg %p35
      %p205 = pneg %p59
      %p206 = pneg %p56
      %p207 = pneg %p80
      %p208 = pneg %p77
      %p209 = pneg %p106
      %p210 = pneg %p103
      %p211 = scmp.lt.s32.totalorder %s17, 1
      %s212 = scalar_select %p211, %s17, 1
      %s213 = smul.addr %s212, 36
      %s214 = smul.addr %s213, 4
      %s215 = scalar_lea.vmem %s3, %s214
      %p216 = pneg %p132
      %p217 = pneg %p129
      %p218 = scmp.lt.s32.totalorder %s17, 1
      %s219 = scalar_select %p218, %s17, 1
      %s220 = scalar_lea.vmem %s4, %s219
      %p221 = pneg %p158
      %p222 = pneg %p155
      %p223 = scmp.lt.s32.totalorder %s17, 1
      %s224 = scalar_select %p223, %s17, 1
      %s225 = scalar_lea.vmem %s5, %s224
      %p226 = scmp.lt.s32.totalorder %s17, 1
      %s227 = scalar_select %p226, %s17, 1
      %s228 = smul.addr %s227, 41
      %s229 = smul.addr %s228, 4
      %s230 = scalar_lea.vmem %s0, %s229
      %p231 = scmp.lt.s32.totalorder %s17, 1
      %s232 = scalar_select %p231, %s17, 1
      %s233 = smul.addr %s232, 36
      %s234 = smul.addr %s233, 4
      %s235 = scalar_lea.vmem %s3, %s234
      %p236 = scmp.lt.s32.totalorder %s17, 1
      %s237 = scalar_select %p236, %s17, 1
      %s238 = scalar_lea.vmem %s4, %s237
      %p239 = scmp.lt.s32.totalorder %s17, 1
      %s240 = scalar_select %p239, %s17, 1
      %s241 = scalar_lea.vmem %s5, %s240
      %v242 = vld [vmem:[%s230] sm:$0xf]
      %v243 = vld [vmem:[%s230 + $0x4] sm:$0xf]
      %v244 = vld [vmem:[%s230 + $0x8] sm:$0xf]
      %v245 = vld [vmem:[%s230 + $0xc] sm:$0xf]
      %v246 = vld [vmem:[%s230 + $0x10] sm:$0xf]
      %v247 = vld [vmem:[%s230 + $0x14] sm:$0xf]
      %v248 = vld [vmem:[%s230 + $0x18] sm:$0xf]
      %v249 = vld [vmem:[%s230 + $0x1c] sm:$0xf]
      %v250 = vld [vmem:[%s230 + $0x20] sm:$0xf]
      %v251 = vld [vmem:[%s230 + $0x24] sm:$0xf]
      %v252 = vld [vmem:[%s230 + $0x28] sm:$0xf]
      %v253 = vld [vmem:[%s230 + $0x2c] sm:$0xf]
      %v254 = vld [vmem:[%s230 + $0x30] sm:$0xf]
      %v255 = vld [vmem:[%s230 + $0x34] sm:$0xf]
      %v256 = vld [vmem:[%s230 + $0x38] sm:$0xf]
      %v257 = vld [vmem:[%s230 + $0x3c] sm:$0xf]
      %v258 = vld [vmem:[%s230 + $0x40] sm:$0xf]
      %v259 = vld [vmem:[%s230 + $0x44] sm:$0xf]
      %v260 = vld [vmem:[%s230 + $0x48] sm:$0xf]
      %v261 = vld [vmem:[%s230 + $0x4c] sm:$0xf]
      %v262 = vld [vmem:[%s230 + $0x50] sm:$0xf]
      %v263 = vld [vmem:[%s230 + $0x54] sm:$0xf]
      %v264 = vld [vmem:[%s230 + $0x58] sm:$0xf]
      %v265 = vld [vmem:[%s230 + $0x5c] sm:$0xf]
      %v266 = vld [vmem:[%s230 + $0x60] sm:$0xf]
      %v267 = vld [vmem:[%s230 + $0x64] sm:$0xf]
      %v268 = vld [vmem:[%s230 + $0x68] sm:$0xf]
      %v269 = vld [vmem:[%s230 + $0x6c] sm:$0xf]
      %v270 = vld [vmem:[%s230 + $0x70] sm:$0xf]
      %v271 = vld [vmem:[%s230 + $0x74] sm:$0xf]
      %v272 = vld [vmem:[%s230 + $0x78] sm:$0xf]
      %v273 = vld [vmem:[%s230 + $0x7c] sm:$0xf]
      %v274 = vld [vmem:[%s230 + $0x80] sm:$0xf]
      %v275 = vld [vmem:[%s230 + $0x84] sm:$0xf]
      %v276 = vld [vmem:[%s230 + $0x88] sm:$0xf]
      %v277 = vld [vmem:[%s230 + $0x8c] sm:$0xf]
      %v278 = vld [vmem:[%s230 + $0x90] sm:$0xf]
      %v279 = vld [vmem:[%s230 + $0x94] sm:$0xf]
      %v280 = vld [vmem:[%s230 + $0x98] sm:$0xf]
      %v281 = vld [vmem:[%s230 + $0x9c] sm:$0xf]
      %v282 = vld [vmem:[%s230 + $0xa0] sm:$0xf]
      %v283 = vunpack.c.l.bf16 %v242
      %v284 = vunpack.c.l.bf16 %v243
      %v285 = vunpack.c.l.bf16 %v244
      %v286 = vunpack.c.l.bf16 %v245
      %v287 = vunpack.c.l.bf16 %v246
      %v288 = vunpack.c.l.bf16 %v247
      %v289 = vunpack.c.l.bf16 %v248
      %v290 = vunpack.c.l.bf16 %v249
      %v291 = vunpack.c.l.bf16 %v250
      %v292 = vunpack.c.l.bf16 %v251
      %v293 = vunpack.c.l.bf16 %v252
      %v294 = vunpack.c.l.bf16 %v253
      %v295 = vunpack.c.l.bf16 %v254
      %v296 = vunpack.c.l.bf16 %v255
      %v297 = vunpack.c.l.bf16 %v256
      %v298 = vunpack.c.l.bf16 %v257
      %v299 = vunpack.c.l.bf16 %v258
      %v300 = vunpack.c.l.bf16 %v259
      %v301 = vunpack.c.l.bf16 %v260
      %v302 = vunpack.c.l.bf16 %v261
      %v303 = vunpack.c.l.bf16 %v262
      %v304 = vunpack.c.l.bf16 %v263
      %v305 = vunpack.c.l.bf16 %v264
      %v306 = vunpack.c.l.bf16 %v265
      %v307 = vunpack.c.l.bf16 %v266
      %v308 = vunpack.c.l.bf16 %v267
      %v309 = vunpack.c.l.bf16 %v268
      %v310 = vunpack.c.l.bf16 %v269
      %v311 = vunpack.c.l.bf16 %v270
      %v312 = vunpack.c.l.bf16 %v271
      %v313 = vunpack.c.l.bf16 %v272
      %v314 = vunpack.c.l.bf16 %v273
      %v315 = vunpack.c.l.bf16 %v274
      %v316 = vunpack.c.l.bf16 %v275
      %v317 = vunpack.c.l.bf16 %v276
      %v318 = vunpack.c.l.bf16 %v277
      %v319 = vunpack.c.l.bf16 %v278
      %v320 = vunpack.c.l.bf16 %v279
      %v321 = vunpack.c.l.bf16 %v280
      %v322 = vunpack.c.l.bf16 %v281
      %v323 = vunpack.c.l.bf16 %v282
      %v324 = vld [vmem:[%s1] sm:$0xf]
      %vm325 = vcmask 31744
      %v327 = vsel %vm325, %v283, 0
      %v330 = vsel %vm325, %v284, 0
      %v333 = vsel %vm325, %v285, 0
      %v336 = vsel %vm325, %v286, 0
      %v339 = vsel %vm325, %v287, 0
      %v342 = vsel %vm325, %v288, 0
      %v345 = vsel %vm325, %v289, 0
      %v348 = vsel %vm325, %v290, 0
      %v351 = vsel %vm325, %v291, 0
      %v354 = vsel %vm325, %v292, 0
      %v357 = vsel %vm325, %v293, 0
      %v360 = vsel %vm325, %v294, 0
      %v363 = vsel %vm325, %v295, 0
      %v366 = vsel %vm325, %v296, 0
      %v369 = vsel %vm325, %v297, 0
      %v372 = vsel %vm325, %v298, 0
      %v375 = vsel %vm325, %v299, 0
      %v378 = vsel %vm325, %v300, 0
      %v381 = vsel %vm325, %v301, 0
      %v384 = vsel %vm325, %v302, 0
      %v387 = vsel %vm325, %v303, 0
      %v390 = vsel %vm325, %v304, 0
      %v393 = vsel %vm325, %v305, 0
      %v396 = vsel %vm325, %v306, 0
      %v399 = vsel %vm325, %v307, 0
      %v402 = vsel %vm325, %v308, 0
      %v405 = vsel %vm325, %v309, 0
      %v408 = vsel %vm325, %v310, 0
      %v411 = vsel %vm325, %v311, 0
      %v414 = vsel %vm325, %v312, 0
      %v417 = vsel %vm325, %v313, 0
      %v420 = vsel %vm325, %v314, 0
      %v423 = vsel %vm325, %v315, 0
      %v426 = vsel %vm325, %v316, 0
      %v429 = vsel %vm325, %v317, 0
      %v432 = vsel %vm325, %v318, 0
      %vm434 = vcmask 1043456
      %v436 = vsel %vm434, %v324, 0
      %438 = vmatpush.msra.mxu0 0.0
      %439 = vmatpush.msra.mxu0 0.0
      %440 = vmatpush.msra.mxu0 0.0
      %441 = vmatpush.msra.mxu0 0.0
      %442 = vmatpush.msra.mxu0 0.0
      %443 = vmatpush.msra.mxu0 0.0
      %444 = vmatpush.msra.mxu0 0.0
      %445 = vmatpush.msra.mxu0 0.0
      %446 = vmatpush.msra.mxu0 0.0
      %447 = vmatpush.msra.mxu0 0.0
      %448 = vmatpush.msra.mxu0 0.0
      %449 = vmatpush.msra.mxu0 0.0
      %450 = vmatpush.msra.mxu0 0.0
      %451 = vmatpush.msra.mxu0 0.0
      %452 = vmatpush.msra.mxu0 0.0
      %453 = vmatpush.msra.mxu0 %v436
      %454 = vmatmul.f32.gmra.mxu0 %v327
      %v455 = vpop.f32.mrf.mxu0
      %v456 = vadd.f32 0.0, %v455
      %457 = vmatmul.f32.gmra.mxu0 %v330
      %v458 = vpop.f32.mrf.mxu0
      %v459 = vadd.f32 0.0, %v458
      %460 = vmatmul.f32.gmra.mxu0 %v333
      %v461 = vpop.f32.mrf.mxu0
      %v462 = vadd.f32 0.0, %v461
      %463 = vmatmul.f32.gmra.mxu0 %v336
      %v464 = vpop.f32.mrf.mxu0
      %v465 = vadd.f32 0.0, %v464
      %466 = vmatmul.f32.gmra.mxu0 %v339
      %v467 = vpop.f32.mrf.mxu0
      %v468 = vadd.f32 0.0, %v467
      %469 = vmatmul.f32.gmra.mxu0 %v342
      %v470 = vpop.f32.mrf.mxu0
      %v471 = vadd.f32 0.0, %v470
      %472 = vmatmul.f32.gmra.mxu0 %v345
      %v473 = vpop.f32.mrf.mxu0
      %v474 = vadd.f32 0.0, %v473
      %475 = vmatmul.f32.gmra.mxu0 %v348
      %v476 = vpop.f32.mrf.mxu0
      %v477 = vadd.f32 0.0, %v476
      %478 = vmatmul.f32.gmra.mxu0 %v351
      %v479 = vpop.f32.mrf.mxu0
      %v480 = vadd.f32 0.0, %v479
      %481 = vmatmul.f32.gmra.mxu0 %v354
      %v482 = vpop.f32.mrf.mxu0
      %v483 = vadd.f32 0.0, %v482
      %484 = vmatmul.f32.gmra.mxu0 %v357
      %v485 = vpop.f32.mrf.mxu0
      %v486 = vadd.f32 0.0, %v485
      %487 = vmatmul.f32.gmra.mxu0 %v360
      %v488 = vpop.f32.mrf.mxu0
      %v489 = vadd.f32 0.0, %v488
      %490 = vmatmul.f32.gmra.mxu0 %v363
      %v491 = vpop.f32.mrf.mxu0
      %v492 = vadd.f32 0.0, %v491
      %493 = vmatmul.f32.gmra.mxu0 %v366
      %v494 = vpop.f32.mrf.mxu0
      %v495 = vadd.f32 0.0, %v494
      %496 = vmatmul.f32.gmra.mxu0 %v369
      %v497 = vpop.f32.mrf.mxu0
      %v498 = vadd.f32 0.0, %v497
      %499 = vmatmul.f32.gmra.mxu0 %v372
      %v500 = vpop.f32.mrf.mxu0
      %v501 = vadd.f32 0.0, %v500
      %502 = vmatmul.f32.gmra.mxu0 %v375
      %v503 = vpop.f32.mrf.mxu0
      %v504 = vadd.f32 0.0, %v503
      %505 = vmatmul.f32.gmra.mxu0 %v378
      %v506 = vpop.f32.mrf.mxu0
      %v507 = vadd.f32 0.0, %v506
      %508 = vmatmul.f32.gmra.mxu0 %v381
      %v509 = vpop.f32.mrf.mxu0
      %v510 = vadd.f32 0.0, %v509
      %511 = vmatmul.f32.gmra.mxu0 %v384
      %v512 = vpop.f32.mrf.mxu0
      %v513 = vadd.f32 0.0, %v512
      %514 = vmatmul.f32.gmra.mxu0 %v387
      %v515 = vpop.f32.mrf.mxu0
      %v516 = vadd.f32 0.0, %v515
      %517 = vmatmul.f32.gmra.mxu0 %v390
      %v518 = vpop.f32.mrf.mxu0
      %v519 = vadd.f32 0.0, %v518
      %520 = vmatmul.f32.gmra.mxu0 %v393
      %v521 = vpop.f32.mrf.mxu0
      %v522 = vadd.f32 0.0, %v521
      %523 = vmatmul.f32.gmra.mxu0 %v396
      %v524 = vpop.f32.mrf.mxu0
      %v525 = vadd.f32 0.0, %v524
      %526 = vmatmul.f32.gmra.mxu0 %v399
      %v527 = vpop.f32.mrf.mxu0
      %v528 = vadd.f32 0.0, %v527
      %529 = vmatmul.f32.gmra.mxu0 %v402
      %v530 = vpop.f32.mrf.mxu0
      %v531 = vadd.f32 0.0, %v530
      %532 = vmatmul.f32.gmra.mxu0 %v405
      %v533 = vpop.f32.mrf.mxu0
      %v534 = vadd.f32 0.0, %v533
      %535 = vmatmul.f32.gmra.mxu0 %v408
      %v536 = vpop.f32.mrf.mxu0
      %v537 = vadd.f32 0.0, %v536
      %538 = vmatmul.f32.gmra.mxu0 %v411
      %v539 = vpop.f32.mrf.mxu0
      %v540 = vadd.f32 0.0, %v539
      %541 = vmatmul.f32.gmra.mxu0 %v414
      %v542 = vpop.f32.mrf.mxu0
      %v543 = vadd.f32 0.0, %v542
      %544 = vmatmul.f32.gmra.mxu0 %v417
      %v545 = vpop.f32.mrf.mxu0
      %v546 = vadd.f32 0.0, %v545
      %547 = vmatmul.f32.gmra.mxu0 %v420
      %v548 = vpop.f32.mrf.mxu0
      %v549 = vadd.f32 0.0, %v548
      %550 = vmatmul.f32.gmra.mxu0 %v423
      %v551 = vpop.f32.mrf.mxu0
      %v552 = vadd.f32 0.0, %v551
      %553 = vmatmul.f32.gmra.mxu0 %v426
      %v554 = vpop.f32.mrf.mxu0
      %v555 = vadd.f32 0.0, %v554
      %556 = vmatmul.f32.gmra.mxu0 %v429
      %v557 = vpop.f32.mrf.mxu0
      %v558 = vadd.f32 0.0, %v557
      %559 = vmatmul.f32.gmra.mxu0 %v432
      %v560 = vpop.f32.mrf.mxu0
      %v561 = vadd.f32 0.0, %v560
      %562 = vdwg.mxu0
      %563 = vst [vmem:[#allocation2] sm:$0xff] %v456
      %564 = vst [vmem:[#allocation2 + $0x8] sm:$0xff] %v459
      %565 = vst [vmem:[#allocation2 + $0x10] sm:$0xff] %v462
      %566 = vst [vmem:[#allocation2 + $0x18] sm:$0xff] %v465
      %567 = vst [vmem:[#allocation2 + $0x20] sm:$0xff] %v468
      %568 = vst [vmem:[#allocation2 + $0x28] sm:$0xff] %v471
      %569 = vst [vmem:[#allocation2 + $0x30] sm:$0xff] %v474
      %570 = vst [vmem:[#allocation2 + $0x38] sm:$0xff] %v477
      %571 = vst [vmem:[#allocation2 + $0x40] sm:$0xff] %v480
      %572 = vst [vmem:[#allocation2 + $0x48] sm:$0xff] %v483
      %573 = vst [vmem:[#allocation2 + $0x50] sm:$0xff] %v486
      %574 = vst [vmem:[#allocation2 + $0x58] sm:$0xff] %v489
      %575 = vst [vmem:[#allocation2 + $0x60] sm:$0xff] %v492
      %576 = vst [vmem:[#allocation2 + $0x68] sm:$0xff] %v495
      %577 = vst [vmem:[#allocation2 + $0x70] sm:$0xff] %v498
      %578 = vst [vmem:[#allocation2 + $0x78] sm:$0xff] %v501
      %579 = vst [vmem:[#allocation2 + $0x80] sm:$0xff] %v504
      %580 = vst [vmem:[#allocation2 + $0x88] sm:$0xff] %v507
      %581 = vst [vmem:[#allocation2 + $0x90] sm:$0xff] %v510
      %582 = vst [vmem:[#allocation2 + $0x98] sm:$0xff] %v513
      %583 = vst [vmem:[#allocation2 + $0xa0] sm:$0xff] %v516
      %584 = vst [vmem:[#allocation2 + $0xa8] sm:$0xff] %v519
      %585 = vst [vmem:[#allocation2 + $0xb0] sm:$0xff] %v522
      %586 = vst [vmem:[#allocation2 + $0xb8] sm:$0xff] %v525
      %587 = vst [vmem:[#allocation2 + $0xc0] sm:$0xff] %v528
      %588 = vst [vmem:[#allocation2 + $0xc8] sm:$0xff] %v531
      %589 = vst [vmem:[#allocation2 + $0xd0] sm:$0xff] %v534
      %590 = vst [vmem:[#allocation2 + $0xd8] sm:$0xff] %v537
      %591 = vst [vmem:[#allocation2 + $0xe0] sm:$0xff] %v540
      %592 = vst [vmem:[#allocation2 + $0xe8] sm:$0xff] %v543
      %593 = vst [vmem:[#allocation2 + $0xf0] sm:$0xff] %v546
      %594 = vst [vmem:[#allocation2 + $0xf8] sm:$0xff] %v549
      %595 = vst [vmem:[#allocation2 + $0x100] sm:$0xff] %v552
      %596 = vst [vmem:[#allocation2 + $0x108] sm:$0xff] %v555
      %597 = vst [vmem:[#allocation2 + $0x110] sm:$0xff] %v558
      %598 = vst [vmem:[#allocation2 + $0x118] sm:$0xff] %v561
      %v599 = vld [vmem:[#allocation2] sm:$0xff]
      %v600 = vld [vmem:[#allocation2 + $0x8] sm:$0xff]
      %v601 = vld [vmem:[#allocation2 + $0x10] sm:$0xff]
      %v602 = vld [vmem:[#allocation2 + $0x18] sm:$0xff]
      %v603 = vld [vmem:[#allocation2 + $0x20] sm:$0xff]
      %v604 = vld [vmem:[#allocation2 + $0x28] sm:$0xff]
      %v605 = vld [vmem:[#allocation2 + $0x30] sm:$0xff]
      %v606 = vld [vmem:[#allocation2 + $0x38] sm:$0xff]
      %v607 = vld [vmem:[#allocation2 + $0x40] sm:$0xff]
      %v608 = vld [vmem:[#allocation2 + $0x48] sm:$0xff]
      %v609 = vld [vmem:[#allocation2 + $0x50] sm:$0xff]
      %v610 = vld [vmem:[#allocation2 + $0x58] sm:$0xff]
      %v611 = vld [vmem:[#allocation2 + $0x60] sm:$0xff]
      %v612 = vld [vmem:[#allocation2 + $0x68] sm:$0xff]
      %v613 = vld [vmem:[#allocation2 + $0x70] sm:$0xff]
      %v614 = vld [vmem:[#allocation2 + $0x78] sm:$0xff]
      %v615 = vld [vmem:[#allocation2 + $0x80] sm:$0xff]
      %v616 = vld [vmem:[#allocation2 + $0x88] sm:$0xff]
      %v617 = vld [vmem:[#allocation2 + $0x90] sm:$0xff]
      %v618 = vld [vmem:[#allocation2 + $0x98] sm:$0xff]
      %v619 = vld [vmem:[#allocation2 + $0xa0] sm:$0xff]
      %v620 = vld [vmem:[#allocation2 + $0xa8] sm:$0xff]
      %v621 = vld [vmem:[#allocation2 + $0xb0] sm:$0xff]
      %v622 = vld [vmem:[#allocation2 + $0xb8] sm:$0xff]
      %v623 = vld [vmem:[#allocation2 + $0xc0] sm:$0xff]
      %v624 = vld [vmem:[#allocation2 + $0xc8] sm:$0xff]
      %v625 = vld [vmem:[#allocation2 + $0xd0] sm:$0xff]
      %v626 = vld [vmem:[#allocation2 + $0xd8] sm:$0xff]
      %v627 = vld [vmem:[#allocation2 + $0xe0] sm:$0xff]
      %v628 = vld [vmem:[#allocation2 + $0xe8] sm:$0xff]
      %v629 = vld [vmem:[#allocation2 + $0xf0] sm:$0xff]
      %v630 = vld [vmem:[#allocation2 + $0xf8] sm:$0xff]
      %v631 = vld [vmem:[#allocation2 + $0x100] sm:$0xff]
      %v632 = vld [vmem:[#allocation2 + $0x108] sm:$0xff]
      %v633 = vld [vmem:[#allocation2 + $0x110] sm:$0xff]
      %v634 = vld [vmem:[#allocation2 + $0x118] sm:$0xff]
      %s635 = scalar_lea.vmem %s1, 4
      %v636 = vld [vmem:[%s635] sm:$0xf]
      %vm638 = vcmask 1046528
      %v639 = vrot.slane %v283, 1
      %v640 = vrot.slane %v284, 1
      %v641 = vsel %vm638, %v639, %v640
      %v642 = vrot.slane %v285, 1
      %v643 = vsel %vm638, %v640, %v642
      %v644 = vrot.slane %v286, 1
      %v645 = vsel %vm638, %v642, %v644
      %v646 = vrot.slane %v287, 1
      %v647 = vsel %vm638, %v644, %v646
      %v648 = vrot.slane %v288, 1
      %v649 = vsel %vm638, %v646, %v648
      %v650 = vrot.slane %v289, 1
      %v651 = vsel %vm638, %v648, %v650
      %v652 = vrot.slane %v290, 1
      %v653 = vsel %vm638, %v650, %v652
      %v654 = vrot.slane %v291, 1
      %v655 = vsel %vm638, %v652, %v654
      %v656 = vrot.slane %v292, 1
      %v657 = vsel %vm638, %v654, %v656
      %v658 = vrot.slane %v293, 1
      %v659 = vsel %vm638, %v656, %v658
      %v660 = vrot.slane %v294, 1
      %v661 = vsel %vm638, %v658, %v660
      %v662 = vrot.slane %v295, 1
      %v663 = vsel %vm638, %v660, %v662
      %v664 = vrot.slane %v296, 1
      %v665 = vsel %vm638, %v662, %v664
      %v666 = vrot.slane %v297, 1
      %v667 = vsel %vm638, %v664, %v666
      %v668 = vrot.slane %v298, 1
      %v669 = vsel %vm638, %v666, %v668
      %v670 = vrot.slane %v299, 1
      %v671 = vsel %vm638, %v668, %v670
      %v672 = vrot.slane %v300, 1
      %v673 = vsel %vm638, %v670, %v672
      %v674 = vrot.slane %v301, 1
      %v675 = vsel %vm638, %v672, %v674
      %v676 = vrot.slane %v302, 1
      %v677 = vsel %vm638, %v674, %v676
      %v678 = vrot.slane %v303, 1
      %v679 = vsel %vm638, %v676, %v678
      %v680 = vrot.slane %v304, 1
      %v681 = vsel %vm638, %v678, %v680
      %v682 = vrot.slane %v305, 1
      %v683 = vsel %vm638, %v680, %v682
      %v684 = vrot.slane %v306, 1
      %v685 = vsel %vm638, %v682, %v684
      %v686 = vrot.slane %v307, 1
      %v687 = vsel %vm638, %v684, %v686
      %v688 = vrot.slane %v308, 1
      %v689 = vsel %vm638, %v686, %v688
      %v690 = vrot.slane %v309, 1
      %v691 = vsel %vm638, %v688, %v690
      %v692 = vrot.slane %v310, 1
      %v693 = vsel %vm638, %v690, %v692
      %v694 = vrot.slane %v311, 1
      %v695 = vsel %vm638, %v692, %v694
      %v696 = vrot.slane %v312, 1
      %v697 = vsel %vm638, %v694, %v696
      %v698 = vrot.slane %v313, 1
      %v699 = vsel %vm638, %v696, %v698
      %v700 = vrot.slane %v314, 1
      %v701 = vsel %vm638, %v698, %v700
      %v702 = vrot.slane %v315, 1
      %v703 = vsel %vm638, %v700, %v702
      %v704 = vrot.slane %v316, 1
      %v705 = vsel %vm638, %v702, %v704
      %v706 = vrot.slane %v317, 1
      %v707 = vsel %vm638, %v704, %v706
      %v708 = vrot.slane %v318, 1
      %v709 = vsel %vm638, %v706, %v708
      %v710 = vrot.slane %v319, 1
      %v711 = vsel %vm638, %v708, %v710
      %v712 = vsel %vm325, %v641, 0
      %v714 = vsel %vm325, %v643, 0
      %v716 = vsel %vm325, %v645, 0
      %v718 = vsel %vm325, %v647, 0
      %v720 = vsel %vm325, %v649, 0
      %v722 = vsel %vm325, %v651, 0
      %v724 = vsel %vm325, %v653, 0
      %v726 = vsel %vm325, %v655, 0
      %v728 = vsel %vm325, %v657, 0
      %v730 = vsel %vm325, %v659, 0
      %v732 = vsel %vm325, %v661, 0
      %v734 = vsel %vm325, %v663, 0
      %v736 = vsel %vm325, %v665, 0
      %v738 = vsel %vm325, %v667, 0
      %v740 = vsel %vm325, %v669, 0
      %v742 = vsel %vm325, %v671, 0
      %v744 = vsel %vm325, %v673, 0
      %v746 = vsel %vm325, %v675, 0
      %v748 = vsel %vm325, %v677, 0
      %v750 = vsel %vm325, %v679, 0
      %v752 = vsel %vm325, %v681, 0
      %v754 = vsel %vm325, %v683, 0
      %v756 = vsel %vm325, %v685, 0
      %v758 = vsel %vm325, %v687, 0
      %v760 = vsel %vm325, %v689, 0
      %v762 = vsel %vm325, %v691, 0
      %v764 = vsel %vm325, %v693, 0
      %v766 = vsel %vm325, %v695, 0
      %v768 = vsel %vm325, %v697, 0
      %v770 = vsel %vm325, %v699, 0
      %v772 = vsel %vm325, %v701, 0
      %v774 = vsel %vm325, %v703, 0
      %v776 = vsel %vm325, %v705, 0
      %v778 = vsel %vm325, %v707, 0
      %v780 = vsel %vm325, %v709, 0
      %v782 = vsel %vm325, %v711, 0
      %v785 = vsel %vm434, %v636, 0
      %787 = vmatpush.msra.mxu0 0.0
      %788 = vmatpush.msra.mxu0 0.0
      %789 = vmatpush.msra.mxu0 0.0
      %790 = vmatpush.msra.mxu0 0.0
      %791 = vmatpush.msra.mxu0 0.0
      %792 = vmatpush.msra.mxu0 0.0
      %793 = vmatpush.msra.mxu0 0.0
      %794 = vmatpush.msra.mxu0 0.0
      %795 = vmatpush.msra.mxu0 0.0
      %796 = vmatpush.msra.mxu0 0.0
      %797 = vmatpush.msra.mxu0 0.0
      %798 = vmatpush.msra.mxu0 0.0
      %799 = vmatpush.msra.mxu0 0.0
      %800 = vmatpush.msra.mxu0 0.0
      %801 = vmatpush.msra.mxu0 0.0
      %802 = vmatpush.msra.mxu0 %v785
      %803 = vmatmul.f32.gmra.mxu0 %v712
      %v804 = vpop.f32.mrf.mxu0
      %v805 = vadd.f32 0.0, %v804
      %806 = vmatmul.f32.gmra.mxu0 %v714
      %v807 = vpop.f32.mrf.mxu0
      %v808 = vadd.f32 0.0, %v807
      %809 = vmatmul.f32.gmra.mxu0 %v716
      %v810 = vpop.f32.mrf.mxu0
      %v811 = vadd.f32 0.0, %v810
      %812 = vmatmul.f32.gmra.mxu0 %v718
      %v813 = vpop.f32.mrf.mxu0
      %v814 = vadd.f32 0.0, %v813
      %815 = vmatmul.f32.gmra.mxu0 %v720
      %v816 = vpop.f32.mrf.mxu0
      %v817 = vadd.f32 0.0, %v816
      %818 = vmatmul.f32.gmra.mxu0 %v722
      %v819 = vpop.f32.mrf.mxu0
      %v820 = vadd.f32 0.0, %v819
      %821 = vmatmul.f32.gmra.mxu0 %v724
      %v822 = vpop.f32.mrf.mxu0
      %v823 = vadd.f32 0.0, %v822
      %824 = vmatmul.f32.gmra.mxu0 %v726
      %v825 = vpop.f32.mrf.mxu0
      %v826 = vadd.f32 0.0, %v825
      %827 = vmatmul.f32.gmra.mxu0 %v728
      %v828 = vpop.f32.mrf.mxu0
      %v829 = vadd.f32 0.0, %v828
      %830 = vmatmul.f32.gmra.mxu0 %v730
      %v831 = vpop.f32.mrf.mxu0
      %v832 = vadd.f32 0.0, %v831
      %833 = vmatmul.f32.gmra.mxu0 %v732
      %v834 = vpop.f32.mrf.mxu0
      %v835 = vadd.f32 0.0, %v834
      %836 = vmatmul.f32.gmra.mxu0 %v734
      %v837 = vpop.f32.mrf.mxu0
      %v838 = vadd.f32 0.0, %v837
      %839 = vmatmul.f32.gmra.mxu0 %v736
      %v840 = vpop.f32.mrf.mxu0
      %v841 = vadd.f32 0.0, %v840
      %842 = vmatmul.f32.gmra.mxu0 %v738
      %v843 = vpop.f32.mrf.mxu0
      %v844 = vadd.f32 0.0, %v843
      %845 = vmatmul.f32.gmra.mxu0 %v740
      %v846 = vpop.f32.mrf.mxu0
      %v847 = vadd.f32 0.0, %v846
      %848 = vmatmul.f32.gmra.mxu0 %v742
      %v849 = vpop.f32.mrf.mxu0
      %v850 = vadd.f32 0.0, %v849
      %851 = vmatmul.f32.gmra.mxu0 %v744
      %v852 = vpop.f32.mrf.mxu0
      %v853 = vadd.f32 0.0, %v852
      %854 = vmatmul.f32.gmra.mxu0 %v746
      %v855 = vpop.f32.mrf.mxu0
      %v856 = vadd.f32 0.0, %v855
      %857 = vmatmul.f32.gmra.mxu0 %v748
      %v858 = vpop.f32.mrf.mxu0
      %v859 = vadd.f32 0.0, %v858
      %860 = vmatmul.f32.gmra.mxu0 %v750
      %v861 = vpop.f32.mrf.mxu0
      %v862 = vadd.f32 0.0, %v861
      %863 = vmatmul.f32.gmra.mxu0 %v752
      %v864 = vpop.f32.mrf.mxu0
      %v865 = vadd.f32 0.0, %v864
      %866 = vmatmul.f32.gmra.mxu0 %v754
      %v867 = vpop.f32.mrf.mxu0
      %v868 = vadd.f32 0.0, %v867
      %869 = vmatmul.f32.gmra.mxu0 %v756
      %v870 = vpop.f32.mrf.mxu0
      %v871 = vadd.f32 0.0, %v870
      %872 = vmatmul.f32.gmra.mxu0 %v758
      %v873 = vpop.f32.mrf.mxu0
      %v874 = vadd.f32 0.0, %v873
      %875 = vmatmul.f32.gmra.mxu0 %v760
      %v876 = vpop.f32.mrf.mxu0
      %v877 = vadd.f32 0.0, %v876
      %878 = vmatmul.f32.gmra.mxu0 %v762
      %v879 = vpop.f32.mrf.mxu0
      %v880 = vadd.f32 0.0, %v879
      %881 = vmatmul.f32.gmra.mxu0 %v764
      %v882 = vpop.f32.mrf.mxu0
      %v883 = vadd.f32 0.0, %v882
      %884 = vmatmul.f32.gmra.mxu0 %v766
      %v885 = vpop.f32.mrf.mxu0
      %v886 = vadd.f32 0.0, %v885
      %887 = vmatmul.f32.gmra.mxu0 %v768
      %v888 = vpop.f32.mrf.mxu0
      %v889 = vadd.f32 0.0, %v888
      %890 = vmatmul.f32.gmra.mxu0 %v770
      %v891 = vpop.f32.mrf.mxu0
      %v892 = vadd.f32 0.0, %v891
      %893 = vmatmul.f32.gmra.mxu0 %v772
      %v894 = vpop.f32.mrf.mxu0
      %v895 = vadd.f32 0.0, %v894
      %896 = vmatmul.f32.gmra.mxu0 %v774
      %v897 = vpop.f32.mrf.mxu0
      %v898 = vadd.f32 0.0, %v897
      %899 = vmatmul.f32.gmra.mxu0 %v776
      %v900 = vpop.f32.mrf.mxu0
      %v901 = vadd.f32 0.0, %v900
      %902 = vmatmul.f32.gmra.mxu0 %v778
      %v903 = vpop.f32.mrf.mxu0
      %v904 = vadd.f32 0.0, %v903
      %905 = vmatmul.f32.gmra.mxu0 %v780
      %v906 = vpop.f32.mrf.mxu0
      %v907 = vadd.f32 0.0, %v906
      %908 = vmatmul.f32.gmra.mxu0 %v782
      %v909 = vpop.f32.mrf.mxu0
      %v910 = vadd.f32 0.0, %v909
      %911 = vdwg.mxu0
      %v912 = vadd.f32 %v599, %v805
      %v913 = vadd.f32 %v600, %v808
      %v914 = vadd.f32 %v601, %v811
      %v915 = vadd.f32 %v602, %v814
      %v916 = vadd.f32 %v603, %v817
      %v917 = vadd.f32 %v604, %v820
      %v918 = vadd.f32 %v605, %v823
      %v919 = vadd.f32 %v606, %v826
      %v920 = vadd.f32 %v607, %v829
      %v921 = vadd.f32 %v608, %v832
      %v922 = vadd.f32 %v609, %v835
      %v923 = vadd.f32 %v610, %v838
      %v924 = vadd.f32 %v611, %v841
      %v925 = vadd.f32 %v612, %v844
      %v926 = vadd.f32 %v613, %v847
      %v927 = vadd.f32 %v614, %v850
      %v928 = vadd.f32 %v615, %v853
      %v929 = vadd.f32 %v616, %v856
      %v930 = vadd.f32 %v617, %v859
      %v931 = vadd.f32 %v618, %v862
      %v932 = vadd.f32 %v619, %v865
      %v933 = vadd.f32 %v620, %v868
      %v934 = vadd.f32 %v621, %v871
      %v935 = vadd.f32 %v622, %v874
      %v936 = vadd.f32 %v623, %v877
      %v937 = vadd.f32 %v624, %v880
      %v938 = vadd.f32 %v625, %v883
      %v939 = vadd.f32 %v626, %v886
      %v940 = vadd.f32 %v627, %v889
      %v941 = vadd.f32 %v628, %v892
      %v942 = vadd.f32 %v629, %v895
      %v943 = vadd.f32 %v630, %v898
      %v944 = vadd.f32 %v631, %v901
      %v945 = vadd.f32 %v632, %v904
      %v946 = vadd.f32 %v633, %v907
      %v947 = vadd.f32 %v634, %v910
      %948 = vst [vmem:[#allocation2] sm:$0xff] %v912
      %949 = vst [vmem:[#allocation2 + $0x8] sm:$0xff] %v913
      %950 = vst [vmem:[#allocation2 + $0x10] sm:$0xff] %v914
      %951 = vst [vmem:[#allocation2 + $0x18] sm:$0xff] %v915
      %952 = vst [vmem:[#allocation2 + $0x20] sm:$0xff] %v916
      %953 = vst [vmem:[#allocation2 + $0x28] sm:$0xff] %v917
      %954 = vst [vmem:[#allocation2 + $0x30] sm:$0xff] %v918
      %955 = vst [vmem:[#allocation2 + $0x38] sm:$0xff] %v919
      %956 = vst [vmem:[#allocation2 + $0x40] sm:$0xff] %v920
      %957 = vst [vmem:[#allocation2 + $0x48] sm:$0xff] %v921
      %958 = vst [vmem:[#allocation2 + $0x50] sm:$0xff] %v922
      %959 = vst [vmem:[#allocation2 + $0x58] sm:$0xff] %v923
      %960 = vst [vmem:[#allocation2 + $0x60] sm:$0xff] %v924
      %961 = vst [vmem:[#allocation2 + $0x68] sm:$0xff] %v925
      %962 = vst [vmem:[#allocation2 + $0x70] sm:$0xff] %v926
      %963 = vst [vmem:[#allocation2 + $0x78] sm:$0xff] %v927
      %964 = vst [vmem:[#allocation2 + $0x80] sm:$0xff] %v928
      %965 = vst [vmem:[#allocation2 + $0x88] sm:$0xff] %v929
      %966 = vst [vmem:[#allocation2 + $0x90] sm:$0xff] %v930
      %967 = vst [vmem:[#allocation2 + $0x98] sm:$0xff] %v931
      %968 = vst [vmem:[#allocation2 + $0xa0] sm:$0xff] %v932
      %969 = vst [vmem:[#allocation2 + $0xa8] sm:$0xff] %v933
      %970 = vst [vmem:[#allocation2 + $0xb0] sm:$0xff] %v934
      %971 = vst [vmem:[#allocation2 + $0xb8] sm:$0xff] %v935
      %972 = vst [vmem:[#allocation2 + $0xc0] sm:$0xff] %v936
      %973 = vst [vmem:[#allocation2 + $0xc8] sm:$0xff] %v937
      %974 = vst [vmem:[#allocation2 + $0xd0] sm:$0xff] %v938
      %975 = vst [vmem:[#allocation2 + $0xd8] sm:$0xff] %v939
      %976 = vst [vmem:[#allocation2 + $0xe0] sm:$0xff] %v940
      %977 = vst [vmem:[#allocation2 + $0xe8] sm:$0xff] %v941
      %978 = vst [vmem:[#allocation2 + $0xf0] sm:$0xff] %v942
      %979 = vst [vmem:[#allocation2 + $0xf8] sm:$0xff] %v943
      %980 = vst [vmem:[#allocation2 + $0x100] sm:$0xff] %v944
      %981 = vst [vmem:[#allocation2 + $0x108] sm:$0xff] %v945
      %982 = vst [vmem:[#allocation2 + $0x110] sm:$0xff] %v946
      %983 = vst [vmem:[#allocation2 + $0x118] sm:$0xff] %v947
      %v984 = vld [vmem:[#allocation2] sm:$0xff]
      %v985 = vld [vmem:[#allocation2 + $0x8] sm:$0xff]
      %v986 = vld [vmem:[#allocation2 + $0x10] sm:$0xff]
      %v987 = vld [vmem:[#allocation2 + $0x18] sm:$0xff]
      %v988 = vld [vmem:[#allocation2 + $0x20] sm:$0xff]
      %v989 = vld [vmem:[#allocation2 + $0x28] sm:$0xff]
      %v990 = vld [vmem:[#allocation2 + $0x30] sm:$0xff]
      %v991 = vld [vmem:[#allocation2 + $0x38] sm:$0xff]
      %v992 = vld [vmem:[#allocation2 + $0x40] sm:$0xff]
      %v993 = vld [vmem:[#allocation2 + $0x48] sm:$0xff]
      %v994 = vld [vmem:[#allocation2 + $0x50] sm:$0xff]
      %v995 = vld [vmem:[#allocation2 + $0x58] sm:$0xff]
      %v996 = vld [vmem:[#allocation2 + $0x60] sm:$0xff]
      %v997 = vld [vmem:[#allocation2 + $0x68] sm:$0xff]
      %v998 = vld [vmem:[#allocation2 + $0x70] sm:$0xff]
      %v999 = vld [vmem:[#allocation2 + $0x78] sm:$0xff]
      %v1000 = vld [vmem:[#allocation2 + $0x80] sm:$0xff]
      %v1001 = vld [vmem:[#allocation2 + $0x88] sm:$0xff]
      %v1002 = vld [vmem:[#allocation2 + $0x90] sm:$0xff]
      %v1003 = vld [vmem:[#allocation2 + $0x98] sm:$0xff]
      %v1004 = vld [vmem:[#allocation2 + $0xa0] sm:$0xff]
      %v1005 = vld [vmem:[#allocation2 + $0xa8] sm:$0xff]
      %v1006 = vld [vmem:[#allocation2 + $0xb0] sm:$0xff]
      %v1007 = vld [vmem:[#allocation2 + $0xb8] sm:$0xff]
      %v1008 = vld [vmem:[#allocation2 + $0xc0] sm:$0xff]
      %v1009 = vld [vmem:[#allocation2 + $0xc8] sm:$0xff]
      %v1010 = vld [vmem:[#allocation2 + $0xd0] sm:$0xff]
      %v1011 = vld [vmem:[#allocation2 + $0xd8] sm:$0xff]
      %v1012 = vld [vmem:[#allocation2 + $0xe0] sm:$0xff]
      %v1013 = vld [vmem:[#allocation2 + $0xe8] sm:$0xff]
      %v1014 = vld [vmem:[#allocation2 + $0xf0] sm:$0xff]
      %v1015 = vld [vmem:[#allocation2 + $0xf8] sm:$0xff]
      %v1016 = vld [vmem:[#allocation2 + $0x100] sm:$0xff]
      %v1017 = vld [vmem:[#allocation2 + $0x108] sm:$0xff]
      %v1018 = vld [vmem:[#allocation2 + $0x110] sm:$0xff]
      %v1019 = vld [vmem:[#allocation2 + $0x118] sm:$0xff]
      %s1020 = scalar_lea.vmem %s1, 8
      %v1021 = vld [vmem:[%s1020] sm:$0xf]
      %vm1022 = vcmask 1045504
      %v1023 = vrot.slane %v283, 2
      %v1024 = vrot.slane %v284, 2
      %v1025 = vsel %vm1022, %v1023, %v1024
      %v1026 = vrot.slane %v285, 2
      %v1027 = vsel %vm1022, %v1024, %v1026
      %v1028 = vrot.slane %v286, 2
      %v1029 = vsel %vm1022, %v1026, %v1028
      %v1030 = vrot.slane %v287, 2
      %v1031 = vsel %vm1022, %v1028, %v1030
      %v1032 = vrot.slane %v288, 2
      %v1033 = vsel %vm1022, %v1030, %v1032
      %v1034 = vrot.slane %v289, 2
      %v1035 = vsel %vm1022, %v1032, %v1034
      %v1036 = vrot.slane %v290, 2
      %v1037 = vsel %vm1022, %v1034, %v1036
      %v1038 = vrot.slane %v291, 2
      %v1039 = vsel %vm1022, %v1036, %v1038
      %v1040 = vrot.slane %v292, 2
      %v1041 = vsel %vm1022, %v1038, %v1040
      %v1042 = vrot.slane %v293, 2
      %v1043 = vsel %vm1022, %v1040, %v1042
      %v1044 = vrot.slane %v294, 2
      %v1045 = vsel %vm1022, %v1042, %v1044
      %v1046 = vrot.slane %v295, 2
      %v1047 = vsel %vm1022, %v1044, %v1046
      %v1048 = vrot.slane %v296, 2
      %v1049 = vsel %vm1022, %v1046, %v1048
      %v1050 = vrot.slane %v297, 2
      %v1051 = vsel %vm1022, %v1048, %v1050
      %v1052 = vrot.slane %v298, 2
      %v1053 = vsel %vm1022, %v1050, %v1052
      %v1054 = vrot.slane %v299, 2
      %v1055 = vsel %vm1022, %v1052, %v1054
      %v1056 = vrot.slane %v300, 2
      %v1057 = vsel %vm1022, %v1054, %v1056
      %v1058 = vrot.slane %v301, 2
      %v1059 = vsel %vm1022, %v1056, %v1058
      %v1060 = vrot.slane %v302, 2
      %v1061 = vsel %vm1022, %v1058, %v1060
      %v1062 = vrot.slane %v303, 2
      %v1063 = vsel %vm1022, %v1060, %v1062
      %v1064 = vrot.slane %v304, 2
      %v1065 = vsel %vm1022, %v1062, %v1064
      %v1066 = vrot.slane %v305, 2
      %v1067 = vsel %vm1022, %v1064, %v1066
      %v1068 = vrot.slane %v306, 2
      %v1069 = vsel %vm1022, %v1066, %v1068
      %v1070 = vrot.slane %v307, 2
      %v1071 = vsel %vm1022, %v1068, %v1070
      %v1072 = vrot.slane %v308, 2
      %v1073 = vsel %vm1022, %v1070, %v1072
      %v1074 = vrot.slane %v309, 2
      %v1075 = vsel %vm1022, %v1072, %v1074
      %v1076 = vrot.slane %v310, 2
      %v1077 = vsel %vm1022, %v1074, %v1076
      %v1078 = vrot.slane %v311, 2
      %v1079 = vsel %vm1022, %v1076, %v1078
      %v1080 = vrot.slane %v312, 2
      %v1081 = vsel %vm1022, %v1078, %v1080
      %v1082 = vrot.slane %v313, 2
      %v1083 = vsel %vm1022, %v1080, %v1082
      %v1084 = vrot.slane %v314, 2
      %v1085 = vsel %vm1022, %v1082, %v1084
      %v1086 = vrot.slane %v315, 2
      %v1087 = vsel %vm1022, %v1084, %v1086
      %v1088 = vrot.slane %v316, 2
      %v1089 = vsel %vm1022, %v1086, %v1088
      %v1090 = vrot.slane %v317, 2
      %v1091 = vsel %vm1022, %v1088, %v1090
      %v1092 = vrot.slane %v318, 2
      %v1093 = vsel %vm1022, %v1090, %v1092
      %v1094 = vrot.slane %v319, 2
      %v1095 = vsel %vm1022, %v1092, %v1094
      %v1096 = vsel %vm325, %v1025, 0
      %v1098 = vsel %vm325, %v1027, 0
      %v1100 = vsel %vm325, %v1029, 0
      %v1102 = vsel %vm325, %v1031, 0
      %v1104 = vsel %vm325, %v1033, 0
      %v1106 = vsel %vm325, %v1035, 0
      %v1108 = vsel %vm325, %v1037, 0
      %v1110 = vsel %vm325, %v1039, 0
      %v1112 = vsel %vm325, %v1041, 0
      %v1114 = vsel %vm325, %v1043, 0
      %v1116 = vsel %vm325, %v1045, 0
      %v1118 = vsel %vm325, %v1047, 0
      %v1120 = vsel %vm325, %v1049, 0
      %v1122 = vsel %vm325, %v1051, 0
      %v1124 = vsel %vm325, %v1053, 0
      %v1126 = vsel %vm325, %v1055, 0
      %v1128 = vsel %vm325, %v1057, 0
      %v1130 = vsel %vm325, %v1059, 0
      %v1132 = vsel %vm325, %v1061, 0
      %v1134 = vsel %vm325, %v1063, 0
      %v1136 = vsel %vm325, %v1065, 0
      %v1138 = vsel %vm325, %v1067, 0
      %v1140 = vsel %vm325, %v1069, 0
      %v1142 = vsel %vm325, %v1071, 0
      %v1144 = vsel %vm325, %v1073, 0
      %v1146 = vsel %vm325, %v1075, 0
      %v1148 = vsel %vm325, %v1077, 0
      %v1150 = vsel %vm325, %v1079, 0
      %v1152 = vsel %vm325, %v1081, 0
      %v1154 = vsel %vm325, %v1083, 0
      %v1156 = vsel %vm325, %v1085, 0
      %v1158 = vsel %vm325, %v1087, 0
      %v1160 = vsel %vm325, %v1089, 0
      %v1162 = vsel %vm325, %v1091, 0
      %v1164 = vsel %vm325, %v1093, 0
      %v1166 = vsel %vm325, %v1095, 0
      %v1169 = vsel %vm434, %v1021, 0
      %1171 = vmatpush.msra.mxu0 0.0
      %1172 = vmatpush.msra.mxu0 0.0
      %1173 = vmatpush.msra.mxu0 0.0
      %1174 = vmatpush.msra.mxu0 0.0
      %1175 = vmatpush.msra.mxu0 0.0
      %1176 = vmatpush.msra.mxu0 0.0
      %1177 = vmatpush.msra.mxu0 0.0
      %1178 = vmatpush.msra.mxu0 0.0
      %1179 = vmatpush.msra.mxu0 0.0
      %1180 = vmatpush.msra.mxu0 0.0
      %1181 = vmatpush.msra.mxu0 0.0
      %1182 = vmatpush.msra.mxu0 0.0
      %1183 = vmatpush.msra.mxu0 0.0
      %1184 = vmatpush.msra.mxu0 0.0
      %1185 = vmatpush.msra.mxu0 0.0
      %1186 = vmatpush.msra.mxu0 %v1169
      %1187 = vmatmul.f32.gmra.mxu0 %v1096
      %v1188 = vpop.f32.mrf.mxu0
      %v1189 = vadd.f32 0.0, %v1188
      %1190 = vmatmul.f32.gmra.mxu0 %v1098
      %v1191 = vpop.f32.mrf.mxu0
      %v1192 = vadd.f32 0.0, %v1191
      %1193 = vmatmul.f32.gmra.mxu0 %v1100
      %v1194 = vpop.f32.mrf.mxu0
      %v1195 = vadd.f32 0.0, %v1194
      %1196 = vmatmul.f32.gmra.mxu0 %v1102
      %v1197 = vpop.f32.mrf.mxu0
      %v1198 = vadd.f32 0.0, %v1197
      %1199 = vmatmul.f32.gmra.mxu0 %v1104
      %v1200 = vpop.f32.mrf.mxu0
      %v1201 = vadd.f32 0.0, %v1200
      %1202 = vmatmul.f32.gmra.mxu0 %v1106
      %v1203 = vpop.f32.mrf.mxu0
      %v1204 = vadd.f32 0.0, %v1203
      %1205 = vmatmul.f32.gmra.mxu0 %v1108
      %v1206 = vpop.f32.mrf.mxu0
      %v1207 = vadd.f32 0.0, %v1206
      %1208 = vmatmul.f32.gmra.mxu0 %v1110
      %v1209 = vpop.f32.mrf.mxu0
      %v1210 = vadd.f32 0.0, %v1209
      %1211 = vmatmul.f32.gmra.mxu0 %v1112
      %v1212 = vpop.f32.mrf.mxu0
      %v1213 = vadd.f32 0.0, %v1212
      %1214 = vmatmul.f32.gmra.mxu0 %v1114
      %v1215 = vpop.f32.mrf.mxu0
      %v1216 = vadd.f32 0.0, %v1215
      %1217 = vmatmul.f32.gmra.mxu0 %v1116
      %v1218 = vpop.f32.mrf.mxu0
      %v1219 = vadd.f32 0.0, %v1218
      %1220 = vmatmul.f32.gmra.mxu0 %v1118
      %v1221 = vpop.f32.mrf.mxu0
      %v1222 = vadd.f32 0.0, %v1221
      %1223 = vmatmul.f32.gmra.mxu0 %v1120
      %v1224 = vpop.f32.mrf.mxu0
      %v1225 = vadd.f32 0.0, %v1224
      %1226 = vmatmul.f32.gmra.mxu0 %v1122
      %v1227 = vpop.f32.mrf.mxu0
      %v1228 = vadd.f32 0.0, %v1227
      %1229 = vmatmul.f32.gmra.mxu0 %v1124
      %v1230 = vpop.f32.mrf.mxu0
      %v1231 = vadd.f32 0.0, %v1230
      %1232 = vmatmul.f32.gmra.mxu0 %v1126
      %v1233 = vpop.f32.mrf.mxu0
      %v1234 = vadd.f32 0.0, %v1233
      %1235 = vmatmul.f32.gmra.mxu0 %v1128
      %v1236 = vpop.f32.mrf.mxu0
      %v1237 = vadd.f32 0.0, %v1236
      %1238 = vmatmul.f32.gmra.mxu0 %v1130
      %v1239 = vpop.f32.mrf.mxu0
      %v1240 = vadd.f32 0.0, %v1239
      %1241 = vmatmul.f32.gmra.mxu0 %v1132
      %v1242 = vpop.f32.mrf.mxu0
      %v1243 = vadd.f32 0.0, %v1242
      %1244 = vmatmul.f32.gmra.mxu0 %v1134
      %v1245 = vpop.f32.mrf.mxu0
      %v1246 = vadd.f32 0.0, %v1245
      %1247 = vmatmul.f32.gmra.mxu0 %v1136
      %v1248 = vpop.f32.mrf.mxu0
      %v1249 = vadd.f32 0.0, %v1248
      %1250 = vmatmul.f32.gmra.mxu0 %v1138
      %v1251 = vpop.f32.mrf.mxu0
      %v1252 = vadd.f32 0.0, %v1251
      %1253 = vmatmul.f32.gmra.mxu0 %v1140
      %v1254 = vpop.f32.mrf.mxu0
      %v1255 = vadd.f32 0.0, %v1254
      %1256 = vmatmul.f32.gmra.mxu0 %v1142
      %v1257 = vpop.f32.mrf.mxu0
      %v1258 = vadd.f32 0.0, %v1257
      %1259 = vmatmul.f32.gmra.mxu0 %v1144
      %v1260 = vpop.f32.mrf.mxu0
      %v1261 = vadd.f32 0.0, %v1260
      %1262 = vmatmul.f32.gmra.mxu0 %v1146
      %v1263 = vpop.f32.mrf.mxu0
      %v1264 = vadd.f32 0.0, %v1263
      %1265 = vmatmul.f32.gmra.mxu0 %v1148
      %v1266 = vpop.f32.mrf.mxu0
      %v1267 = vadd.f32 0.0, %v1266
      %1268 = vmatmul.f32.gmra.mxu0 %v1150
      %v1269 = vpop.f32.mrf.mxu0
      %v1270 = vadd.f32 0.0, %v1269
      %1271 = vmatmul.f32.gmra.mxu0 %v1152
      %v1272 = vpop.f32.mrf.mxu0
      %v1273 = vadd.f32 0.0, %v1272
      %1274 = vmatmul.f32.gmra.mxu0 %v1154
      %v1275 = vpop.f32.mrf.mxu0
      %v1276 = vadd.f32 0.0, %v1275
      %1277 = vmatmul.f32.gmra.mxu0 %v1156
      %v1278 = vpop.f32.mrf.mxu0
      %v1279 = vadd.f32 0.0, %v1278
      %1280 = vmatmul.f32.gmra.mxu0 %v1158
      %v1281 = vpop.f32.mrf.mxu0
      %v1282 = vadd.f32 0.0, %v1281
      %1283 = vmatmul.f32.gmra.mxu0 %v1160
      %v1284 = vpop.f32.mrf.mxu0
      %v1285 = vadd.f32 0.0, %v1284
      %1286 = vmatmul.f32.gmra.mxu0 %v1162
      %v1287 = vpop.f32.mrf.mxu0
      %v1288 = vadd.f32 0.0, %v1287
      %1289 = vmatmul.f32.gmra.mxu0 %v1164
      %v1290 = vpop.f32.mrf.mxu0
      %v1291 = vadd.f32 0.0, %v1290
      %1292 = vmatmul.f32.gmra.mxu0 %v1166
      %v1293 = vpop.f32.mrf.mxu0
      %v1294 = vadd.f32 0.0, %v1293
      %1295 = vdwg.mxu0
      %v1296 = vadd.f32 %v984, %v1189
      %v1297 = vadd.f32 %v985, %v1192
      %v1298 = vadd.f32 %v986, %v1195
      %v1299 = vadd.f32 %v987, %v1198
      %v1300 = vadd.f32 %v988, %v1201
      %v1301 = vadd.f32 %v989, %v1204
      %v1302 = vadd.f32 %v990, %v1207
      %v1303 = vadd.f32 %v991, %v1210
      %v1304 = vadd.f32 %v992, %v1213
      %v1305 = vadd.f32 %v993, %v1216
      %v1306 = vadd.f32 %v994, %v1219
      %v1307 = vadd.f32 %v995, %v1222
      %v1308 = vadd.f32 %v996, %v1225
      %v1309 = vadd.f32 %v997, %v1228
      %v1310 = vadd.f32 %v998, %v1231
      %v1311 = vadd.f32 %v999, %v1234
      %v1312 = vadd.f32 %v1000, %v1237
      %v1313 = vadd.f32 %v1001, %v1240
      %v1314 = vadd.f32 %v1002, %v1243
      %v1315 = vadd.f32 %v1003, %v1246
      %v1316 = vadd.f32 %v1004, %v1249
      %v1317 = vadd.f32 %v1005, %v1252
      %v1318 = vadd.f32 %v1006, %v1255
      %v1319 = vadd.f32 %v1007, %v1258
      %v1320 = vadd.f32 %v1008, %v1261
      %v1321 = vadd.f32 %v1009, %v1264
      %v1322 = vadd.f32 %v1010, %v1267
      %v1323 = vadd.f32 %v1011, %v1270
      %v1324 = vadd.f32 %v1012, %v1273
      %v1325 = vadd.f32 %v1013, %v1276
      %v1326 = vadd.f32 %v1014, %v1279
      %v1327 = vadd.f32 %v1015, %v1282
      %v1328 = vadd.f32 %v1016, %v1285
      %v1329 = vadd.f32 %v1017, %v1288
      %v1330 = vadd.f32 %v1018, %v1291
      %v1331 = vadd.f32 %v1019, %v1294
      %1332 = vst [vmem:[#allocation2] sm:$0xff] %v1296
      %1333 = vst [vmem:[#allocation2 + $0x8] sm:$0xff] %v1297
      %1334 = vst [vmem:[#allocation2 + $0x10] sm:$0xff] %v1298
      %1335 = vst [vmem:[#allocation2 + $0x18] sm:$0xff] %v1299
      %1336 = vst [vmem:[#allocation2 + $0x20] sm:$0xff] %v1300
      %1337 = vst [vmem:[#allocation2 + $0x28] sm:$0xff] %v1301
      %1338 = vst [vmem:[#allocation2 + $0x30] sm:$0xff] %v1302
      %1339 = vst [vmem:[#allocation2 + $0x38] sm:$0xff] %v1303
      %1340 = vst [vmem:[#allocation2 + $0x40] sm:$0xff] %v1304
      %1341 = vst [vmem:[#allocation2 + $0x48] sm:$0xff] %v1305
      %1342 = vst [vmem:[#allocation2 + $0x50] sm:$0xff] %v1306
      %1343 = vst [vmem:[#allocation2 + $0x58] sm:$0xff] %v1307
      %1344 = vst [vmem:[#allocation2 + $0x60] sm:$0xff] %v1308
      %1345 = vst [vmem:[#allocation2 + $0x68] sm:$0xff] %v1309
      %1346 = vst [vmem:[#allocation2 + $0x70] sm:$0xff] %v1310
      %1347 = vst [vmem:[#allocation2 + $0x78] sm:$0xff] %v1311
      %1348 = vst [vmem:[#allocation2 + $0x80] sm:$0xff] %v1312
      %1349 = vst [vmem:[#allocation2 + $0x88] sm:$0xff] %v1313
      %1350 = vst [vmem:[#allocation2 + $0x90] sm:$0xff] %v1314
      %1351 = vst [vmem:[#allocation2 + $0x98] sm:$0xff] %v1315
      %1352 = vst [vmem:[#allocation2 + $0xa0] sm:$0xff] %v1316
      %1353 = vst [vmem:[#allocation2 + $0xa8] sm:$0xff] %v1317
      %1354 = vst [vmem:[#allocation2 + $0xb0] sm:$0xff] %v1318
      %1355 = vst [vmem:[#allocation2 + $0xb8] sm:$0xff] %v1319
      %1356 = vst [vmem:[#allocation2 + $0xc0] sm:$0xff] %v1320
      %1357 = vst [vmem:[#allocation2 + $0xc8] sm:$0xff] %v1321
      %1358 = vst [vmem:[#allocation2 + $0xd0] sm:$0xff] %v1322
      %1359 = vst [vmem:[#allocation2 + $0xd8] sm:$0xff] %v1323
      %1360 = vst [vmem:[#allocation2 + $0xe0] sm:$0xff] %v1324
      %1361 = vst [vmem:[#allocation2 + $0xe8] sm:$0xff] %v1325
      %1362 = vst [vmem:[#allocation2 + $0xf0] sm:$0xff] %v1326
      %1363 = vst [vmem:[#allocation2 + $0xf8] sm:$0xff] %v1327
      %1364 = vst [vmem:[#allocation2 + $0x100] sm:$0xff] %v1328
      %1365 = vst [vmem:[#allocation2 + $0x108] sm:$0xff] %v1329
      %1366 = vst [vmem:[#allocation2 + $0x110] sm:$0xff] %v1330
      %1367 = vst [vmem:[#allocation2 + $0x118] sm:$0xff] %v1331
      %v1368 = vld [vmem:[#allocation2] sm:$0xff]
      %v1369 = vld [vmem:[#allocation2 + $0x8] sm:$0xff]
      %v1370 = vld [vmem:[#allocation2 + $0x10] sm:$0xff]
      %v1371 = vld [vmem:[#allocation2 + $0x18] sm:$0xff]
      %v1372 = vld [vmem:[#allocation2 + $0x20] sm:$0xff]
      %v1373 = vld [vmem:[#allocation2 + $0x28] sm:$0xff]
      %v1374 = vld [vmem:[#allocation2 + $0x30] sm:$0xff]
      %v1375 = vld [vmem:[#allocation2 + $0x38] sm:$0xff]
      %v1376 = vld [vmem:[#allocation2 + $0x40] sm:$0xff]
      %v1377 = vld [vmem:[#allocation2 + $0x48] sm:$0xff]
      %v1378 = vld [vmem:[#allocation2 + $0x50] sm:$0xff]
      %v1379 = vld [vmem:[#allocation2 + $0x58] sm:$0xff]
      %v1380 = vld [vmem:[#allocation2 + $0x60] sm:$0xff]
      %v1381 = vld [vmem:[#allocation2 + $0x68] sm:$0xff]
      %v1382 = vld [vmem:[#allocation2 + $0x70] sm:$0xff]
      %v1383 = vld [vmem:[#allocation2 + $0x78] sm:$0xff]
      %v1384 = vld [vmem:[#allocation2 + $0x80] sm:$0xff]
      %v1385 = vld [vmem:[#allocation2 + $0x88] sm:$0xff]
      %v1386 = vld [vmem:[#allocation2 + $0x90] sm:$0xff]
      %v1387 = vld [vmem:[#allocation2 + $0x98] sm:$0xff]
      %v1388 = vld [vmem:[#allocation2 + $0xa0] sm:$0xff]
      %v1389 = vld [vmem:[#allocation2 + $0xa8] sm:$0xff]
      %v1390 = vld [vmem:[#allocation2 + $0xb0] sm:$0xff]
      %v1391 = vld [vmem:[#allocation2 + $0xb8] sm:$0xff]
      %v1392 = vld [vmem:[#allocation2 + $0xc0] sm:$0xff]
      %v1393 = vld [vmem:[#allocation2 + $0xc8] sm:$0xff]
      %v1394 = vld [vmem:[#allocation2 + $0xd0] sm:$0xff]
      %v1395 = vld [vmem:[#allocation2 + $0xd8] sm:$0xff]
      %v1396 = vld [vmem:[#allocation2 + $0xe0] sm:$0xff]
      %v1397 = vld [vmem:[#allocation2 + $0xe8] sm:$0xff]
      %v1398 = vld [vmem:[#allocation2 + $0xf0] sm:$0xff]
      %v1399 = vld [vmem:[#allocation2 + $0xf8] sm:$0xff]
      %v1400 = vld [vmem:[#allocation2 + $0x100] sm:$0xff]
      %v1401 = vld [vmem:[#allocation2 + $0x108] sm:$0xff]
      %v1402 = vld [vmem:[#allocation2 + $0x110] sm:$0xff]
      %v1403 = vld [vmem:[#allocation2 + $0x118] sm:$0xff]
      %s1404 = scalar_lea.vmem %s1, 12
      %v1405 = vld [vmem:[%s1404] sm:$0xf]
      %v1408 = vrot.slane %v320, 2
      %v1409 = vsel %vm1022, %v1094, %v1408
      %v1410 = vrot.slane %v321, 2
      %v1411 = vsel %vm1022, %v1408, %v1410
      %v1412 = vsel %vm325, %v1409, 0
      %v1414 = vsel %vm325, %v1411, 0
      %v1417 = vsel %vm434, %v1405, 0
      %1419 = vmatpush.msra.mxu0 0.0
      %1420 = vmatpush.msra.mxu0 0.0
      %1421 = vmatpush.msra.mxu0 0.0
      %1422 = vmatpush.msra.mxu0 0.0
      %1423 = vmatpush.msra.mxu0 0.0
      %1424 = vmatpush.msra.mxu0 0.0
      %1425 = vmatpush.msra.mxu0 0.0
      %1426 = vmatpush.msra.mxu0 0.0
      %1427 = vmatpush.msra.mxu0 0.0
      %1428 = vmatpush.msra.mxu0 0.0
      %1429 = vmatpush.msra.mxu0 0.0
      %1430 = vmatpush.msra.mxu0 0.0
      %1431 = vmatpush.msra.mxu0 0.0
      %1432 = vmatpush.msra.mxu0 0.0
      %1433 = vmatpush.msra.mxu0 0.0
      %1434 = vmatpush.msra.mxu0 %v1417
      %1435 = vmatmul.f32.gmra.mxu0 %v1100
      %v1436 = vpop.f32.mrf.mxu0
      %v1437 = vadd.f32 0.0, %v1436
      %1438 = vmatmul.f32.gmra.mxu0 %v1102
      %v1439 = vpop.f32.mrf.mxu0
      %v1440 = vadd.f32 0.0, %v1439
      %1441 = vmatmul.f32.gmra.mxu0 %v1104
      %v1442 = vpop.f32.mrf.mxu0
      %v1443 = vadd.f32 0.0, %v1442
      %1444 = vmatmul.f32.gmra.mxu0 %v1106
      %v1445 = vpop.f32.mrf.mxu0
      %v1446 = vadd.f32 0.0, %v1445
      %1447 = vmatmul.f32.gmra.mxu0 %v1108
      %v1448 = vpop.f32.mrf.mxu0
      %v1449 = vadd.f32 0.0, %v1448
      %1450 = vmatmul.f32.gmra.mxu0 %v1110
      %v1451 = vpop.f32.mrf.mxu0
      %v1452 = vadd.f32 0.0, %v1451
      %1453 = vmatmul.f32.gmra.mxu0 %v1112
      %v1454 = vpop.f32.mrf.mxu0
      %v1455 = vadd.f32 0.0, %v1454
      %1456 = vmatmul.f32.gmra.mxu0 %v1114
      %v1457 = vpop.f32.mrf.mxu0
      %v1458 = vadd.f32 0.0, %v1457
      %1459 = vmatmul.f32.gmra.mxu0 %v1116
      %v1460 = vpop.f32.mrf.mxu0
      %v1461 = vadd.f32 0.0, %v1460
      %1462 = vmatmul.f32.gmra.mxu0 %v1118
      %v1463 = vpop.f32.mrf.mxu0
      %v1464 = vadd.f32 0.0, %v1463
      %1465 = vmatmul.f32.gmra.mxu0 %v1120
      %v1466 = vpop.f32.mrf.mxu0
      %v1467 = vadd.f32 0.0, %v1466
      %1468 = vmatmul.f32.gmra.mxu0 %v1122
      %v1469 = vpop.f32.mrf.mxu0
      %v1470 = vadd.f32 0.0, %v1469
      %1471 = vmatmul.f32.gmra.mxu0 %v1124
      %v1472 = vpop.f32.mrf.mxu0
      %v1473 = vadd.f32 0.0, %v1472
      %1474 = vmatmul.f32.gmra.mxu0 %v1126
      %v1475 = vpop.f32.mrf.mxu0
      %v1476 = vadd.f32 0.0, %v1475
      %1477 = vmatmul.f32.gmra.mxu0 %v1128
      %v1478 = vpop.f32.mrf.mxu0
      %v1479 = vadd.f32 0.0, %v1478
      %1480 = vmatmul.f32.gmra.mxu0 %v1130
      %v1481 = vpop.f32.mrf.mxu0
      %v1482 = vadd.f32 0.0, %v1481
      %1483 = vmatmul.f32.gmra.mxu0 %v1132
      %v1484 = vpop.f32.mrf.mxu0
      %v1485 = vadd.f32 0.0, %v1484
      %1486 = vmatmul.f32.gmra.mxu0 %v1134
      %v1487 = vpop.f32.mrf.mxu0
      %v1488 = vadd.f32 0.0, %v1487
      %1489 = vmatmul.f32.gmra.mxu0 %v1136
      %v1490 = vpop.f32.mrf.mxu0
      %v1491 = vadd.f32 0.0, %v1490
      %1492 = vmatmul.f32.gmra.mxu0 %v1138
      %v1493 = vpop.f32.mrf.mxu0
      %v1494 = vadd.f32 0.0, %v1493
      %1495 = vmatmul.f32.gmra.mxu0 %v1140
      %v1496 = vpop.f32.mrf.mxu0
      %v1497 = vadd.f32 0.0, %v1496
      %1498 = vmatmul.f32.gmra.mxu0 %v1142
      %v1499 = vpop.f32.mrf.mxu0
      %v1500 = vadd.f32 0.0, %v1499
      %1501 = vmatmul.f32.gmra.mxu0 %v1144
      %v1502 = vpop.f32.mrf.mxu0
      %v1503 = vadd.f32 0.0, %v1502
      %1504 = vmatmul.f32.gmra.mxu0 %v1146
      %v1505 = vpop.f32.mrf.mxu0
      %v1506 = vadd.f32 0.0, %v1505
      %1507 = vmatmul.f32.gmra.mxu0 %v1148
      %v1508 = vpop.f32.mrf.mxu0
      %v1509 = vadd.f32 0.0, %v1508
      %1510 = vmatmul.f32.gmra.mxu0 %v1150
      %v1511 = vpop.f32.mrf.mxu0
      %v1512 = vadd.f32 0.0, %v1511
      %1513 = vmatmul.f32.gmra.mxu0 %v1152
      %v1514 = vpop.f32.mrf.mxu0
      %v1515 = vadd.f32 0.0, %v1514
      %1516 = vmatmul.f32.gmra.mxu0 %v1154
      %v1517 = vpop.f32.mrf.mxu0
      %v1518 = vadd.f32 0.0, %v1517
      %1519 = vmatmul.f32.gmra.mxu0 %v1156
      %v1520 = vpop.f32.mrf.mxu0
      %v1521 = vadd.f32 0.0, %v1520
      %1522 = vmatmul.f32.gmra.mxu0 %v1158
      %v1523 = vpop.f32.mrf.mxu0
      %v1524 = vadd.f32 0.0, %v1523
      %1525 = vmatmul.f32.gmra.mxu0 %v1160
      %v1526 = vpop.f32.mrf.mxu0
      %v1527 = vadd.f32 0.0, %v1526
      %1528 = vmatmul.f32.gmra.mxu0 %v1162
      %v1529 = vpop.f32.mrf.mxu0
      %v1530 = vadd.f32 0.0, %v1529
      %1531 = vmatmul.f32.gmra.mxu0 %v1164
      %v1532 = vpop.f32.mrf.mxu0
      %v1533 = vadd.f32 0.0, %v1532
      %1534 = vmatmul.f32.gmra.mxu0 %v1166
      %v1535 = vpop.f32.mrf.mxu0
      %v1536 = vadd.f32 0.0, %v1535
      %1537 = vmatmul.f32.gmra.mxu0 %v1412
      %v1538 = vpop.f32.mrf.mxu0
      %v1539 = vadd.f32 0.0, %v1538
      %1540 = vmatmul.f32.gmra.mxu0 %v1414
      %v1541 = vpop.f32.mrf.mxu0
      %v1542 = vadd.f32 0.0, %v1541
      %1543 = vdwg.mxu0
      %v1544 = vadd.f32 %v1368, %v1437
      %v1545 = vadd.f32 %v1369, %v1440
      %v1546 = vadd.f32 %v1370, %v1443
      %v1547 = vadd.f32 %v1371, %v1446
      %v1548 = vadd.f32 %v1372, %v1449
      %v1549 = vadd.f32 %v1373, %v1452
      %v1550 = vadd.f32 %v1374, %v1455
      %v1551 = vadd.f32 %v1375, %v1458
      %v1552 = vadd.f32 %v1376, %v1461
      %v1553 = vadd.f32 %v1377, %v1464
      %v1554 = vadd.f32 %v1378, %v1467
      %v1555 = vadd.f32 %v1379, %v1470
      %v1556 = vadd.f32 %v1380, %v1473
      %v1557 = vadd.f32 %v1381, %v1476
      %v1558 = vadd.f32 %v1382, %v1479
      %v1559 = vadd.f32 %v1383, %v1482
      %v1560 = vadd.f32 %v1384, %v1485
      %v1561 = vadd.f32 %v1385, %v1488
      %v1562 = vadd.f32 %v1386, %v1491
      %v1563 = vadd.f32 %v1387, %v1494
      %v1564 = vadd.f32 %v1388, %v1497
      %v1565 = vadd.f32 %v1389, %v1500
      %v1566 = vadd.f32 %v1390, %v1503
      %v1567 = vadd.f32 %v1391, %v1506
      %v1568 = vadd.f32 %v1392, %v1509
      %v1569 = vadd.f32 %v1393, %v1512
      %v1570 = vadd.f32 %v1394, %v1515
      %v1571 = vadd.f32 %v1395, %v1518
      %v1572 = vadd.f32 %v1396, %v1521
      %v1573 = vadd.f32 %v1397, %v1524
      %v1574 = vadd.f32 %v1398, %v1527
      %v1575 = vadd.f32 %v1399, %v1530
      %v1576 = vadd.f32 %v1400, %v1533
      %v1577 = vadd.f32 %v1401, %v1536
      %v1578 = vadd.f32 %v1402, %v1539
      %v1579 = vadd.f32 %v1403, %v1542
      %1580 = vst [vmem:[#allocation2] sm:$0xff] %v1544
      %1581 = vst [vmem:[#allocation2 + $0x8] sm:$0xff] %v1545
      %1582 = vst [vmem:[#allocation2 + $0x10] sm:$0xff] %v1546
      %1583 = vst [vmem:[#allocation2 + $0x18] sm:$0xff] %v1547
      %1584 = vst [vmem:[#allocation2 + $0x20] sm:$0xff] %v1548
      %1585 = vst [vmem:[#allocation2 + $0x28] sm:$0xff] %v1549
      %1586 = vst [vmem:[#allocation2 + $0x30] sm:$0xff] %v1550
      %1587 = vst [vmem:[#allocation2 + $0x38] sm:$0xff] %v1551
      %1588 = vst [vmem:[#allocation2 + $0x40] sm:$0xff] %v1552
      %1589 = vst [vmem:[#allocation2 + $0x48] sm:$0xff] %v1553
      %1590 = vst [vmem:[#allocation2 + $0x50] sm:$0xff] %v1554
      %1591 = vst [vmem:[#allocation2 + $0x58] sm:$0xff] %v1555
      %1592 = vst [vmem:[#allocation2 + $0x60] sm:$0xff] %v1556
      %1593 = vst [vmem:[#allocation2 + $0x68] sm:$0xff] %v1557
      %1594 = vst [vmem:[#allocation2 + $0x70] sm:$0xff] %v1558
      %1595 = vst [vmem:[#allocation2 + $0x78] sm:$0xff] %v1559
      %1596 = vst [vmem:[#allocation2 + $0x80] sm:$0xff] %v1560
      %1597 = vst [vmem:[#allocation2 + $0x88] sm:$0xff] %v1561
      %1598 = vst [vmem:[#allocation2 + $0x90] sm:$0xff] %v1562
      %1599 = vst [vmem:[#allocation2 + $0x98] sm:$0xff] %v1563
      %1600 = vst [vmem:[#allocation2 + $0xa0] sm:$0xff] %v1564
      %1601 = vst [vmem:[#allocation2 + $0xa8] sm:$0xff] %v1565
      %1602 = vst [vmem:[#allocation2 + $0xb0] sm:$0xff] %v1566
      %1603 = vst [vmem:[#allocation2 + $0xb8] sm:$0xff] %v1567
      %1604 = vst [vmem:[#allocation2 + $0xc0] sm:$0xff] %v1568
      %1605 = vst [vmem:[#allocation2 + $0xc8] sm:$0xff] %v1569
      %1606 = vst [vmem:[#allocation2 + $0xd0] sm:$0xff] %v1570
      %1607 = vst [vmem:[#allocation2 + $0xd8] sm:$0xff] %v1571
      %1608 = vst [vmem:[#allocation2 + $0xe0] sm:$0xff] %v1572
      %1609 = vst [vmem:[#allocation2 + $0xe8] sm:$0xff] %v1573
      %1610 = vst [vmem:[#allocation2 + $0xf0] sm:$0xff] %v1574
      %1611 = vst [vmem:[#allocation2 + $0xf8] sm:$0xff] %v1575
      %1612 = vst [vmem:[#allocation2 + $0x100] sm:$0xff] %v1576
      %1613 = vst [vmem:[#allocation2 + $0x108] sm:$0xff] %v1577
      %1614 = vst [vmem:[#allocation2 + $0x110] sm:$0xff] %v1578
      %1615 = vst [vmem:[#allocation2 + $0x118] sm:$0xff] %v1579
      %v1616 = vld [vmem:[#allocation2] sm:$0xff]
      %v1617 = vld [vmem:[#allocation2 + $0x8] sm:$0xff]
      %v1618 = vld [vmem:[#allocation2 + $0x10] sm:$0xff]
      %v1619 = vld [vmem:[#allocation2 + $0x18] sm:$0xff]
      %v1620 = vld [vmem:[#allocation2 + $0x20] sm:$0xff]
      %v1621 = vld [vmem:[#allocation2 + $0x28] sm:$0xff]
      %v1622 = vld [vmem:[#allocation2 + $0x30] sm:$0xff]
      %v1623 = vld [vmem:[#allocation2 + $0x38] sm:$0xff]
      %v1624 = vld [vmem:[#allocation2 + $0x40] sm:$0xff]
      %v1625 = vld [vmem:[#allocation2 + $0x48] sm:$0xff]
      %v1626 = vld [vmem:[#allocation2 + $0x50] sm:$0xff]
      %v1627 = vld [vmem:[#allocation2 + $0x58] sm:$0xff]
      %v1628 = vld [vmem:[#allocation2 + $0x60] sm:$0xff]
      %v1629 = vld [vmem:[#allocation2 + $0x68] sm:$0xff]
      %v1630 = vld [vmem:[#allocation2 + $0x70] sm:$0xff]
      %v1631 = vld [vmem:[#allocation2 + $0x78] sm:$0xff]
      %v1632 = vld [vmem:[#allocation2 + $0x80] sm:$0xff]
      %v1633 = vld [vmem:[#allocation2 + $0x88] sm:$0xff]
      %v1634 = vld [vmem:[#allocation2 + $0x90] sm:$0xff]
      %v1635 = vld [vmem:[#allocation2 + $0x98] sm:$0xff]
      %v1636 = vld [vmem:[#allocation2 + $0xa0] sm:$0xff]
      %v1637 = vld [vmem:[#allocation2 + $0xa8] sm:$0xff]
      %v1638 = vld [vmem:[#allocation2 + $0xb0] sm:$0xff]
      %v1639 = vld [vmem:[#allocation2 + $0xb8] sm:$0xff]
      %v1640 = vld [vmem:[#allocation2 + $0xc0] sm:$0xff]
      %v1641 = vld [vmem:[#allocation2 + $0xc8] sm:$0xff]
      %v1642 = vld [vmem:[#allocation2 + $0xd0] sm:$0xff]
      %v1643 = vld [vmem:[#allocation2 + $0xd8] sm:$0xff]
      %v1644 = vld [vmem:[#allocation2 + $0xe0] sm:$0xff]
      %v1645 = vld [vmem:[#allocation2 + $0xe8] sm:$0xff]
      %v1646 = vld [vmem:[#allocation2 + $0xf0] sm:$0xff]
      %v1647 = vld [vmem:[#allocation2 + $0xf8] sm:$0xff]
      %v1648 = vld [vmem:[#allocation2 + $0x100] sm:$0xff]
      %v1649 = vld [vmem:[#allocation2 + $0x108] sm:$0xff]
      %v1650 = vld [vmem:[#allocation2 + $0x110] sm:$0xff]
      %v1651 = vld [vmem:[#allocation2 + $0x118] sm:$0xff]
      %s1652 = scalar_lea.vmem %s1, 16
      %v1653 = vld [vmem:[%s1652] sm:$0xf]
      %vm1654 = vcmask 1044480
      %v1655 = vrot.slane %v285, 3
      %v1656 = vrot.slane %v286, 3
      %v1657 = vsel %vm1654, %v1655, %v1656
      %v1658 = vrot.slane %v287, 3
      %v1659 = vsel %vm1654, %v1656, %v1658
      %v1660 = vrot.slane %v288, 3
      %v1661 = vsel %vm1654, %v1658, %v1660
      %v1662 = vrot.slane %v289, 3
      %v1663 = vsel %vm1654, %v1660, %v1662
      %v1664 = vrot.slane %v290, 3
      %v1665 = vsel %vm1654, %v1662, %v1664
      %v1666 = vrot.slane %v291, 3
      %v1667 = vsel %vm1654, %v1664, %v1666
      %v1668 = vrot.slane %v292, 3
      %v1669 = vsel %vm1654, %v1666, %v1668
      %v1670 = vrot.slane %v293, 3
      %v1671 = vsel %vm1654, %v1668, %v1670
      %v1672 = vrot.slane %v294, 3
      %v1673 = vsel %vm1654, %v1670, %v1672
      %v1674 = vrot.slane %v295, 3
      %v1675 = vsel %vm1654, %v1672, %v1674
      %v1676 = vrot.slane %v296, 3
      %v1677 = vsel %vm1654, %v1674, %v1676
      %v1678 = vrot.slane %v297, 3
      %v1679 = vsel %vm1654, %v1676, %v1678
      %v1680 = vrot.slane %v298, 3
      %v1681 = vsel %vm1654, %v1678, %v1680
      %v1682 = vrot.slane %v299, 3
      %v1683 = vsel %vm1654, %v1680, %v1682
      %v1684 = vrot.slane %v300, 3
      %v1685 = vsel %vm1654, %v1682, %v1684
      %v1686 = vrot.slane %v301, 3
      %v1687 = vsel %vm1654, %v1684, %v1686
      %v1688 = vrot.slane %v302, 3
      %v1689 = vsel %vm1654, %v1686, %v1688
      %v1690 = vrot.slane %v303, 3
      %v1691 = vsel %vm1654, %v1688, %v1690
      %v1692 = vrot.slane %v304, 3
      %v1693 = vsel %vm1654, %v1690, %v1692
      %v1694 = vrot.slane %v305, 3
      %v1695 = vsel %vm1654, %v1692, %v1694
      %v1696 = vrot.slane %v306, 3
      %v1697 = vsel %vm1654, %v1694, %v1696
      %v1698 = vrot.slane %v307, 3
      %v1699 = vsel %vm1654, %v1696, %v1698
      %v1700 = vrot.slane %v308, 3
      %v1701 = vsel %vm1654, %v1698, %v1700
      %v1702 = vrot.slane %v309, 3
      %v1703 = vsel %vm1654, %v1700, %v1702
      %v1704 = vrot.slane %v310, 3
      %v1705 = vsel %vm1654, %v1702, %v1704
      %v1706 = vrot.slane %v311, 3
      %v1707 = vsel %vm1654, %v1704, %v1706
      %v1708 = vrot.slane %v312, 3
      %v1709 = vsel %vm1654, %v1706, %v1708
      %v1710 = vrot.slane %v313, 3
      %v1711 = vsel %vm1654, %v1708, %v1710
      %v1712 = vrot.slane %v314, 3
      %v1713 = vsel %vm1654, %v1710, %v1712
      %v1714 = vrot.slane %v315, 3
      %v1715 = vsel %vm1654, %v1712, %v1714
      %v1716 = vrot.slane %v316, 3
      %v1717 = vsel %vm1654, %v1714, %v1716
      %v1718 = vrot.slane %v317, 3
      %v1719 = vsel %vm1654, %v1716, %v1718
      %v1720 = vrot.slane %v318, 3
      %v1721 = vsel %vm1654, %v1718, %v1720
      %v1722 = vrot.slane %v319, 3
      %v1723 = vsel %vm1654, %v1720, %v1722
      %v1724 = vrot.slane %v320, 3
      %v1725 = vsel %vm1654, %v1722, %v1724
      %v1726 = vrot.slane %v321, 3
      %v1727 = vsel %vm1654, %v1724, %v1726
      %v1728 = vsel %vm325, %v1657, 0
      %v1730 = vsel %vm325, %v1659, 0
      %v1732 = vsel %vm325, %v1661, 0
      %v1734 = vsel %vm325, %v1663, 0
      %v1736 = vsel %vm325, %v1665, 0
      %v1738 = vsel %vm325, %v1667, 0
      %v1740 = vsel %vm325, %v1669, 0
      %v1742 = vsel %vm325, %v1671, 0
      %v1744 = vsel %vm325, %v1673, 0
      %v1746 = vsel %vm325, %v1675, 0
      %v1748 = vsel %vm325, %v1677, 0
      %v1750 = vsel %vm325, %v1679, 0
      %v1752 = vsel %vm325, %v1681, 0
      %v1754 = vsel %vm325, %v1683, 0
      %v1756 = vsel %vm325, %v1685, 0
      %v1758 = vsel %vm325, %v1687, 0
      %v1760 = vsel %vm325, %v1689, 0
      %v1762 = vsel %vm325, %v1691, 0
      %v1764 = vsel %vm325, %v1693, 0
      %v1766 = vsel %vm325, %v1695, 0
      %v1768 = vsel %vm325, %v1697, 0
      %v1770 = vsel %vm325, %v1699, 0
      %v1772 = vsel %vm325, %v1701, 0
      %v1774 = vsel %vm325, %v1703, 0
      %v1776 = vsel %vm325, %v1705, 0
      %v1778 = vsel %vm325, %v1707, 0
      %v1780 = vsel %vm325, %v1709, 0
      %v1782 = vsel %vm325, %v1711, 0
      %v1784 = vsel %vm325, %v1713, 0
      %v1786 = vsel %vm325, %v1715, 0
      %v1788 = vsel %vm325, %v1717, 0
      %v1790 = vsel %vm325, %v1719, 0
      %v1792 = vsel %vm325, %v1721, 0
      %v1794 = vsel %vm325, %v1723, 0
      %v1796 = vsel %vm325, %v1725, 0
      %v1798 = vsel %vm325, %v1727, 0
      %v1801 = vsel %vm434, %v1653, 0
      %1803 = vmatpush.msra.mxu0 0.0
      %1804 = vmatpush.msra.mxu0 0.0
      %1805 = vmatpush.msra.mxu0 0.0
      %1806 = vmatpush.msra.mxu0 0.0
      %1807 = vmatpush.msra.mxu0 0.0
      %1808 = vmatpush.msra.mxu0 0.0
      %1809 = vmatpush.msra.mxu0 0.0
      %1810 = vmatpush.msra.mxu0 0.0
      %1811 = vmatpush.msra.mxu0 0.0
      %1812 = vmatpush.msra.mxu0 0.0
      %1813 = vmatpush.msra.mxu0 0.0
      %1814 = vmatpush.msra.mxu0 0.0
      %1815 = vmatpush.msra.mxu0 0.0
      %1816 = vmatpush.msra.mxu0 0.0
      %1817 = vmatpush.msra.mxu0 0.0
      %1818 = vmatpush.msra.mxu0 %v1801
      %1819 = vmatmul.f32.gmra.mxu0 %v1728
      %v1820 = vpop.f32.mrf.mxu0
      %v1821 = vadd.f32 0.0, %v1820
      %1822 = vmatmul.f32.gmra.mxu0 %v1730
      %v1823 = vpop.f32.mrf.mxu0
      %v1824 = vadd.f32 0.0, %v1823
      %1825 = vmatmul.f32.gmra.mxu0 %v1732
      %v1826 = vpop.f32.mrf.mxu0
      %v1827 = vadd.f32 0.0, %v1826
      %1828 = vmatmul.f32.gmra.mxu0 %v1734
      %v1829 = vpop.f32.mrf.mxu0
      %v1830 = vadd.f32 0.0, %v1829
      %1831 = vmatmul.f32.gmra.mxu0 %v1736
      %v1832 = vpop.f32.mrf.mxu0
      %v1833 = vadd.f32 0.0, %v1832
      %1834 = vmatmul.f32.gmra.mxu0 %v1738
      %v1835 = vpop.f32.mrf.mxu0
      %v1836 = vadd.f32 0.0, %v1835
      %1837 = vmatmul.f32.gmra.mxu0 %v1740
      %v1838 = vpop.f32.mrf.mxu0
      %v1839 = vadd.f32 0.0, %v1838
      %1840 = vmatmul.f32.gmra.mxu0 %v1742
      %v1841 = vpop.f32.mrf.mxu0
      %v1842 = vadd.f32 0.0, %v1841
      %1843 = vmatmul.f32.gmra.mxu0 %v1744
      %v1844 = vpop.f32.mrf.mxu0
      %v1845 = vadd.f32 0.0, %v1844
      %1846 = vmatmul.f32.gmra.mxu0 %v1746
      %v1847 = vpop.f32.mrf.mxu0
      %v1848 = vadd.f32 0.0, %v1847
      %1849 = vmatmul.f32.gmra.mxu0 %v1748
      %v1850 = vpop.f32.mrf.mxu0
      %v1851 = vadd.f32 0.0, %v1850
      %1852 = vmatmul.f32.gmra.mxu0 %v1750
      %v1853 = vpop.f32.mrf.mxu0
      %v1854 = vadd.f32 0.0, %v1853
      %1855 = vmatmul.f32.gmra.mxu0 %v1752
      %v1856 = vpop.f32.mrf.mxu0
      %v1857 = vadd.f32 0.0, %v1856
      %1858 = vmatmul.f32.gmra.mxu0 %v1754
      %v1859 = vpop.f32.mrf.mxu0
      %v1860 = vadd.f32 0.0, %v1859
      %1861 = vmatmul.f32.gmra.mxu0 %v1756
      %v1862 = vpop.f32.mrf.mxu0
      %v1863 = vadd.f32 0.0, %v1862
      %1864 = vmatmul.f32.gmra.mxu0 %v1758
      %v1865 = vpop.f32.mrf.mxu0
      %v1866 = vadd.f32 0.0, %v1865
      %1867 = vmatmul.f32.gmra.mxu0 %v1760
      %v1868 = vpop.f32.mrf.mxu0
      %v1869 = vadd.f32 0.0, %v1868
      %1870 = vmatmul.f32.gmra.mxu0 %v1762
      %v1871 = vpop.f32.mrf.mxu0
      %v1872 = vadd.f32 0.0, %v1871
      %1873 = vmatmul.f32.gmra.mxu0 %v1764
      %v1874 = vpop.f32.mrf.mxu0
      %v1875 = vadd.f32 0.0, %v1874
      %1876 = vmatmul.f32.gmra.mxu0 %v1766
      %v1877 = vpop.f32.mrf.mxu0
      %v1878 = vadd.f32 0.0, %v1877
      %1879 = vmatmul.f32.gmra.mxu0 %v1768
      %v1880 = vpop.f32.mrf.mxu0
      %v1881 = vadd.f32 0.0, %v1880
      %1882 = vmatmul.f32.gmra.mxu0 %v1770
      %v1883 = vpop.f32.mrf.mxu0
      %v1884 = vadd.f32 0.0, %v1883
      %1885 = vmatmul.f32.gmra.mxu0 %v1772
      %v1886 = vpop.f32.mrf.mxu0
      %v1887 = vadd.f32 0.0, %v1886
      %1888 = vmatmul.f32.gmra.mxu0 %v1774
      %v1889 = vpop.f32.mrf.mxu0
      %v1890 = vadd.f32 0.0, %v1889
      %1891 = vmatmul.f32.gmra.mxu0 %v1776
      %v1892 = vpop.f32.mrf.mxu0
      %v1893 = vadd.f32 0.0, %v1892
      %1894 = vmatmul.f32.gmra.mxu0 %v1778
      %v1895 = vpop.f32.mrf.mxu0
      %v1896 = vadd.f32 0.0, %v1895
      %1897 = vmatmul.f32.gmra.mxu0 %v1780
      %v1898 = vpop.f32.mrf.mxu0
      %v1899 = vadd.f32 0.0, %v1898
      %1900 = vmatmul.f32.gmra.mxu0 %v1782
      %v1901 = vpop.f32.mrf.mxu0
      %v1902 = vadd.f32 0.0, %v1901
      %1903 = vmatmul.f32.gmra.mxu0 %v1784
      %v1904 = vpop.f32.mrf.mxu0
      %v1905 = vadd.f32 0.0, %v1904
      %1906 = vmatmul.f32.gmra.mxu0 %v1786
      %v1907 = vpop.f32.mrf.mxu0
      %v1908 = vadd.f32 0.0, %v1907
      %1909 = vmatmul.f32.gmra.mxu0 %v1788
      %v1910 = vpop.f32.mrf.mxu0
      %v1911 = vadd.f32 0.0, %v1910
      %1912 = vmatmul.f32.gmra.mxu0 %v1790
      %v1913 = vpop.f32.mrf.mxu0
      %v1914 = vadd.f32 0.0, %v1913
      %1915 = vmatmul.f32.gmra.mxu0 %v1792
      %v1916 = vpop.f32.mrf.mxu0
      %v1917 = vadd.f32 0.0, %v1916
      %1918 = vmatmul.f32.gmra.mxu0 %v1794
      %v1919 = vpop.f32.mrf.mxu0
      %v1920 = vadd.f32 0.0, %v1919
      %1921 = vmatmul.f32.gmra.mxu0 %v1796
      %v1922 = vpop.f32.mrf.mxu0
      %v1923 = vadd.f32 0.0, %v1922
      %1924 = vmatmul.f32.gmra.mxu0 %v1798
      %v1925 = vpop.f32.mrf.mxu0
      %v1926 = vadd.f32 0.0, %v1925
      %1927 = vdwg.mxu0
      %v1928 = vadd.f32 %v1616, %v1821
      %v1929 = vadd.f32 %v1617, %v1824
      %v1930 = vadd.f32 %v1618, %v1827
      %v1931 = vadd.f32 %v1619, %v1830
      %v1932 = vadd.f32 %v1620, %v1833
      %v1933 = vadd.f32 %v1621, %v1836
      %v1934 = vadd.f32 %v1622, %v1839
      %v1935 = vadd.f32 %v1623, %v1842
      %v1936 = vadd.f32 %v1624, %v1845
      %v1937 = vadd.f32 %v1625, %v1848
      %v1938 = vadd.f32 %v1626, %v1851
      %v1939 = vadd.f32 %v1627, %v1854
      %v1940 = vadd.f32 %v1628, %v1857
      %v1941 = vadd.f32 %v1629, %v1860
      %v1942 = vadd.f32 %v1630, %v1863
      %v1943 = vadd.f32 %v1631, %v1866
      %v1944 = vadd.f32 %v1632, %v1869
      %v1945 = vadd.f32 %v1633, %v1872
      %v1946 = vadd.f32 %v1634, %v1875
      %v1947 = vadd.f32 %v1635, %v1878
      %v1948 = vadd.f32 %v1636, %v1881
      %v1949 = vadd.f32 %v1637, %v1884
      %v1950 = vadd.f32 %v1638, %v1887
      %v1951 = vadd.f32 %v1639, %v1890
      %v1952 = vadd.f32 %v1640, %v1893
      %v1953 = vadd.f32 %v1641, %v1896
      %v1954 = vadd.f32 %v1642, %v1899
      %v1955 = vadd.f32 %v1643, %v1902
      %v1956 = vadd.f32 %v1644, %v1905
      %v1957 = vadd.f32 %v1645, %v1908
      %v1958 = vadd.f32 %v1646, %v1911
      %v1959 = vadd.f32 %v1647, %v1914
      %v1960 = vadd.f32 %v1648, %v1917
      %v1961 = vadd.f32 %v1649, %v1920
      %v1962 = vadd.f32 %v1650, %v1923
      %v1963 = vadd.f32 %v1651, %v1926
      %1964 = vst [vmem:[#allocation2] sm:$0xff] %v1928
      %1965 = vst [vmem:[#allocation2 + $0x8] sm:$0xff] %v1929
      %1966 = vst [vmem:[#allocation2 + $0x10] sm:$0xff] %v1930
      %1967 = vst [vmem:[#allocation2 + $0x18] sm:$0xff] %v1931
      %1968 = vst [vmem:[#allocation2 + $0x20] sm:$0xff] %v1932
      %1969 = vst [vmem:[#allocation2 + $0x28] sm:$0xff] %v1933
      %1970 = vst [vmem:[#allocation2 + $0x30] sm:$0xff] %v1934
      %1971 = vst [vmem:[#allocation2 + $0x38] sm:$0xff] %v1935
      %1972 = vst [vmem:[#allocation2 + $0x40] sm:$0xff] %v1936
      %1973 = vst [vmem:[#allocation2 + $0x48] sm:$0xff] %v1937
      %1974 = vst [vmem:[#allocation2 + $0x50] sm:$0xff] %v1938
      %1975 = vst [vmem:[#allocation2 + $0x58] sm:$0xff] %v1939
      %1976 = vst [vmem:[#allocation2 + $0x60] sm:$0xff] %v1940
      %1977 = vst [vmem:[#allocation2 + $0x68] sm:$0xff] %v1941
      %1978 = vst [vmem:[#allocation2 + $0x70] sm:$0xff] %v1942
      %1979 = vst [vmem:[#allocation2 + $0x78] sm:$0xff] %v1943
      %1980 = vst [vmem:[#allocation2 + $0x80] sm:$0xff] %v1944
      %1981 = vst [vmem:[#allocation2 + $0x88] sm:$0xff] %v1945
      %1982 = vst [vmem:[#allocation2 + $0x90] sm:$0xff] %v1946
      %1983 = vst [vmem:[#allocation2 + $0x98] sm:$0xff] %v1947
      %1984 = vst [vmem:[#allocation2 + $0xa0] sm:$0xff] %v1948
      %1985 = vst [vmem:[#allocation2 + $0xa8] sm:$0xff] %v1949
      %1986 = vst [vmem:[#allocation2 + $0xb0] sm:$0xff] %v1950
      %1987 = vst [vmem:[#allocation2 + $0xb8] sm:$0xff] %v1951
      %1988 = vst [vmem:[#allocation2 + $0xc0] sm:$0xff] %v1952
      %1989 = vst [vmem:[#allocation2 + $0xc8] sm:$0xff] %v1953
      %1990 = vst [vmem:[#allocation2 + $0xd0] sm:$0xff] %v1954
      %1991 = vst [vmem:[#allocation2 + $0xd8] sm:$0xff] %v1955
      %1992 = vst [vmem:[#allocation2 + $0xe0] sm:$0xff] %v1956
      %1993 = vst [vmem:[#allocation2 + $0xe8] sm:$0xff] %v1957
      %1994 = vst [vmem:[#allocation2 + $0xf0] sm:$0xff] %v1958
      %1995 = vst [vmem:[#allocation2 + $0xf8] sm:$0xff] %v1959
      %1996 = vst [vmem:[#allocation2 + $0x100] sm:$0xff] %v1960
      %1997 = vst [vmem:[#allocation2 + $0x108] sm:$0xff] %v1961
      %1998 = vst [vmem:[#allocation2 + $0x110] sm:$0xff] %v1962
      %1999 = vst [vmem:[#allocation2 + $0x118] sm:$0xff] %v1963
      %v2000 = vld [vmem:[#allocation2] sm:$0xff]
      %v2001 = vld [vmem:[#allocation2 + $0x8] sm:$0xff]
      %v2002 = vld [vmem:[#allocation2 + $0x10] sm:$0xff]
      %v2003 = vld [vmem:[#allocation2 + $0x18] sm:$0xff]
      %v2004 = vld [vmem:[#allocation2 + $0x20] sm:$0xff]
      %v2005 = vld [vmem:[#allocation2 + $0x28] sm:$0xff]
      %v2006 = vld [vmem:[#allocation2 + $0x30] sm:$0xff]
      %v2007 = vld [vmem:[#allocation2 + $0x38] sm:$0xff]
      %v2008 = vld [vmem:[#allocation2 + $0x40] sm:$0xff]
      %v2009 = vld [vmem:[#allocation2 + $0x48] sm:$0xff]
      %v2010 = vld [vmem:[#allocation2 + $0x50] sm:$0xff]
      %v2011 = vld [vmem:[#allocation2 + $0x58] sm:$0xff]
      %v2012 = vld [vmem:[#allocation2 + $0x60] sm:$0xff]
      %v2013 = vld [vmem:[#allocation2 + $0x68] sm:$0xff]
      %v2014 = vld [vmem:[#allocation2 + $0x70] sm:$0xff]
      %v2015 = vld [vmem:[#allocation2 + $0x78] sm:$0xff]
      %v2016 = vld [vmem:[#allocation2 + $0x80] sm:$0xff]
      %v2017 = vld [vmem:[#allocation2 + $0x88] sm:$0xff]
      %v2018 = vld [vmem:[#allocation2 + $0x90] sm:$0xff]
      %v2019 = vld [vmem:[#allocation2 + $0x98] sm:$0xff]
      %v2020 = vld [vmem:[#allocation2 + $0xa0] sm:$0xff]
      %v2021 = vld [vmem:[#allocation2 + $0xa8] sm:$0xff]
      %v2022 = vld [vmem:[#allocation2 + $0xb0] sm:$0xff]
      %v2023 = vld [vmem:[#allocation2 + $0xb8] sm:$0xff]
      %v2024 = vld [vmem:[#allocation2 + $0xc0] sm:$0xff]
      %v2025 = vld [vmem:[#allocation2 + $0xc8] sm:$0xff]
      %v2026 = vld [vmem:[#allocation2 + $0xd0] sm:$0xff]
      %v2027 = vld [vmem:[#allocation2 + $0xd8] sm:$0xff]
      %v2028 = vld [vmem:[#allocation2 + $0xe0] sm:$0xff]
      %v2029 = vld [vmem:[#allocation2 + $0xe8] sm:$0xff]
      %v2030 = vld [vmem:[#allocation2 + $0xf0] sm:$0xff]
      %v2031 = vld [vmem:[#allocation2 + $0xf8] sm:$0xff]
      %v2032 = vld [vmem:[#allocation2 + $0x100] sm:$0xff]
      %v2033 = vld [vmem:[#allocation2 + $0x108] sm:$0xff]
      %v2034 = vld [vmem:[#allocation2 + $0x110] sm:$0xff]
      %v2035 = vld [vmem:[#allocation2 + $0x118] sm:$0xff]
      %s2036 = scalar_lea.vmem %s1, 20
      %v2037 = vld [vmem:[%s2036] sm:$0xf]
      %v2038 = vrot.slane %v285, 4
      %v2039 = vrot.slane %v286, 4
      %v2040 = vsel %vm434, %v2038, %v2039
      %v2041 = vrot.slane %v287, 4
      %v2042 = vsel %vm434, %v2039, %v2041
      %v2043 = vrot.slane %v288, 4
      %v2044 = vsel %vm434, %v2041, %v2043
      %v2045 = vrot.slane %v289, 4
      %v2046 = vsel %vm434, %v2043, %v2045
      %v2047 = vrot.slane %v290, 4
      %v2048 = vsel %vm434, %v2045, %v2047
      %v2049 = vrot.slane %v291, 4
      %v2050 = vsel %vm434, %v2047, %v2049
      %v2051 = vrot.slane %v292, 4
      %v2052 = vsel %vm434, %v2049, %v2051
      %v2053 = vrot.slane %v293, 4
      %v2054 = vsel %vm434, %v2051, %v2053
      %v2055 = vrot.slane %v294, 4
      %v2056 = vsel %vm434, %v2053, %v2055
      %v2057 = vrot.slane %v295, 4
      %v2058 = vsel %vm434, %v2055, %v2057
      %v2059 = vrot.slane %v296, 4
      %v2060 = vsel %vm434, %v2057, %v2059
      %v2061 = vrot.slane %v297, 4
      %v2062 = vsel %vm434, %v2059, %v2061
      %v2063 = vrot.slane %v298, 4
      %v2064 = vsel %vm434, %v2061, %v2063
      %v2065 = vrot.slane %v299, 4
      %v2066 = vsel %vm434, %v2063, %v2065
      %v2067 = vrot.slane %v300, 4
      %v2068 = vsel %vm434, %v2065, %v2067
      %v2069 = vrot.slane %v301, 4
      %v2070 = vsel %vm434, %v2067, %v2069
      %v2071 = vrot.slane %v302, 4
      %v2072 = vsel %vm434, %v2069, %v2071
      %v2073 = vrot.slane %v303, 4
      %v2074 = vsel %vm434, %v2071, %v2073
      %v2075 = vrot.slane %v304, 4
      %v2076 = vsel %vm434, %v2073, %v2075
      %v2077 = vrot.slane %v305, 4
      %v2078 = vsel %vm434, %v2075, %v2077
      %v2079 = vrot.slane %v306, 4
      %v2080 = vsel %vm434, %v2077, %v2079
      %v2081 = vrot.slane %v307, 4
      %v2082 = vsel %vm434, %v2079, %v2081
      %v2083 = vrot.slane %v308, 4
      %v2084 = vsel %vm434, %v2081, %v2083
      %v2085 = vrot.slane %v309, 4
      %v2086 = vsel %vm434, %v2083, %v2085
      %v2087 = vrot.slane %v310, 4
      %v2088 = vsel %vm434, %v2085, %v2087
      %v2089 = vrot.slane %v311, 4
      %v2090 = vsel %vm434, %v2087, %v2089
      %v2091 = vrot.slane %v312, 4
      %v2092 = vsel %vm434, %v2089, %v2091
      %v2093 = vrot.slane %v313, 4
      %v2094 = vsel %vm434, %v2091, %v2093
      %v2095 = vrot.slane %v314, 4
      %v2096 = vsel %vm434, %v2093, %v2095
      %v2097 = vrot.slane %v315, 4
      %v2098 = vsel %vm434, %v2095, %v2097
      %v2099 = vrot.slane %v316, 4
      %v2100 = vsel %vm434, %v2097, %v2099
      %v2101 = vrot.slane %v317, 4
      %v2102 = vsel %vm434, %v2099, %v2101
      %v2103 = vrot.slane %v318, 4
      %v2104 = vsel %vm434, %v2101, %v2103
      %v2105 = vrot.slane %v319, 4
      %v2106 = vsel %vm434, %v2103, %v2105
      %v2107 = vrot.slane %v320, 4
      %v2108 = vsel %vm434, %v2105, %v2107
      %v2109 = vrot.slane %v321, 4
      %v2110 = vsel %vm434, %v2107, %v2109
      %v2111 = vsel %vm325, %v2040, 0
      %v2113 = vsel %vm325, %v2042, 0
      %v2115 = vsel %vm325, %v2044, 0
      %v2117 = vsel %vm325, %v2046, 0
      %v2119 = vsel %vm325, %v2048, 0
      %v2121 = vsel %vm325, %v2050, 0
      %v2123 = vsel %vm325, %v2052, 0
      %v2125 = vsel %vm325, %v2054, 0
      %v2127 = vsel %vm325, %v2056, 0
      %v2129 = vsel %vm325, %v2058, 0
      %v2131 = vsel %vm325, %v2060, 0
      %v2133 = vsel %vm325, %v2062, 0
      %v2135 = vsel %vm325, %v2064, 0
      %v2137 = vsel %vm325, %v2066, 0
      %v2139 = vsel %vm325, %v2068, 0
      %v2141 = vsel %vm325, %v2070, 0
      %v2143 = vsel %vm325, %v2072, 0
      %v2145 = vsel %vm325, %v2074, 0
      %v2147 = vsel %vm325, %v2076, 0
      %v2149 = vsel %vm325, %v2078, 0
      %v2151 = vsel %vm325, %v2080, 0
      %v2153 = vsel %vm325, %v2082, 0
      %v2155 = vsel %vm325, %v2084, 0
      %v2157 = vsel %vm325, %v2086, 0
      %v2159 = vsel %vm325, %v2088, 0
      %v2161 = vsel %vm325, %v2090, 0
      %v2163 = vsel %vm325, %v2092, 0
      %v2165 = vsel %vm325, %v2094, 0
      %v2167 = vsel %vm325, %v2096, 0
      %v2169 = vsel %vm325, %v2098, 0
      %v2171 = vsel %vm325, %v2100, 0
      %v2173 = vsel %vm325, %v2102, 0
      %v2175 = vsel %vm325, %v2104, 0
      %v2177 = vsel %vm325, %v2106, 0
      %v2179 = vsel %vm325, %v2108, 0
      %v2181 = vsel %vm325, %v2110, 0
      %v2184 = vsel %vm434, %v2037, 0
      %2186 = vmatpush.msra.mxu0 0.0
      %2187 = vmatpush.msra.mxu0 0.0
      %2188 = vmatpush.msra.mxu0 0.0
      %2189 = vmatpush.msra.mxu0 0.0
      %2190 = vmatpush.msra.mxu0 0.0
      %2191 = vmatpush.msra.mxu0 0.0
      %2192 = vmatpush.msra.mxu0 0.0
      %2193 = vmatpush.msra.mxu0 0.0
      %2194 = vmatpush.msra.mxu0 0.0
      %2195 = vmatpush.msra.mxu0 0.0
      %2196 = vmatpush.msra.mxu0 0.0
      %2197 = vmatpush.msra.mxu0 0.0
      %2198 = vmatpush.msra.mxu0 0.0
      %2199 = vmatpush.msra.mxu0 0.0
      %2200 = vmatpush.msra.mxu0 0.0
      %2201 = vmatpush.msra.mxu0 %v2184
      %2202 = vmatmul.f32.gmra.mxu0 %v2111
      %v2203 = vpop.f32.mrf.mxu0
      %v2204 = vadd.f32 0.0, %v2203
      %2205 = vmatmul.f32.gmra.mxu0 %v2113
      %v2206 = vpop.f32.mrf.mxu0
      %v2207 = vadd.f32 0.0, %v2206
      %2208 = vmatmul.f32.gmra.mxu0 %v2115
      %v2209 = vpop.f32.mrf.mxu0
      %v2210 = vadd.f32 0.0, %v2209
      %2211 = vmatmul.f32.gmra.mxu0 %v2117
      %v2212 = vpop.f32.mrf.mxu0
      %v2213 = vadd.f32 0.0, %v2212
      %2214 = vmatmul.f32.gmra.mxu0 %v2119
      %v2215 = vpop.f32.mrf.mxu0
      %v2216 = vadd.f32 0.0, %v2215
      %2217 = vmatmul.f32.gmra.mxu0 %v2121
      %v2218 = vpop.f32.mrf.mxu0
      %v2219 = vadd.f32 0.0, %v2218
      %2220 = vmatmul.f32.gmra.mxu0 %v2123
      %v2221 = vpop.f32.mrf.mxu0
      %v2222 = vadd.f32 0.0, %v2221
      %2223 = vmatmul.f32.gmra.mxu0 %v2125
      %v2224 = vpop.f32.mrf.mxu0
      %v2225 = vadd.f32 0.0, %v2224
      %2226 = vmatmul.f32.gmra.mxu0 %v2127
      %v2227 = vpop.f32.mrf.mxu0
      %v2228 = vadd.f32 0.0, %v2227
      %2229 = vmatmul.f32.gmra.mxu0 %v2129
      %v2230 = vpop.f32.mrf.mxu0
      %v2231 = vadd.f32 0.0, %v2230
      %2232 = vmatmul.f32.gmra.mxu0 %v2131
      %v2233 = vpop.f32.mrf.mxu0
      %v2234 = vadd.f32 0.0, %v2233
      %2235 = vmatmul.f32.gmra.mxu0 %v2133
      %v2236 = vpop.f32.mrf.mxu0
      %v2237 = vadd.f32 0.0, %v2236
      %2238 = vmatmul.f32.gmra.mxu0 %v2135
      %v2239 = vpop.f32.mrf.mxu0
      %v2240 = vadd.f32 0.0, %v2239
      %2241 = vmatmul.f32.gmra.mxu0 %v2137
      %v2242 = vpop.f32.mrf.mxu0
      %v2243 = vadd.f32 0.0, %v2242
      %2244 = vmatmul.f32.gmra.mxu0 %v2139
      %v2245 = vpop.f32.mrf.mxu0
      %v2246 = vadd.f32 0.0, %v2245
      %2247 = vmatmul.f32.gmra.mxu0 %v2141
      %v2248 = vpop.f32.mrf.mxu0
      %v2249 = vadd.f32 0.0, %v2248
      %2250 = vmatmul.f32.gmra.mxu0 %v2143
      %v2251 = vpop.f32.mrf.mxu0
      %v2252 = vadd.f32 0.0, %v2251
      %2253 = vmatmul.f32.gmra.mxu0 %v2145
      %v2254 = vpop.f32.mrf.mxu0
      %v2255 = vadd.f32 0.0, %v2254
      %2256 = vmatmul.f32.gmra.mxu0 %v2147
      %v2257 = vpop.f32.mrf.mxu0
      %v2258 = vadd.f32 0.0, %v2257
      %2259 = vmatmul.f32.gmra.mxu0 %v2149
      %v2260 = vpop.f32.mrf.mxu0
      %v2261 = vadd.f32 0.0, %v2260
      %2262 = vmatmul.f32.gmra.mxu0 %v2151
      %v2263 = vpop.f32.mrf.mxu0
      %v2264 = vadd.f32 0.0, %v2263
      %2265 = vmatmul.f32.gmra.mxu0 %v2153
      %v2266 = vpop.f32.mrf.mxu0
      %v2267 = vadd.f32 0.0, %v2266
      %2268 = vmatmul.f32.gmra.mxu0 %v2155
      %v2269 = vpop.f32.mrf.mxu0
      %v2270 = vadd.f32 0.0, %v2269
      %2271 = vmatmul.f32.gmra.mxu0 %v2157
      %v2272 = vpop.f32.mrf.mxu0
      %v2273 = vadd.f32 0.0, %v2272
      %2274 = vmatmul.f32.gmra.mxu0 %v2159
      %v2275 = vpop.f32.mrf.mxu0
      %v2276 = vadd.f32 0.0, %v2275
      %2277 = vmatmul.f32.gmra.mxu0 %v2161
      %v2278 = vpop.f32.mrf.mxu0
      %v2279 = vadd.f32 0.0, %v2278
      %2280 = vmatmul.f32.gmra.mxu0 %v2163
      %v2281 = vpop.f32.mrf.mxu0
      %v2282 = vadd.f32 0.0, %v2281
      %2283 = vmatmul.f32.gmra.mxu0 %v2165
      %v2284 = vpop.f32.mrf.mxu0
      %v2285 = vadd.f32 0.0, %v2284
      %2286 = vmatmul.f32.gmra.mxu0 %v2167
      %v2287 = vpop.f32.mrf.mxu0
      %v2288 = vadd.f32 0.0, %v2287
      %2289 = vmatmul.f32.gmra.mxu0 %v2169
      %v2290 = vpop.f32.mrf.mxu0
      %v2291 = vadd.f32 0.0, %v2290
      %2292 = vmatmul.f32.gmra.mxu0 %v2171
      %v2293 = vpop.f32.mrf.mxu0
      %v2294 = vadd.f32 0.0, %v2293
      %2295 = vmatmul.f32.gmra.mxu0 %v2173
      %v2296 = vpop.f32.mrf.mxu0
      %v2297 = vadd.f32 0.0, %v2296
      %2298 = vmatmul.f32.gmra.mxu0 %v2175
      %v2299 = vpop.f32.mrf.mxu0
      %v2300 = vadd.f32 0.0, %v2299
      %2301 = vmatmul.f32.gmra.mxu0 %v2177
      %v2302 = vpop.f32.mrf.mxu0
      %v2303 = vadd.f32 0.0, %v2302
      %2304 = vmatmul.f32.gmra.mxu0 %v2179
      %v2305 = vpop.f32.mrf.mxu0
      %v2306 = vadd.f32 0.0, %v2305
      %2307 = vmatmul.f32.gmra.mxu0 %v2181
      %v2308 = vpop.f32.mrf.mxu0
      %v2309 = vadd.f32 0.0, %v2308
      %2310 = vdwg.mxu0
      %v2311 = vadd.f32 %v2000, %v2204
      %v2312 = vadd.f32 %v2001, %v2207
      %v2313 = vadd.f32 %v2002, %v2210
      %v2314 = vadd.f32 %v2003, %v2213
      %v2315 = vadd.f32 %v2004, %v2216
      %v2316 = vadd.f32 %v2005, %v2219
      %v2317 = vadd.f32 %v2006, %v2222
      %v2318 = vadd.f32 %v2007, %v2225
      %v2319 = vadd.f32 %v2008, %v2228
      %v2320 = vadd.f32 %v2009, %v2231
      %v2321 = vadd.f32 %v2010, %v2234
      %v2322 = vadd.f32 %v2011, %v2237
      %v2323 = vadd.f32 %v2012, %v2240
      %v2324 = vadd.f32 %v2013, %v2243
      %v2325 = vadd.f32 %v2014, %v2246
      %v2326 = vadd.f32 %v2015, %v2249
      %v2327 = vadd.f32 %v2016, %v2252
      %v2328 = vadd.f32 %v2017, %v2255
      %v2329 = vadd.f32 %v2018, %v2258
      %v2330 = vadd.f32 %v2019, %v2261
      %v2331 = vadd.f32 %v2020, %v2264
      %v2332 = vadd.f32 %v2021, %v2267
      %v2333 = vadd.f32 %v2022, %v2270
      %v2334 = vadd.f32 %v2023, %v2273
      %v2335 = vadd.f32 %v2024, %v2276
      %v2336 = vadd.f32 %v2025, %v2279
      %v2337 = vadd.f32 %v2026, %v2282
      %v2338 = vadd.f32 %v2027, %v2285
      %v2339 = vadd.f32 %v2028, %v2288
      %v2340 = vadd.f32 %v2029, %v2291
      %v2341 = vadd.f32 %v2030, %v2294
      %v2342 = vadd.f32 %v2031, %v2297
      %v2343 = vadd.f32 %v2032, %v2300
      %v2344 = vadd.f32 %v2033, %v2303
      %v2345 = vadd.f32 %v2034, %v2306
      %v2346 = vadd.f32 %v2035, %v2309
      %2347 = vst [vmem:[#allocation2] sm:$0xff] %v2311
      %2348 = vst [vmem:[#allocation2 + $0x8] sm:$0xff] %v2312
      %2349 = vst [vmem:[#allocation2 + $0x10] sm:$0xff] %v2313
      %2350 = vst [vmem:[#allocation2 + $0x18] sm:$0xff] %v2314
      %2351 = vst [vmem:[#allocation2 + $0x20] sm:$0xff] %v2315
      %2352 = vst [vmem:[#allocation2 + $0x28] sm:$0xff] %v2316
      %2353 = vst [vmem:[#allocation2 + $0x30] sm:$0xff] %v2317
      %2354 = vst [vmem:[#allocation2 + $0x38] sm:$0xff] %v2318
      %2355 = vst [vmem:[#allocation2 + $0x40] sm:$0xff] %v2319
      %2356 = vst [vmem:[#allocation2 + $0x48] sm:$0xff] %v2320
      %2357 = vst [vmem:[#allocation2 + $0x50] sm:$0xff] %v2321
      %2358 = vst [vmem:[#allocation2 + $0x58] sm:$0xff] %v2322
      %2359 = vst [vmem:[#allocation2 + $0x60] sm:$0xff] %v2323
      %2360 = vst [vmem:[#allocation2 + $0x68] sm:$0xff] %v2324
      %2361 = vst [vmem:[#allocation2 + $0x70] sm:$0xff] %v2325
      %2362 = vst [vmem:[#allocation2 + $0x78] sm:$0xff] %v2326
      %2363 = vst [vmem:[#allocation2 + $0x80] sm:$0xff] %v2327
      %2364 = vst [vmem:[#allocation2 + $0x88] sm:$0xff] %v2328
      %2365 = vst [vmem:[#allocation2 + $0x90] sm:$0xff] %v2329
      %2366 = vst [vmem:[#allocation2 + $0x98] sm:$0xff] %v2330
      %2367 = vst [vmem:[#allocation2 + $0xa0] sm:$0xff] %v2331
      %2368 = vst [vmem:[#allocation2 + $0xa8] sm:$0xff] %v2332
      %2369 = vst [vmem:[#allocation2 + $0xb0] sm:$0xff] %v2333
      %2370 = vst [vmem:[#allocation2 + $0xb8] sm:$0xff] %v2334
      %2371 = vst [vmem:[#allocation2 + $0xc0] sm:$0xff] %v2335
      %2372 = vst [vmem:[#allocation2 + $0xc8] sm:$0xff] %v2336
      %2373 = vst [vmem:[#allocation2 + $0xd0] sm:$0xff] %v2337
      %2374 = vst [vmem:[#allocation2 + $0xd8] sm:$0xff] %v2338
      %2375 = vst [vmem:[#allocation2 + $0xe0] sm:$0xff] %v2339
      %2376 = vst [vmem:[#allocation2 + $0xe8] sm:$0xff] %v2340
      %2377 = vst [vmem:[#allocation2 + $0xf0] sm:$0xff] %v2341
      %2378 = vst [vmem:[#allocation2 + $0xf8] sm:$0xff] %v2342
      %2379 = vst [vmem:[#allocation2 + $0x100] sm:$0xff] %v2343
      %2380 = vst [vmem:[#allocation2 + $0x108] sm:$0xff] %v2344
      %2381 = vst [vmem:[#allocation2 + $0x110] sm:$0xff] %v2345
      %2382 = vst [vmem:[#allocation2 + $0x118] sm:$0xff] %v2346
      %v2383 = vld [vmem:[#allocation2] sm:$0xff]
      %v2384 = vld [vmem:[#allocation2 + $0x8] sm:$0xff]
      %v2385 = vld [vmem:[#allocation2 + $0x10] sm:$0xff]
      %v2386 = vld [vmem:[#allocation2 + $0x18] sm:$0xff]
      %v2387 = vld [vmem:[#allocation2 + $0x20] sm:$0xff]
      %v2388 = vld [vmem:[#allocation2 + $0x28] sm:$0xff]
      %v2389 = vld [vmem:[#allocation2 + $0x30] sm:$0xff]
      %v2390 = vld [vmem:[#allocation2 + $0x38] sm:$0xff]
      %v2391 = vld [vmem:[#allocation2 + $0x40] sm:$0xff]
      %v2392 = vld [vmem:[#allocation2 + $0x48] sm:$0xff]
      %v2393 = vld [vmem:[#allocation2 + $0x50] sm:$0xff]
      %v2394 = vld [vmem:[#allocation2 + $0x58] sm:$0xff]
      %v2395 = vld [vmem:[#allocation2 + $0x60] sm:$0xff]
      %v2396 = vld [vmem:[#allocation2 + $0x68] sm:$0xff]
      %v2397 = vld [vmem:[#allocation2 + $0x70] sm:$0xff]
      %v2398 = vld [vmem:[#allocation2 + $0x78] sm:$0xff]
      %v2399 = vld [vmem:[#allocation2 + $0x80] sm:$0xff]
      %v2400 = vld [vmem:[#allocation2 + $0x88] sm:$0xff]
      %v2401 = vld [vmem:[#allocation2 + $0x90] sm:$0xff]
      %v2402 = vld [vmem:[#allocation2 + $0x98] sm:$0xff]
      %v2403 = vld [vmem:[#allocation2 + $0xa0] sm:$0xff]
      %v2404 = vld [vmem:[#allocation2 + $0xa8] sm:$0xff]
      %v2405 = vld [vmem:[#allocation2 + $0xb0] sm:$0xff]
      %v2406 = vld [vmem:[#allocation2 + $0xb8] sm:$0xff]
      %v2407 = vld [vmem:[#allocation2 + $0xc0] sm:$0xff]
      %v2408 = vld [vmem:[#allocation2 + $0xc8] sm:$0xff]
      %v2409 = vld [vmem:[#allocation2 + $0xd0] sm:$0xff]
      %v2410 = vld [vmem:[#allocation2 + $0xd8] sm:$0xff]
      %v2411 = vld [vmem:[#allocation2 + $0xe0] sm:$0xff]
      %v2412 = vld [vmem:[#allocation2 + $0xe8] sm:$0xff]
      %v2413 = vld [vmem:[#allocation2 + $0xf0] sm:$0xff]
      %v2414 = vld [vmem:[#allocation2 + $0xf8] sm:$0xff]
      %v2415 = vld [vmem:[#allocation2 + $0x100] sm:$0xff]
      %v2416 = vld [vmem:[#allocation2 + $0x108] sm:$0xff]
      %v2417 = vld [vmem:[#allocation2 + $0x110] sm:$0xff]
      %v2418 = vld [vmem:[#allocation2 + $0x118] sm:$0xff]
      %s2419 = scalar_lea.vmem %s1, 24
      %v2420 = vld [vmem:[%s2419] sm:$0xf]
      %v2423 = vrot.slane %v322, 4
      %v2424 = vsel %vm434, %v2109, %v2423
      %v2425 = vrot.slane %v323, 4
      %v2426 = vsel %vm434, %v2423, %v2425
      %v2427 = vsel %vm325, %v2424, 0
      %v2429 = vsel %vm325, %v2426, 0
      %v2432 = vsel %vm434, %v2420, 0
      %2434 = vmatpush.msra.mxu0 0.0
      %2435 = vmatpush.msra.mxu0 0.0
      %2436 = vmatpush.msra.mxu0 0.0
      %2437 = vmatpush.msra.mxu0 0.0
      %2438 = vmatpush.msra.mxu0 0.0
      %2439 = vmatpush.msra.mxu0 0.0
      %2440 = vmatpush.msra.mxu0 0.0
      %2441 = vmatpush.msra.mxu0 0.0
      %2442 = vmatpush.msra.mxu0 0.0
      %2443 = vmatpush.msra.mxu0 0.0
      %2444 = vmatpush.msra.mxu0 0.0
      %2445 = vmatpush.msra.mxu0 0.0
      %2446 = vmatpush.msra.mxu0 0.0
      %2447 = vmatpush.msra.mxu0 0.0
      %2448 = vmatpush.msra.mxu0 0.0
      %2449 = vmatpush.msra.mxu0 %v2432
      %2450 = vmatmul.f32.gmra.mxu0 %v2115
      %v2451 = vpop.f32.mrf.mxu0
      %v2452 = vadd.f32 0.0, %v2451
      %2453 = vmatmul.f32.gmra.mxu0 %v2117
      %v2454 = vpop.f32.mrf.mxu0
      %v2455 = vadd.f32 0.0, %v2454
      %2456 = vmatmul.f32.gmra.mxu0 %v2119
      %v2457 = vpop.f32.mrf.mxu0
      %v2458 = vadd.f32 0.0, %v2457
      %2459 = vmatmul.f32.gmra.mxu0 %v2121
      %v2460 = vpop.f32.mrf.mxu0
      %v2461 = vadd.f32 0.0, %v2460
      %2462 = vmatmul.f32.gmra.mxu0 %v2123
      %v2463 = vpop.f32.mrf.mxu0
      %v2464 = vadd.f32 0.0, %v2463
      %2465 = vmatmul.f32.gmra.mxu0 %v2125
      %v2466 = vpop.f32.mrf.mxu0
      %v2467 = vadd.f32 0.0, %v2466
      %2468 = vmatmul.f32.gmra.mxu0 %v2127
      %v2469 = vpop.f32.mrf.mxu0
      %v2470 = vadd.f32 0.0, %v2469
      %2471 = vmatmul.f32.gmra.mxu0 %v2129
      %v2472 = vpop.f32.mrf.mxu0
      %v2473 = vadd.f32 0.0, %v2472
      %2474 = vmatmul.f32.gmra.mxu0 %v2131
      %v2475 = vpop.f32.mrf.mxu0
      %v2476 = vadd.f32 0.0, %v2475
      %2477 = vmatmul.f32.gmra.mxu0 %v2133
      %v2478 = vpop.f32.mrf.mxu0
      %v2479 = vadd.f32 0.0, %v2478
      %2480 = vmatmul.f32.gmra.mxu0 %v2135
      %v2481 = vpop.f32.mrf.mxu0
      %v2482 = vadd.f32 0.0, %v2481
      %2483 = vmatmul.f32.gmra.mxu0 %v2137
      %v2484 = vpop.f32.mrf.mxu0
      %v2485 = vadd.f32 0.0, %v2484
      %2486 = vmatmul.f32.gmra.mxu0 %v2139
      %v2487 = vpop.f32.mrf.mxu0
      %v2488 = vadd.f32 0.0, %v2487
      %2489 = vmatmul.f32.gmra.mxu0 %v2141
      %v2490 = vpop.f32.mrf.mxu0
      %v2491 = vadd.f32 0.0, %v2490
      %2492 = vmatmul.f32.gmra.mxu0 %v2143
      %v2493 = vpop.f32.mrf.mxu0
      %v2494 = vadd.f32 0.0, %v2493
      %2495 = vmatmul.f32.gmra.mxu0 %v2145
      %v2496 = vpop.f32.mrf.mxu0
      %v2497 = vadd.f32 0.0, %v2496
      %2498 = vmatmul.f32.gmra.mxu0 %v2147
      %v2499 = vpop.f32.mrf.mxu0
      %v2500 = vadd.f32 0.0, %v2499
      %2501 = vmatmul.f32.gmra.mxu0 %v2149
      %v2502 = vpop.f32.mrf.mxu0
      %v2503 = vadd.f32 0.0, %v2502
      %2504 = vmatmul.f32.gmra.mxu0 %v2151
      %v2505 = vpop.f32.mrf.mxu0
      %v2506 = vadd.f32 0.0, %v2505
      %2507 = vmatmul.f32.gmra.mxu0 %v2153
      %v2508 = vpop.f32.mrf.mxu0
      %v2509 = vadd.f32 0.0, %v2508
      %2510 = vmatmul.f32.gmra.mxu0 %v2155
      %v2511 = vpop.f32.mrf.mxu0
      %v2512 = vadd.f32 0.0, %v2511
      %2513 = vmatmul.f32.gmra.mxu0 %v2157
      %v2514 = vpop.f32.mrf.mxu0
      %v2515 = vadd.f32 0.0, %v2514
      %2516 = vmatmul.f32.gmra.mxu0 %v2159
      %v2517 = vpop.f32.mrf.mxu0
      %v2518 = vadd.f32 0.0, %v2517
      %2519 = vmatmul.f32.gmra.mxu0 %v2161
      %v2520 = vpop.f32.mrf.mxu0
      %v2521 = vadd.f32 0.0, %v2520
      %2522 = vmatmul.f32.gmra.mxu0 %v2163
      %v2523 = vpop.f32.mrf.mxu0
      %v2524 = vadd.f32 0.0, %v2523
      %2525 = vmatmul.f32.gmra.mxu0 %v2165
      %v2526 = vpop.f32.mrf.mxu0
      %v2527 = vadd.f32 0.0, %v2526
      %2528 = vmatmul.f32.gmra.mxu0 %v2167
      %v2529 = vpop.f32.mrf.mxu0
      %v2530 = vadd.f32 0.0, %v2529
      %2531 = vmatmul.f32.gmra.mxu0 %v2169
      %v2532 = vpop.f32.mrf.mxu0
      %v2533 = vadd.f32 0.0, %v2532
      %2534 = vmatmul.f32.gmra.mxu0 %v2171
      %v2535 = vpop.f32.mrf.mxu0
      %v2536 = vadd.f32 0.0, %v2535
      %2537 = vmatmul.f32.gmra.mxu0 %v2173
      %v2538 = vpop.f32.mrf.mxu0
      %v2539 = vadd.f32 0.0, %v2538
      %2540 = vmatmul.f32.gmra.mxu0 %v2175
      %v2541 = vpop.f32.mrf.mxu0
      %v2542 = vadd.f32 0.0, %v2541
      %2543 = vmatmul.f32.gmra.mxu0 %v2177
      %v2544 = vpop.f32.mrf.mxu0
      %v2545 = vadd.f32 0.0, %v2544
      %2546 = vmatmul.f32.gmra.mxu0 %v2179
      %v2547 = vpop.f32.mrf.mxu0
      %v2548 = vadd.f32 0.0, %v2547
      %2549 = vmatmul.f32.gmra.mxu0 %v2181
      %v2550 = vpop.f32.mrf.mxu0
      %v2551 = vadd.f32 0.0, %v2550
      %2552 = vmatmul.f32.gmra.mxu0 %v2427
      %v2553 = vpop.f32.mrf.mxu0
      %v2554 = vadd.f32 0.0, %v2553
      %2555 = vmatmul.f32.gmra.mxu0 %v2429
      %v2556 = vpop.f32.mrf.mxu0
      %v2557 = vadd.f32 0.0, %v2556
      %2558 = vdwg.mxu0
      %v2559 = vadd.f32 %v2383, %v2452
      %v2560 = vadd.f32 %v2384, %v2455
      %v2561 = vadd.f32 %v2385, %v2458
      %v2562 = vadd.f32 %v2386, %v2461
      %v2563 = vadd.f32 %v2387, %v2464
      %v2564 = vadd.f32 %v2388, %v2467
      %v2565 = vadd.f32 %v2389, %v2470
      %v2566 = vadd.f32 %v2390, %v2473
      %v2567 = vadd.f32 %v2391, %v2476
      %v2568 = vadd.f32 %v2392, %v2479
      %v2569 = vadd.f32 %v2393, %v2482
      %v2570 = vadd.f32 %v2394, %v2485
      %v2571 = vadd.f32 %v2395, %v2488
      %v2572 = vadd.f32 %v2396, %v2491
      %v2573 = vadd.f32 %v2397, %v2494
      %v2574 = vadd.f32 %v2398, %v2497
      %v2575 = vadd.f32 %v2399, %v2500
      %v2576 = vadd.f32 %v2400, %v2503
      %v2577 = vadd.f32 %v2401, %v2506
      %v2578 = vadd.f32 %v2402, %v2509
      %v2579 = vadd.f32 %v2403, %v2512
      %v2580 = vadd.f32 %v2404, %v2515
      %v2581 = vadd.f32 %v2405, %v2518
      %v2582 = vadd.f32 %v2406, %v2521
      %v2583 = vadd.f32 %v2407, %v2524
      %v2584 = vadd.f32 %v2408, %v2527
      %v2585 = vadd.f32 %v2409, %v2530
      %v2586 = vadd.f32 %v2410, %v2533
      %v2587 = vadd.f32 %v2411, %v2536
      %v2588 = vadd.f32 %v2412, %v2539
      %v2589 = vadd.f32 %v2413, %v2542
      %v2590 = vadd.f32 %v2414, %v2545
      %v2591 = vadd.f32 %v2415, %v2548
      %v2592 = vadd.f32 %v2416, %v2551
      %v2593 = vadd.f32 %v2417, %v2554
      %v2594 = vadd.f32 %v2418, %v2557
      %2595 = vst [vmem:[#allocation2] sm:$0xff] %v2559
      %2596 = vst [vmem:[#allocation2 + $0x8] sm:$0xff] %v2560
      %2597 = vst [vmem:[#allocation2 + $0x10] sm:$0xff] %v2561
      %2598 = vst [vmem:[#allocation2 + $0x18] sm:$0xff] %v2562
      %2599 = vst [vmem:[#allocation2 + $0x20] sm:$0xff] %v2563
      %2600 = vst [vmem:[#allocation2 + $0x28] sm:$0xff] %v2564
      %2601 = vst [vmem:[#allocation2 + $0x30] sm:$0xff] %v2565
      %2602 = vst [vmem:[#allocation2 + $0x38] sm:$0xff] %v2566
      %2603 = vst [vmem:[#allocation2 + $0x40] sm:$0xff] %v2567
      %2604 = vst [vmem:[#allocation2 + $0x48] sm:$0xff] %v2568
      %2605 = vst [vmem:[#allocation2 + $0x50] sm:$0xff] %v2569
      %2606 = vst [vmem:[#allocation2 + $0x58] sm:$0xff] %v2570
      %2607 = vst [vmem:[#allocation2 + $0x60] sm:$0xff] %v2571
      %2608 = vst [vmem:[#allocation2 + $0x68] sm:$0xff] %v2572
      %2609 = vst [vmem:[#allocation2 + $0x70] sm:$0xff] %v2573
      %2610 = vst [vmem:[#allocation2 + $0x78] sm:$0xff] %v2574
      %2611 = vst [vmem:[#allocation2 + $0x80] sm:$0xff] %v2575
      %2612 = vst [vmem:[#allocation2 + $0x88] sm:$0xff] %v2576
      %2613 = vst [vmem:[#allocation2 + $0x90] sm:$0xff] %v2577
      %2614 = vst [vmem:[#allocation2 + $0x98] sm:$0xff] %v2578
      %2615 = vst [vmem:[#allocation2 + $0xa0] sm:$0xff] %v2579
      %2616 = vst [vmem:[#allocation2 + $0xa8] sm:$0xff] %v2580
      %2617 = vst [vmem:[#allocation2 + $0xb0] sm:$0xff] %v2581
      %2618 = vst [vmem:[#allocation2 + $0xb8] sm:$0xff] %v2582
      %2619 = vst [vmem:[#allocation2 + $0xc0] sm:$0xff] %v2583
      %2620 = vst [vmem:[#allocation2 + $0xc8] sm:$0xff] %v2584
      %2621 = vst [vmem:[#allocation2 + $0xd0] sm:$0xff] %v2585
      %2622 = vst [vmem:[#allocation2 + $0xd8] sm:$0xff] %v2586
      %2623 = vst [vmem:[#allocation2 + $0xe0] sm:$0xff] %v2587
      %2624 = vst [vmem:[#allocation2 + $0xe8] sm:$0xff] %v2588
      %2625 = vst [vmem:[#allocation2 + $0xf0] sm:$0xff] %v2589
      %2626 = vst [vmem:[#allocation2 + $0xf8] sm:$0xff] %v2590
      %2627 = vst [vmem:[#allocation2 + $0x100] sm:$0xff] %v2591
      %2628 = vst [vmem:[#allocation2 + $0x108] sm:$0xff] %v2592
      %2629 = vst [vmem:[#allocation2 + $0x110] sm:$0xff] %v2593
      %2630 = vst [vmem:[#allocation2 + $0x118] sm:$0xff] %v2594
      %v2631 = vld [vmem:[#allocation2] sm:$0xff]
      %v2632 = vld [vmem:[#allocation2 + $0x8] sm:$0xff]
      %v2633 = vld [vmem:[#allocation2 + $0x10] sm:$0xff]
      %v2634 = vld [vmem:[#allocation2 + $0x18] sm:$0xff]
      %v2635 = vld [vmem:[#allocation2 + $0x20] sm:$0xff]
      %v2636 = vld [vmem:[#allocation2 + $0x28] sm:$0xff]
      %v2637 = vld [vmem:[#allocation2 + $0x30] sm:$0xff]
      %v2638 = vld [vmem:[#allocation2 + $0x38] sm:$0xff]
      %v2639 = vld [vmem:[#allocation2 + $0x40] sm:$0xff]
      %v2640 = vld [vmem:[#allocation2 + $0x48] sm:$0xff]
      %v2641 = vld [vmem:[#allocation2 + $0x50] sm:$0xff]
      %v2642 = vld [vmem:[#allocation2 + $0x58] sm:$0xff]
      %v2643 = vld [vmem:[#allocation2 + $0x60] sm:$0xff]
      %v2644 = vld [vmem:[#allocation2 + $0x68] sm:$0xff]
      %v2645 = vld [vmem:[#allocation2 + $0x70] sm:$0xff]
      %v2646 = vld [vmem:[#allocation2 + $0x78] sm:$0xff]
      %v2647 = vld [vmem:[#allocation2 + $0x80] sm:$0xff]
      %v2648 = vld [vmem:[#allocation2 + $0x88] sm:$0xff]
      %v2649 = vld [vmem:[#allocation2 + $0x90] sm:$0xff]
      %v2650 = vld [vmem:[#allocation2 + $0x98] sm:$0xff]
      %v2651 = vld [vmem:[#allocation2 + $0xa0] sm:$0xff]
      %v2652 = vld [vmem:[#allocation2 + $0xa8] sm:$0xff]
      %v2653 = vld [vmem:[#allocation2 + $0xb0] sm:$0xff]
      %v2654 = vld [vmem:[#allocation2 + $0xb8] sm:$0xff]
      %v2655 = vld [vmem:[#allocation2 + $0xc0] sm:$0xff]
      %v2656 = vld [vmem:[#allocation2 + $0xc8] sm:$0xff]
      %v2657 = vld [vmem:[#allocation2 + $0xd0] sm:$0xff]
      %v2658 = vld [vmem:[#allocation2 + $0xd8] sm:$0xff]
      %v2659 = vld [vmem:[#allocation2 + $0xe0] sm:$0xff]
      %v2660 = vld [vmem:[#allocation2 + $0xe8] sm:$0xff]
      %v2661 = vld [vmem:[#allocation2 + $0xf0] sm:$0xff]
      %v2662 = vld [vmem:[#allocation2 + $0xf8] sm:$0xff]
      %v2663 = vld [vmem:[#allocation2 + $0x100] sm:$0xff]
      %v2664 = vld [vmem:[#allocation2 + $0x108] sm:$0xff]
      %v2665 = vld [vmem:[#allocation2 + $0x110] sm:$0xff]
      %v2666 = vld [vmem:[#allocation2 + $0x118] sm:$0xff]
      %s2667 = scalar_lea.vmem %s1, 28
      %v2668 = vld [vmem:[%s2667] sm:$0xf]
      %vm2669 = vcmask 1042432
      %v2670 = vrot.slane %v287, 5
      %v2671 = vrot.slane %v288, 5
      %v2672 = vsel %vm2669, %v2670, %v2671
      %v2673 = vrot.slane %v289, 5
      %v2674 = vsel %vm2669, %v2671, %v2673
      %v2675 = vrot.slane %v290, 5
      %v2676 = vsel %vm2669, %v2673, %v2675
      %v2677 = vrot.slane %v291, 5
      %v2678 = vsel %vm2669, %v2675, %v2677
      %v2679 = vrot.slane %v292, 5
      %v2680 = vsel %vm2669, %v2677, %v2679
      %v2681 = vrot.slane %v293, 5
      %v2682 = vsel %vm2669, %v2679, %v2681
      %v2683 = vrot.slane %v294, 5
      %v2684 = vsel %vm2669, %v2681, %v2683
      %v2685 = vrot.slane %v295, 5
      %v2686 = vsel %vm2669, %v2683, %v2685
      %v2687 = vrot.slane %v296, 5
      %v2688 = vsel %vm2669, %v2685, %v2687
      %v2689 = vrot.slane %v297, 5
      %v2690 = vsel %vm2669, %v2687, %v2689
      %v2691 = vrot.slane %v298, 5
      %v2692 = vsel %vm2669, %v2689, %v2691
      %v2693 = vrot.slane %v299, 5
      %v2694 = vsel %vm2669, %v2691, %v2693
      %v2695 = vrot.slane %v300, 5
      %v2696 = vsel %vm2669, %v2693, %v2695
      %v2697 = vrot.slane %v301, 5
      %v2698 = vsel %vm2669, %v2695, %v2697
      %v2699 = vrot.slane %v302, 5
      %v2700 = vsel %vm2669, %v2697, %v2699
      %v2701 = vrot.slane %v303, 5
      %v2702 = vsel %vm2669, %v2699, %v2701
      %v2703 = vrot.slane %v304, 5
      %v2704 = vsel %vm2669, %v2701, %v2703
      %v2705 = vrot.slane %v305, 5
      %v2706 = vsel %vm2669, %v2703, %v2705
      %v2707 = vrot.slane %v306, 5
      %v2708 = vsel %vm2669, %v2705, %v2707
      %v2709 = vrot.slane %v307, 5
      %v2710 = vsel %vm2669, %v2707, %v2709
      %v2711 = vrot.slane %v308, 5
      %v2712 = vsel %vm2669, %v2709, %v2711
      %v2713 = vrot.slane %v309, 5
      %v2714 = vsel %vm2669, %v2711, %v2713
      %v2715 = vrot.slane %v310, 5
      %v2716 = vsel %vm2669, %v2713, %v2715
      %v2717 = vrot.slane %v311, 5
      %v2718 = vsel %vm2669, %v2715, %v2717
      %v2719 = vrot.slane %v312, 5
      %v2720 = vsel %vm2669, %v2717, %v2719
      %v2721 = vrot.slane %v313, 5
      %v2722 = vsel %vm2669, %v2719, %v2721
      %v2723 = vrot.slane %v314, 5
      %v2724 = vsel %vm2669, %v2721, %v2723
      %v2725 = vrot.slane %v315, 5
      %v2726 = vsel %vm2669, %v2723, %v2725
      %v2727 = vrot.slane %v316, 5
      %v2728 = vsel %vm2669, %v2725, %v2727
      %v2729 = vrot.slane %v317, 5
      %v2730 = vsel %vm2669, %v2727, %v2729
      %v2731 = vrot.slane %v318, 5
      %v2732 = vsel %vm2669, %v2729, %v2731
      %v2733 = vrot.slane %v319, 5
      %v2734 = vsel %vm2669, %v2731, %v2733
      %v2735 = vrot.slane %v320, 5
      %v2736 = vsel %vm2669, %v2733, %v2735
      %v2737 = vrot.slane %v321, 5
      %v2738 = vsel %vm2669, %v2735, %v2737
      %v2739 = vrot.slane %v322, 5
      %v2740 = vsel %vm2669, %v2737, %v2739
      %v2741 = vrot.slane %v323, 5
      %v2742 = vsel %vm2669, %v2739, %v2741
      %v2743 = vsel %vm325, %v2672, 0
      %v2745 = vsel %vm325, %v2674, 0
      %v2747 = vsel %vm325, %v2676, 0
      %v2749 = vsel %vm325, %v2678, 0
      %v2751 = vsel %vm325, %v2680, 0
      %v2753 = vsel %vm325, %v2682, 0
      %v2755 = vsel %vm325, %v2684, 0
      %v2757 = vsel %vm325, %v2686, 0
      %v2759 = vsel %vm325, %v2688, 0
      %v2761 = vsel %vm325, %v2690, 0
      %v2763 = vsel %vm325, %v2692, 0
      %v2765 = vsel %vm325, %v2694, 0
      %v2767 = vsel %vm325, %v2696, 0
      %v2769 = vsel %vm325, %v2698, 0
      %v2771 = vsel %vm325, %v2700, 0
      %v2773 = vsel %vm325, %v2702, 0
      %v2775 = vsel %vm325, %v2704, 0
      %v2777 = vsel %vm325, %v2706, 0
      %v2779 = vsel %vm325, %v2708, 0
      %v2781 = vsel %vm325, %v2710, 0
      %v2783 = vsel %vm325, %v2712, 0
      %v2785 = vsel %vm325, %v2714, 0
      %v2787 = vsel %vm325, %v2716, 0
      %v2789 = vsel %vm325, %v2718, 0
      %v2791 = vsel %vm325, %v2720, 0
      %v2793 = vsel %vm325, %v2722, 0
      %v2795 = vsel %vm325, %v2724, 0
      %v2797 = vsel %vm325, %v2726, 0
      %v2799 = vsel %vm325, %v2728, 0
      %v2801 = vsel %vm325, %v2730, 0
      %v2803 = vsel %vm325, %v2732, 0
      %v2805 = vsel %vm325, %v2734, 0
      %v2807 = vsel %vm325, %v2736, 0
      %v2809 = vsel %vm325, %v2738, 0
      %v2811 = vsel %vm325, %v2740, 0
      %v2813 = vsel %vm325, %v2742, 0
      %v2816 = vsel %vm434, %v2668, 0
      %2818 = vmatpush.msra.mxu0 0.0
      %2819 = vmatpush.msra.mxu0 0.0
      %2820 = vmatpush.msra.mxu0 0.0
      %2821 = vmatpush.msra.mxu0 0.0
      %2822 = vmatpush.msra.mxu0 0.0
      %2823 = vmatpush.msra.mxu0 0.0
      %2824 = vmatpush.msra.mxu0 0.0
      %2825 = vmatpush.msra.mxu0 0.0
      %2826 = vmatpush.msra.mxu0 0.0
      %2827 = vmatpush.msra.mxu0 0.0
      %2828 = vmatpush.msra.mxu0 0.0
      %2829 = vmatpush.msra.mxu0 0.0
      %2830 = vmatpush.msra.mxu0 0.0
      %2831 = vmatpush.msra.mxu0 0.0
      %2832 = vmatpush.msra.mxu0 0.0
      %2833 = vmatpush.msra.mxu0 %v2816
      %2834 = vmatmul.f32.gmra.mxu0 %v2743
      %v2835 = vpop.f32.mrf.mxu0
      %v2836 = vadd.f32 0.0, %v2835
      %2837 = vmatmul.f32.gmra.mxu0 %v2745
      %v2838 = vpop.f32.mrf.mxu0
      %v2839 = vadd.f32 0.0, %v2838
      %2840 = vmatmul.f32.gmra.mxu0 %v2747
      %v2841 = vpop.f32.mrf.mxu0
      %v2842 = vadd.f32 0.0, %v2841
      %2843 = vmatmul.f32.gmra.mxu0 %v2749
      %v2844 = vpop.f32.mrf.mxu0
      %v2845 = vadd.f32 0.0, %v2844
      %2846 = vmatmul.f32.gmra.mxu0 %v2751
      %v2847 = vpop.f32.mrf.mxu0
      %v2848 = vadd.f32 0.0, %v2847
      %2849 = vmatmul.f32.gmra.mxu0 %v2753
      %v2850 = vpop.f32.mrf.mxu0
      %v2851 = vadd.f32 0.0, %v2850
      %2852 = vmatmul.f32.gmra.mxu0 %v2755
      %v2853 = vpop.f32.mrf.mxu0
      %v2854 = vadd.f32 0.0, %v2853
      %2855 = vmatmul.f32.gmra.mxu0 %v2757
      %v2856 = vpop.f32.mrf.mxu0
      %v2857 = vadd.f32 0.0, %v2856
      %2858 = vmatmul.f32.gmra.mxu0 %v2759
      %v2859 = vpop.f32.mrf.mxu0
      %v2860 = vadd.f32 0.0, %v2859
      %2861 = vmatmul.f32.gmra.mxu0 %v2761
      %v2862 = vpop.f32.mrf.mxu0
      %v2863 = vadd.f32 0.0, %v2862
      %2864 = vmatmul.f32.gmra.mxu0 %v2763
      %v2865 = vpop.f32.mrf.mxu0
      %v2866 = vadd.f32 0.0, %v2865
      %2867 = vmatmul.f32.gmra.mxu0 %v2765
      %v2868 = vpop.f32.mrf.mxu0
      %v2869 = vadd.f32 0.0, %v2868
      %2870 = vmatmul.f32.gmra.mxu0 %v2767
      %v2871 = vpop.f32.mrf.mxu0
      %v2872 = vadd.f32 0.0, %v2871
      %2873 = vmatmul.f32.gmra.mxu0 %v2769
      %v2874 = vpop.f32.mrf.mxu0
      %v2875 = vadd.f32 0.0, %v2874
      %2876 = vmatmul.f32.gmra.mxu0 %v2771
      %v2877 = vpop.f32.mrf.mxu0
      %v2878 = vadd.f32 0.0, %v2877
      %2879 = vmatmul.f32.gmra.mxu0 %v2773
      %v2880 = vpop.f32.mrf.mxu0
      %v2881 = vadd.f32 0.0, %v2880
      %2882 = vmatmul.f32.gmra.mxu0 %v2775
      %v2883 = vpop.f32.mrf.mxu0
      %v2884 = vadd.f32 0.0, %v2883
      %2885 = vmatmul.f32.gmra.mxu0 %v2777
      %v2886 = vpop.f32.mrf.mxu0
      %v2887 = vadd.f32 0.0, %v2886
      %2888 = vmatmul.f32.gmra.mxu0 %v2779
      %v2889 = vpop.f32.mrf.mxu0
      %v2890 = vadd.f32 0.0, %v2889
      %2891 = vmatmul.f32.gmra.mxu0 %v2781
      %v2892 = vpop.f32.mrf.mxu0
      %v2893 = vadd.f32 0.0, %v2892
      %2894 = vmatmul.f32.gmra.mxu0 %v2783
      %v2895 = vpop.f32.mrf.mxu0
      %v2896 = vadd.f32 0.0, %v2895
      %2897 = vmatmul.f32.gmra.mxu0 %v2785
      %v2898 = vpop.f32.mrf.mxu0
      %v2899 = vadd.f32 0.0, %v2898
      %2900 = vmatmul.f32.gmra.mxu0 %v2787
      %v2901 = vpop.f32.mrf.mxu0
      %v2902 = vadd.f32 0.0, %v2901
      %2903 = vmatmul.f32.gmra.mxu0 %v2789
      %v2904 = vpop.f32.mrf.mxu0
      %v2905 = vadd.f32 0.0, %v2904
      %2906 = vmatmul.f32.gmra.mxu0 %v2791
      %v2907 = vpop.f32.mrf.mxu0
      %v2908 = vadd.f32 0.0, %v2907
      %2909 = vmatmul.f32.gmra.mxu0 %v2793
      %v2910 = vpop.f32.mrf.mxu0
      %v2911 = vadd.f32 0.0, %v2910
      %2912 = vmatmul.f32.gmra.mxu0 %v2795
      %v2913 = vpop.f32.mrf.mxu0
      %v2914 = vadd.f32 0.0, %v2913
      %2915 = vmatmul.f32.gmra.mxu0 %v2797
      %v2916 = vpop.f32.mrf.mxu0
      %v2917 = vadd.f32 0.0, %v2916
      %2918 = vmatmul.f32.gmra.mxu0 %v2799
      %v2919 = vpop.f32.mrf.mxu0
      %v2920 = vadd.f32 0.0, %v2919
      %2921 = vmatmul.f32.gmra.mxu0 %v2801
      %v2922 = vpop.f32.mrf.mxu0
      %v2923 = vadd.f32 0.0, %v2922
      %2924 = vmatmul.f32.gmra.mxu0 %v2803
      %v2925 = vpop.f32.mrf.mxu0
      %v2926 = vadd.f32 0.0, %v2925
      %2927 = vmatmul.f32.gmra.mxu0 %v2805
      %v2928 = vpop.f32.mrf.mxu0
      %v2929 = vadd.f32 0.0, %v2928
      %2930 = vmatmul.f32.gmra.mxu0 %v2807
      %v2931 = vpop.f32.mrf.mxu0
      %v2932 = vadd.f32 0.0, %v2931
      %2933 = vmatmul.f32.gmra.mxu0 %v2809
      %v2934 = vpop.f32.mrf.mxu0
      %v2935 = vadd.f32 0.0, %v2934
      %2936 = vmatmul.f32.gmra.mxu0 %v2811
      %v2937 = vpop.f32.mrf.mxu0
      %v2938 = vadd.f32 0.0, %v2937
      %2939 = vmatmul.f32.gmra.mxu0 %v2813
      %v2940 = vpop.f32.mrf.mxu0
      %v2941 = vadd.f32 0.0, %v2940
      %2942 = vdwg.mxu0
      %v2943 = vadd.f32 %v2631, %v2836
      %v2944 = vadd.f32 %v2632, %v2839
      %v2945 = vadd.f32 %v2633, %v2842
      %v2946 = vadd.f32 %v2634, %v2845
      %v2947 = vadd.f32 %v2635, %v2848
      %v2948 = vadd.f32 %v2636, %v2851
      %v2949 = vadd.f32 %v2637, %v2854
      %v2950 = vadd.f32 %v2638, %v2857
      %v2951 = vadd.f32 %v2639, %v2860
      %v2952 = vadd.f32 %v2640, %v2863
      %v2953 = vadd.f32 %v2641, %v2866
      %v2954 = vadd.f32 %v2642, %v2869
      %v2955 = vadd.f32 %v2643, %v2872
      %v2956 = vadd.f32 %v2644, %v2875
      %v2957 = vadd.f32 %v2645, %v2878
      %v2958 = vadd.f32 %v2646, %v2881
      %v2959 = vadd.f32 %v2647, %v2884
      %v2960 = vadd.f32 %v2648, %v2887
      %v2961 = vadd.f32 %v2649, %v2890
      %v2962 = vadd.f32 %v2650, %v2893
      %v2963 = vadd.f32 %v2651, %v2896
      %v2964 = vadd.f32 %v2652, %v2899
      %v2965 = vadd.f32 %v2653, %v2902
      %v2966 = vadd.f32 %v2654, %v2905
      %v2967 = vadd.f32 %v2655, %v2908
      %v2968 = vadd.f32 %v2656, %v2911
      %v2969 = vadd.f32 %v2657, %v2914
      %v2970 = vadd.f32 %v2658, %v2917
      %v2971 = vadd.f32 %v2659, %v2920
      %v2972 = vadd.f32 %v2660, %v2923
      %v2973 = vadd.f32 %v2661, %v2926
      %v2974 = vadd.f32 %v2662, %v2929
      %v2975 = vadd.f32 %v2663, %v2932
      %v2976 = vadd.f32 %v2664, %v2935
      %v2977 = vadd.f32 %v2665, %v2938
      %v2978 = vadd.f32 %v2666, %v2941
      %2979 = vst [vmem:[#allocation2] sm:$0xff] %v2943
      %2980 = vst [vmem:[#allocation2 + $0x8] sm:$0xff] %v2944
      %2981 = vst [vmem:[#allocation2 + $0x10] sm:$0xff] %v2945
      %2982 = vst [vmem:[#allocation2 + $0x18] sm:$0xff] %v2946
      %2983 = vst [vmem:[#allocation2 + $0x20] sm:$0xff] %v2947
      %2984 = vst [vmem:[#allocation2 + $0x28] sm:$0xff] %v2948
      %2985 = vst [vmem:[#allocation2 + $0x30] sm:$0xff] %v2949
      %2986 = vst [vmem:[#allocation2 + $0x38] sm:$0xff] %v2950
      %2987 = vst [vmem:[#allocation2 + $0x40] sm:$0xff] %v2951
      %2988 = vst [vmem:[#allocation2 + $0x48] sm:$0xff] %v2952
      %2989 = vst [vmem:[#allocation2 + $0x50] sm:$0xff] %v2953
      %2990 = vst [vmem:[#allocation2 + $0x58] sm:$0xff] %v2954
      %2991 = vst [vmem:[#allocation2 + $0x60] sm:$0xff] %v2955
      %2992 = vst [vmem:[#allocation2 + $0x68] sm:$0xff] %v2956
      %2993 = vst [vmem:[#allocation2 + $0x70] sm:$0xff] %v2957
      %2994 = vst [vmem:[#allocation2 + $0x78] sm:$0xff] %v2958
      %2995 = vst [vmem:[#allocation2 + $0x80] sm:$0xff] %v2959
      %2996 = vst [vmem:[#allocation2 + $0x88] sm:$0xff] %v2960
      %2997 = vst [vmem:[#allocation2 + $0x90] sm:$0xff] %v2961
      %2998 = vst [vmem:[#allocation2 + $0x98] sm:$0xff] %v2962
      %2999 = vst [vmem:[#allocation2 + $0xa0] sm:$0xff] %v2963
      %3000 = vst [vmem:[#allocation2 + $0xa8] sm:$0xff] %v2964
      %3001 = vst [vmem:[#allocation2 + $0xb0] sm:$0xff] %v2965
      %3002 = vst [vmem:[#allocation2 + $0xb8] sm:$0xff] %v2966
      %3003 = vst [vmem:[#allocation2 + $0xc0] sm:$0xff] %v2967
      %3004 = vst [vmem:[#allocation2 + $0xc8] sm:$0xff] %v2968
      %3005 = vst [vmem:[#allocation2 + $0xd0] sm:$0xff] %v2969
      %3006 = vst [vmem:[#allocation2 + $0xd8] sm:$0xff] %v2970
      %3007 = vst [vmem:[#allocation2 + $0xe0] sm:$0xff] %v2971
      %3008 = vst [vmem:[#allocation2 + $0xe8] sm:$0xff] %v2972
      %3009 = vst [vmem:[#allocation2 + $0xf0] sm:$0xff] %v2973
      %3010 = vst [vmem:[#allocation2 + $0xf8] sm:$0xff] %v2974
      %3011 = vst [vmem:[#allocation2 + $0x100] sm:$0xff] %v2975
      %3012 = vst [vmem:[#allocation2 + $0x108] sm:$0xff] %v2976
      %3013 = vst [vmem:[#allocation2 + $0x110] sm:$0xff] %v2977
      %3014 = vst [vmem:[#allocation2 + $0x118] sm:$0xff] %v2978
      %v3015 = vld [vmem:[#allocation2] sm:$0xff]
      %v3016 = vld [vmem:[#allocation2 + $0x8] sm:$0xff]
      %v3017 = vld [vmem:[#allocation2 + $0x10] sm:$0xff]
      %v3018 = vld [vmem:[#allocation2 + $0x18] sm:$0xff]
      %v3019 = vld [vmem:[#allocation2 + $0x20] sm:$0xff]
      %v3020 = vld [vmem:[#allocation2 + $0x28] sm:$0xff]
      %v3021 = vld [vmem:[#allocation2 + $0x30] sm:$0xff]
      %v3022 = vld [vmem:[#allocation2 + $0x38] sm:$0xff]
      %v3023 = vld [vmem:[#allocation2 + $0x40] sm:$0xff]
      %v3024 = vld [vmem:[#allocation2 + $0x48] sm:$0xff]
      %v3025 = vld [vmem:[#allocation2 + $0x50] sm:$0xff]
      %v3026 = vld [vmem:[#allocation2 + $0x58] sm:$0xff]
      %v3027 = vld [vmem:[#allocation2 + $0x60] sm:$0xff]
      %v3028 = vld [vmem:[#allocation2 + $0x68] sm:$0xff]
      %v3029 = vld [vmem:[#allocation2 + $0x70] sm:$0xff]
      %v3030 = vld [vmem:[#allocation2 + $0x78] sm:$0xff]
      %v3031 = vld [vmem:[#allocation2 + $0x80] sm:$0xff]
      %v3032 = vld [vmem:[#allocation2 + $0x88] sm:$0xff]
      %v3033 = vld [vmem:[#allocation2 + $0x90] sm:$0xff]
      %v3034 = vld [vmem:[#allocation2 + $0x98] sm:$0xff]
      %v3035 = vld [vmem:[#allocation2 + $0xa0] sm:$0xff]
      %v3036 = vld [vmem:[#allocation2 + $0xa8] sm:$0xff]
      %v3037 = vld [vmem:[#allocation2 + $0xb0] sm:$0xff]
      %v3038 = vld [vmem:[#allocation2 + $0xb8] sm:$0xff]
      %v3039 = vld [vmem:[#allocation2 + $0xc0] sm:$0xff]
      %v3040 = vld [vmem:[#allocation2 + $0xc8] sm:$0xff]
      %v3041 = vld [vmem:[#allocation2 + $0xd0] sm:$0xff]
      %v3042 = vld [vmem:[#allocation2 + $0xd8] sm:$0xff]
      %v3043 = vld [vmem:[#allocation2 + $0xe0] sm:$0xff]
      %v3044 = vld [vmem:[#allocation2 + $0xe8] sm:$0xff]
      %v3045 = vld [vmem:[#allocation2 + $0xf0] sm:$0xff]
      %v3046 = vld [vmem:[#allocation2 + $0xf8] sm:$0xff]
      %v3047 = vld [vmem:[#allocation2 + $0x100] sm:$0xff]
      %v3048 = vld [vmem:[#allocation2 + $0x108] sm:$0xff]
      %v3049 = vld [vmem:[#allocation2 + $0x110] sm:$0xff]
      %v3050 = vld [vmem:[#allocation2 + $0x118] sm:$0xff]
      %s3051 = scalar_lea.vmem %s1, 32
      %v3052 = vld [vmem:[%s3051] sm:$0xf]
      %vm3053 = vcmask 1041408
      %v3054 = vrot.slane %v287, 6
      %v3055 = vrot.slane %v288, 6
      %v3056 = vsel %vm3053, %v3054, %v3055
      %v3057 = vrot.slane %v289, 6
      %v3058 = vsel %vm3053, %v3055, %v3057
      %v3059 = vrot.slane %v290, 6
      %v3060 = vsel %vm3053, %v3057, %v3059
      %v3061 = vrot.slane %v291, 6
      %v3062 = vsel %vm3053, %v3059, %v3061
      %v3063 = vrot.slane %v292, 6
      %v3064 = vsel %vm3053, %v3061, %v3063
      %v3065 = vrot.slane %v293, 6
      %v3066 = vsel %vm3053, %v3063, %v3065
      %v3067 = vrot.slane %v294, 6
      %v3068 = vsel %vm3053, %v3065, %v3067
      %v3069 = vrot.slane %v295, 6
      %v3070 = vsel %vm3053, %v3067, %v3069
      %v3071 = vrot.slane %v296, 6
      %v3072 = vsel %vm3053, %v3069, %v3071
      %v3073 = vrot.slane %v297, 6
      %v3074 = vsel %vm3053, %v3071, %v3073
      %v3075 = vrot.slane %v298, 6
      %v3076 = vsel %vm3053, %v3073, %v3075
      %v3077 = vrot.slane %v299, 6
      %v3078 = vsel %vm3053, %v3075, %v3077
      %v3079 = vrot.slane %v300, 6
      %v3080 = vsel %vm3053, %v3077, %v3079
      %v3081 = vrot.slane %v301, 6
      %v3082 = vsel %vm3053, %v3079, %v3081
      %v3083 = vrot.slane %v302, 6
      %v3084 = vsel %vm3053, %v3081, %v3083
      %v3085 = vrot.slane %v303, 6
      %v3086 = vsel %vm3053, %v3083, %v3085
      %v3087 = vrot.slane %v304, 6
      %v3088 = vsel %vm3053, %v3085, %v3087
      %v3089 = vrot.slane %v305, 6
      %v3090 = vsel %vm3053, %v3087, %v3089
      %v3091 = vrot.slane %v306, 6
      %v3092 = vsel %vm3053, %v3089, %v3091
      %v3093 = vrot.slane %v307, 6
      %v3094 = vsel %vm3053, %v3091, %v3093
      %v3095 = vrot.slane %v308, 6
      %v3096 = vsel %vm3053, %v3093, %v3095
      %v3097 = vrot.slane %v309, 6
      %v3098 = vsel %vm3053, %v3095, %v3097
      %v3099 = vrot.slane %v310, 6
      %v3100 = vsel %vm3053, %v3097, %v3099
      %v3101 = vrot.slane %v311, 6
      %v3102 = vsel %vm3053, %v3099, %v3101
      %v3103 = vrot.slane %v312, 6
      %v3104 = vsel %vm3053, %v3101, %v3103
      %v3105 = vrot.slane %v313, 6
      %v3106 = vsel %vm3053, %v3103, %v3105
      %v3107 = vrot.slane %v314, 6
      %v3108 = vsel %vm3053, %v3105, %v3107
      %v3109 = vrot.slane %v315, 6
      %v3110 = vsel %vm3053, %v3107, %v3109
      %v3111 = vrot.slane %v316, 6
      %v3112 = vsel %vm3053, %v3109, %v3111
      %v3113 = vrot.slane %v317, 6
      %v3114 = vsel %vm3053, %v3111, %v3113
      %v3115 = vrot.slane %v318, 6
      %v3116 = vsel %vm3053, %v3113, %v3115
      %v3117 = vrot.slane %v319, 6
      %v3118 = vsel %vm3053, %v3115, %v3117
      %v3119 = vrot.slane %v320, 6
      %v3120 = vsel %vm3053, %v3117, %v3119
      %v3121 = vrot.slane %v321, 6
      %v3122 = vsel %vm3053, %v3119, %v3121
      %v3123 = vrot.slane %v322, 6
      %v3124 = vsel %vm3053, %v3121, %v3123
      %v3125 = vrot.slane %v323, 6
      %v3126 = vsel %vm3053, %v3123, %v3125
      %v3127 = vsel %vm325, %v3056, 0
      %v3129 = vsel %vm325, %v3058, 0
      %v3131 = vsel %vm325, %v3060, 0
      %v3133 = vsel %vm325, %v3062, 0
      %v3135 = vsel %vm325, %v3064, 0
      %v3137 = vsel %vm325, %v3066, 0
      %v3139 = vsel %vm325, %v3068, 0
      %v3141 = vsel %vm325, %v3070, 0
      %v3143 = vsel %vm325, %v3072, 0
      %v3145 = vsel %vm325, %v3074, 0
      %v3147 = vsel %vm325, %v3076, 0
      %v3149 = vsel %vm325, %v3078, 0
      %v3151 = vsel %vm325, %v3080, 0
      %v3153 = vsel %vm325, %v3082, 0
      %v3155 = vsel %vm325, %v3084, 0
      %v3157 = vsel %vm325, %v3086, 0
      %v3159 = vsel %vm325, %v3088, 0
      %v3161 = vsel %vm325, %v3090, 0
      %v3163 = vsel %vm325, %v3092, 0
      %v3165 = vsel %vm325, %v3094, 0
      %v3167 = vsel %vm325, %v3096, 0
      %v3169 = vsel %vm325, %v3098, 0
      %v3171 = vsel %vm325, %v3100, 0
      %v3173 = vsel %vm325, %v3102, 0
      %v3175 = vsel %vm325, %v3104, 0
      %v3177 = vsel %vm325, %v3106, 0
      %v3179 = vsel %vm325, %v3108, 0
      %v3181 = vsel %vm325, %v3110, 0
      %v3183 = vsel %vm325, %v3112, 0
      %v3185 = vsel %vm325, %v3114, 0
      %v3187 = vsel %vm325, %v3116, 0
      %v3189 = vsel %vm325, %v3118, 0
      %v3191 = vsel %vm325, %v3120, 0
      %v3193 = vsel %vm325, %v3122, 0
      %v3195 = vsel %vm325, %v3124, 0
      %v3197 = vsel %vm325, %v3126, 0
      %v3200 = vsel %vm434, %v3052, 0
      %3202 = vmatpush.msra.mxu0 0.0
      %3203 = vmatpush.msra.mxu0 0.0
      %3204 = vmatpush.msra.mxu0 0.0
      %3205 = vmatpush.msra.mxu0 0.0
      %3206 = vmatpush.msra.mxu0 0.0
      %3207 = vmatpush.msra.mxu0 0.0
      %3208 = vmatpush.msra.mxu0 0.0
      %3209 = vmatpush.msra.mxu0 0.0
      %3210 = vmatpush.msra.mxu0 0.0
      %3211 = vmatpush.msra.mxu0 0.0
      %3212 = vmatpush.msra.mxu0 0.0
      %3213 = vmatpush.msra.mxu0 0.0
      %3214 = vmatpush.msra.mxu0 0.0
      %3215 = vmatpush.msra.mxu0 0.0
      %3216 = vmatpush.msra.mxu0 0.0
      %3217 = vmatpush.msra.mxu0 %v3200
      %3218 = vmatmul.f32.gmra.mxu0 %v3127
      %v3219 = vpop.f32.mrf.mxu0
      %v3220 = vadd.f32 0.0, %v3219
      %3221 = vmatmul.f32.gmra.mxu0 %v3129
      %v3222 = vpop.f32.mrf.mxu0
      %v3223 = vadd.f32 0.0, %v3222
      %3224 = vmatmul.f32.gmra.mxu0 %v3131
      %v3225 = vpop.f32.mrf.mxu0
      %v3226 = vadd.f32 0.0, %v3225
      %3227 = vmatmul.f32.gmra.mxu0 %v3133
      %v3228 = vpop.f32.mrf.mxu0
      %v3229 = vadd.f32 0.0, %v3228
      %3230 = vmatmul.f32.gmra.mxu0 %v3135
      %v3231 = vpop.f32.mrf.mxu0
      %v3232 = vadd.f32 0.0, %v3231
      %3233 = vmatmul.f32.gmra.mxu0 %v3137
      %v3234 = vpop.f32.mrf.mxu0
      %v3235 = vadd.f32 0.0, %v3234
      %3236 = vmatmul.f32.gmra.mxu0 %v3139
      %v3237 = vpop.f32.mrf.mxu0
      %v3238 = vadd.f32 0.0, %v3237
      %3239 = vmatmul.f32.gmra.mxu0 %v3141
      %v3240 = vpop.f32.mrf.mxu0
      %v3241 = vadd.f32 0.0, %v3240
      %3242 = vmatmul.f32.gmra.mxu0 %v3143
      %v3243 = vpop.f32.mrf.mxu0
      %v3244 = vadd.f32 0.0, %v3243
      %3245 = vmatmul.f32.gmra.mxu0 %v3145
      %v3246 = vpop.f32.mrf.mxu0
      %v3247 = vadd.f32 0.0, %v3246
      %3248 = vmatmul.f32.gmra.mxu0 %v3147
      %v3249 = vpop.f32.mrf.mxu0
      %v3250 = vadd.f32 0.0, %v3249
      %3251 = vmatmul.f32.gmra.mxu0 %v3149
      %v3252 = vpop.f32.mrf.mxu0
      %v3253 = vadd.f32 0.0, %v3252
      %3254 = vmatmul.f32.gmra.mxu0 %v3151
      %v3255 = vpop.f32.mrf.mxu0
      %v3256 = vadd.f32 0.0, %v3255
      %3257 = vmatmul.f32.gmra.mxu0 %v3153
      %v3258 = vpop.f32.mrf.mxu0
      %v3259 = vadd.f32 0.0, %v3258
      %3260 = vmatmul.f32.gmra.mxu0 %v3155
      %v3261 = vpop.f32.mrf.mxu0
      %v3262 = vadd.f32 0.0, %v3261
      %3263 = vmatmul.f32.gmra.mxu0 %v3157
      %v3264 = vpop.f32.mrf.mxu0
      %v3265 = vadd.f32 0.0, %v3264
      %3266 = vmatmul.f32.gmra.mxu0 %v3159
      %v3267 = vpop.f32.mrf.mxu0
      %v3268 = vadd.f32 0.0, %v3267
      %3269 = vmatmul.f32.gmra.mxu0 %v3161
      %v3270 = vpop.f32.mrf.mxu0
      %v3271 = vadd.f32 0.0, %v3270
      %3272 = vmatmul.f32.gmra.mxu0 %v3163
      %v3273 = vpop.f32.mrf.mxu0
      %v3274 = vadd.f32 0.0, %v3273
      %3275 = vmatmul.f32.gmra.mxu0 %v3165
      %v3276 = vpop.f32.mrf.mxu0
      %v3277 = vadd.f32 0.0, %v3276
      %3278 = vmatmul.f32.gmra.mxu0 %v3167
      %v3279 = vpop.f32.mrf.mxu0
      %v3280 = vadd.f32 0.0, %v3279
      %3281 = vmatmul.f32.gmra.mxu0 %v3169
      %v3282 = vpop.f32.mrf.mxu0
      %v3283 = vadd.f32 0.0, %v3282
      %3284 = vmatmul.f32.gmra.mxu0 %v3171
      %v3285 = vpop.f32.mrf.mxu0
      %v3286 = vadd.f32 0.0, %v3285
      %3287 = vmatmul.f32.gmra.mxu0 %v3173
      %v3288 = vpop.f32.mrf.mxu0
      %v3289 = vadd.f32 0.0, %v3288
      %3290 = vmatmul.f32.gmra.mxu0 %v3175
      %v3291 = vpop.f32.mrf.mxu0
      %v3292 = vadd.f32 0.0, %v3291
      %3293 = vmatmul.f32.gmra.mxu0 %v3177
      %v3294 = vpop.f32.mrf.mxu0
      %v3295 = vadd.f32 0.0, %v3294
      %3296 = vmatmul.f32.gmra.mxu0 %v3179
      %v3297 = vpop.f32.mrf.mxu0
      %v3298 = vadd.f32 0.0, %v3297
      %3299 = vmatmul.f32.gmra.mxu0 %v3181
      %v3300 = vpop.f32.mrf.mxu0
      %v3301 = vadd.f32 0.0, %v3300
      %3302 = vmatmul.f32.gmra.mxu0 %v3183
      %v3303 = vpop.f32.mrf.mxu0
      %v3304 = vadd.f32 0.0, %v3303
      %3305 = vmatmul.f32.gmra.mxu0 %v3185
      %v3306 = vpop.f32.mrf.mxu0
      %v3307 = vadd.f32 0.0, %v3306
      %3308 = vmatmul.f32.gmra.mxu0 %v3187
      %v3309 = vpop.f32.mrf.mxu0
      %v3310 = vadd.f32 0.0, %v3309
      %3311 = vmatmul.f32.gmra.mxu0 %v3189
      %v3312 = vpop.f32.mrf.mxu0
      %v3313 = vadd.f32 0.0, %v3312
      %3314 = vmatmul.f32.gmra.mxu0 %v3191
      %v3315 = vpop.f32.mrf.mxu0
      %v3316 = vadd.f32 0.0, %v3315
      %3317 = vmatmul.f32.gmra.mxu0 %v3193
      %v3318 = vpop.f32.mrf.mxu0
      %v3319 = vadd.f32 0.0, %v3318
      %3320 = vmatmul.f32.gmra.mxu0 %v3195
      %v3321 = vpop.f32.mrf.mxu0
      %v3322 = vadd.f32 0.0, %v3321
      %3323 = vmatmul.f32.gmra.mxu0 %v3197
      %v3324 = vpop.f32.mrf.mxu0
      %v3325 = vadd.f32 0.0, %v3324
      %3326 = vdwg.mxu0
      %v3327 = vadd.f32 %v3015, %v3220
      %v3328 = vadd.f32 %v3016, %v3223
      %v3329 = vadd.f32 %v3017, %v3226
      %v3330 = vadd.f32 %v3018, %v3229
      %v3331 = vadd.f32 %v3019, %v3232
      %v3332 = vadd.f32 %v3020, %v3235
      %v3333 = vadd.f32 %v3021, %v3238
      %v3334 = vadd.f32 %v3022, %v3241
      %v3335 = vadd.f32 %v3023, %v3244
      %v3336 = vadd.f32 %v3024, %v3247
      %v3337 = vadd.f32 %v3025, %v3250
      %v3338 = vadd.f32 %v3026, %v3253
      %v3339 = vadd.f32 %v3027, %v3256
      %v3340 = vadd.f32 %v3028, %v3259
      %v3341 = vadd.f32 %v3029, %v3262
      %v3342 = vadd.f32 %v3030, %v3265
      %v3343 = vadd.f32 %v3031, %v3268
      %v3344 = vadd.f32 %v3032, %v3271
      %v3345 = vadd.f32 %v3033, %v3274
      %v3346 = vadd.f32 %v3034, %v3277
      %v3347 = vadd.f32 %v3035, %v3280
      %v3348 = vadd.f32 %v3036, %v3283
      %v3349 = vadd.f32 %v3037, %v3286
      %v3350 = vadd.f32 %v3038, %v3289
      %v3351 = vadd.f32 %v3039, %v3292
      %v3352 = vadd.f32 %v3040, %v3295
      %v3353 = vadd.f32 %v3041, %v3298
      %v3354 = vadd.f32 %v3042, %v3301
      %v3355 = vadd.f32 %v3043, %v3304
      %v3356 = vadd.f32 %v3044, %v3307
      %v3357 = vadd.f32 %v3045, %v3310
      %v3358 = vadd.f32 %v3046, %v3313
      %v3359 = vadd.f32 %v3047, %v3316
      %v3360 = vadd.f32 %v3048, %v3319
      %v3361 = vadd.f32 %v3049, %v3322
      %v3362 = vadd.f32 %v3050, %v3325
      %3363 = vst [vmem:[#allocation2] sm:$0xff] %v3327
      %3364 = vst [vmem:[#allocation2 + $0x8] sm:$0xff] %v3328
      %3365 = vst [vmem:[#allocation2 + $0x10] sm:$0xff] %v3329
      %3366 = vst [vmem:[#allocation2 + $0x18] sm:$0xff] %v3330
      %3367 = vst [vmem:[#allocation2 + $0x20] sm:$0xff] %v3331
      %3368 = vst [vmem:[#allocation2 + $0x28] sm:$0xff] %v3332
      %3369 = vst [vmem:[#allocation2 + $0x30] sm:$0xff] %v3333
      %3370 = vst [vmem:[#allocation2 + $0x38] sm:$0xff] %v3334
      %3371 = vst [vmem:[#allocation2 + $0x40] sm:$0xff] %v3335
      %3372 = vst [vmem:[#allocation2 + $0x48] sm:$0xff] %v3336
      %3373 = vst [vmem:[#allocation2 + $0x50] sm:$0xff] %v3337
      %3374 = vst [vmem:[#allocation2 + $0x58] sm:$0xff] %v3338
      %3375 = vst [vmem:[#allocation2 + $0x60] sm:$0xff] %v3339
      %3376 = vst [vmem:[#allocation2 + $0x68] sm:$0xff] %v3340
      %3377 = vst [vmem:[#allocation2 + $0x70] sm:$0xff] %v3341
      %3378 = vst [vmem:[#allocation2 + $0x78] sm:$0xff] %v3342
      %3379 = vst [vmem:[#allocation2 + $0x80] sm:$0xff] %v3343
      %3380 = vst [vmem:[#allocation2 + $0x88] sm:$0xff] %v3344
      %3381 = vst [vmem:[#allocation2 + $0x90] sm:$0xff] %v3345
      %3382 = vst [vmem:[#allocation2 + $0x98] sm:$0xff] %v3346
      %3383 = vst [vmem:[#allocation2 + $0xa0] sm:$0xff] %v3347
      %3384 = vst [vmem:[#allocation2 + $0xa8] sm:$0xff] %v3348
      %3385 = vst [vmem:[#allocation2 + $0xb0] sm:$0xff] %v3349
      %3386 = vst [vmem:[#allocation2 + $0xb8] sm:$0xff] %v3350
      %3387 = vst [vmem:[#allocation2 + $0xc0] sm:$0xff] %v3351
      %3388 = vst [vmem:[#allocation2 + $0xc8] sm:$0xff] %v3352
      %3389 = vst [vmem:[#allocation2 + $0xd0] sm:$0xff] %v3353
      %3390 = vst [vmem:[#allocation2 + $0xd8] sm:$0xff] %v3354
      %3391 = vst [vmem:[#allocation2 + $0xe0] sm:$0xff] %v3355
      %3392 = vst [vmem:[#allocation2 + $0xe8] sm:$0xff] %v3356
      %3393 = vst [vmem:[#allocation2 + $0xf0] sm:$0xff] %v3357
      %3394 = vst [vmem:[#allocation2 + $0xf8] sm:$0xff] %v3358
      %3395 = vst [vmem:[#allocation2 + $0x100] sm:$0xff] %v3359
      %3396 = vst [vmem:[#allocation2 + $0x108] sm:$0xff] %v3360
      %3397 = vst [vmem:[#allocation2 + $0x110] sm:$0xff] %v3361
      %3398 = vst [vmem:[#allocation2 + $0x118] sm:$0xff] %v3362
      %v3399 = vld [vmem:[#allocation2] sm:$0xff]
      %v3400 = vld [vmem:[#allocation2 + $0x8] sm:$0xff]
      %v3401 = vld [vmem:[#allocation2 + $0x10] sm:$0xff]
      %v3402 = vld [vmem:[#allocation2 + $0x18] sm:$0xff]
      %v3403 = vld [vmem:[#allocation2 + $0x20] sm:$0xff]
      %v3404 = vld [vmem:[#allocation2 + $0x28] sm:$0xff]
      %v3405 = vld [vmem:[#allocation2 + $0x30] sm:$0xff]
      %v3406 = vld [vmem:[#allocation2 + $0x38] sm:$0xff]
      %v3407 = vld [vmem:[#allocation2 + $0x40] sm:$0xff]
      %v3408 = vld [vmem:[#allocation2 + $0x48] sm:$0xff]
      %v3409 = vld [vmem:[#allocation2 + $0x50] sm:$0xff]
      %v3410 = vld [vmem:[#allocation2 + $0x58] sm:$0xff]
      %v3411 = vld [vmem:[#allocation2 + $0x60] sm:$0xff]
      %v3412 = vld [vmem:[#allocation2 + $0x68] sm:$0xff]
      %v3413 = vld [vmem:[#allocation2 + $0x70] sm:$0xff]
      %v3414 = vld [vmem:[#allocation2 + $0x78] sm:$0xff]
      %v3415 = vld [vmem:[#allocation2 + $0x80] sm:$0xff]
      %v3416 = vld [vmem:[#allocation2 + $0x88] sm:$0xff]
      %v3417 = vld [vmem:[#allocation2 + $0x90] sm:$0xff]
      %v3418 = vld [vmem:[#allocation2 + $0x98] sm:$0xff]
      %v3419 = vld [vmem:[#allocation2 + $0xa0] sm:$0xff]
      %v3420 = vld [vmem:[#allocation2 + $0xa8] sm:$0xff]
      %v3421 = vld [vmem:[#allocation2 + $0xb0] sm:$0xff]
      %v3422 = vld [vmem:[#allocation2 + $0xb8] sm:$0xff]
      %v3423 = vld [vmem:[#allocation2 + $0xc0] sm:$0xff]
      %v3424 = vld [vmem:[#allocation2 + $0xc8] sm:$0xff]
      %v3425 = vld [vmem:[#allocation2 + $0xd0] sm:$0xff]
      %v3426 = vld [vmem:[#allocation2 + $0xd8] sm:$0xff]
      %v3427 = vld [vmem:[#allocation2 + $0xe0] sm:$0xff]
      %v3428 = vld [vmem:[#allocation2 + $0xe8] sm:$0xff]
      %v3429 = vld [vmem:[#allocation2 + $0xf0] sm:$0xff]
      %v3430 = vld [vmem:[#allocation2 + $0xf8] sm:$0xff]
      %v3431 = vld [vmem:[#allocation2 + $0x100] sm:$0xff]
      %v3432 = vld [vmem:[#allocation2 + $0x108] sm:$0xff]
      %v3433 = vld [vmem:[#allocation2 + $0x110] sm:$0xff]
      %v3434 = vld [vmem:[#allocation2 + $0x118] sm:$0xff]
      %v3435 = vpack.c.bf16 %v3399, %v3399
      %v3436 = vpack.c.bf16 %v3400, %v3400
      %v3437 = vpack.c.bf16 %v3401, %v3401
      %v3438 = vpack.c.bf16 %v3402, %v3402
      %v3439 = vpack.c.bf16 %v3403, %v3403
      %v3440 = vpack.c.bf16 %v3404, %v3404
      %v3441 = vpack.c.bf16 %v3405, %v3405
      %v3442 = vpack.c.bf16 %v3406, %v3406
      %v3443 = vpack.c.bf16 %v3407, %v3407
      %v3444 = vpack.c.bf16 %v3408, %v3408
      %v3445 = vpack.c.bf16 %v3409, %v3409
      %v3446 = vpack.c.bf16 %v3410, %v3410
      %v3447 = vpack.c.bf16 %v3411, %v3411
      %v3448 = vpack.c.bf16 %v3412, %v3412
      %v3449 = vpack.c.bf16 %v3413, %v3413
      %v3450 = vpack.c.bf16 %v3414, %v3414
      %v3451 = vpack.c.bf16 %v3415, %v3415
      %v3452 = vpack.c.bf16 %v3416, %v3416
      %v3453 = vpack.c.bf16 %v3417, %v3417
      %v3454 = vpack.c.bf16 %v3418, %v3418
      %v3455 = vpack.c.bf16 %v3419, %v3419
      %v3456 = vpack.c.bf16 %v3420, %v3420
      %v3457 = vpack.c.bf16 %v3421, %v3421
      %v3458 = vpack.c.bf16 %v3422, %v3422
      %v3459 = vpack.c.bf16 %v3423, %v3423
      %v3460 = vpack.c.bf16 %v3424, %v3424
      %v3461 = vpack.c.bf16 %v3425, %v3425
      %v3462 = vpack.c.bf16 %v3426, %v3426
      %v3463 = vpack.c.bf16 %v3427, %v3427
      %v3464 = vpack.c.bf16 %v3428, %v3428
      %v3465 = vpack.c.bf16 %v3429, %v3429
      %v3466 = vpack.c.bf16 %v3430, %v3430
      %v3467 = vpack.c.bf16 %v3431, %v3431
      %v3468 = vpack.c.bf16 %v3432, %v3432
      %v3469 = vpack.c.bf16 %v3433, %v3433
      %v3470 = vpack.c.bf16 %v3434, %v3434
      %3471 = vst [vmem:[%s235] sm:$0xf] %v3435
      %3472 = vst [vmem:[%s235 + $0x4] sm:$0xf] %v3436
      %3473 = vst [vmem:[%s235 + $0x8] sm:$0xf] %v3437
      %3474 = vst [vmem:[%s235 + $0xc] sm:$0xf] %v3438
      %3475 = vst [vmem:[%s235 + $0x10] sm:$0xf] %v3439
      %3476 = vst [vmem:[%s235 + $0x14] sm:$0xf] %v3440
      %3477 = vst [vmem:[%s235 + $0x18] sm:$0xf] %v3441
      %3478 = vst [vmem:[%s235 + $0x1c] sm:$0xf] %v3442
      %3479 = vst [vmem:[%s235 + $0x20] sm:$0xf] %v3443
      %3480 = vst [vmem:[%s235 + $0x24] sm:$0xf] %v3444
      %3481 = vst [vmem:[%s235 + $0x28] sm:$0xf] %v3445
      %3482 = vst [vmem:[%s235 + $0x2c] sm:$0xf] %v3446
      %3483 = vst [vmem:[%s235 + $0x30] sm:$0xf] %v3447
      %3484 = vst [vmem:[%s235 + $0x34] sm:$0xf] %v3448
      %3485 = vst [vmem:[%s235 + $0x38] sm:$0xf] %v3449
      %3486 = vst [vmem:[%s235 + $0x3c] sm:$0xf] %v3450
      %3487 = vst [vmem:[%s235 + $0x40] sm:$0xf] %v3451
      %3488 = vst [vmem:[%s235 + $0x44] sm:$0xf] %v3452
      %3489 = vst [vmem:[%s235 + $0x48] sm:$0xf] %v3453
      %3490 = vst [vmem:[%s235 + $0x4c] sm:$0xf] %v3454
      %3491 = vst [vmem:[%s235 + $0x50] sm:$0xf] %v3455
      %3492 = vst [vmem:[%s235 + $0x54] sm:$0xf] %v3456
      %3493 = vst [vmem:[%s235 + $0x58] sm:$0xf] %v3457
      %3494 = vst [vmem:[%s235 + $0x5c] sm:$0xf] %v3458
      %3495 = vst [vmem:[%s235 + $0x60] sm:$0xf] %v3459
      %3496 = vst [vmem:[%s235 + $0x64] sm:$0xf] %v3460
      %3497 = vst [vmem:[%s235 + $0x68] sm:$0xf] %v3461
      %3498 = vst [vmem:[%s235 + $0x6c] sm:$0xf] %v3462
      %3499 = vst [vmem:[%s235 + $0x70] sm:$0xf] %v3463
      %3500 = vst [vmem:[%s235 + $0x74] sm:$0xf] %v3464
      %3501 = vst [vmem:[%s235 + $0x78] sm:$0xf] %v3465
      %3502 = vst [vmem:[%s235 + $0x7c] sm:$0xf] %v3466
      %3503 = vst [vmem:[%s235 + $0x80] sm:$0xf] %v3467
      %3504 = vst [vmem:[%s235 + $0x84] sm:$0xf] %v3468
      %3505 = vst [vmem:[%s235 + $0x88] sm:$0xf] %v3469
      %3506 = vst [vmem:[%s235 + $0x8c] sm:$0xf] %v3470
      %v3507 = vld [vmem:[%s2] sm:$0xff]
      %v3508 = vld [vmem:[%s2 + $0x8] sm:$0xff]
      %v3509 = vld [vmem:[%s2 + $0x10] sm:$0xff]
      %v3510 = vld [vmem:[%s2 + $0x18] sm:$0xff]
      %v3511 = vld [vmem:[%s2 + $0x20] sm:$0xff]
      %v3512 = vld [vmem:[%s2 + $0x28] sm:$0xff]
      %v3513 = vld [vmem:[%s2 + $0x30] sm:$0xff]
      %v3514 = vld [vmem:[%s2 + $0x38] sm:$0xff]
      %v3515 = vld [vmem:[%s2 + $0x40] sm:$0xff]
      %v3516 = vld [vmem:[%s2 + $0x48] sm:$0xff]
      %v3517 = vld [vmem:[%s2 + $0x50] sm:$0xff]
      %v3518 = vld [vmem:[%s2 + $0x58] sm:$0xff]
      %v3519 = vld [vmem:[%s2 + $0x60] sm:$0xff]
      %v3520 = vld [vmem:[%s2 + $0x68] sm:$0xff]
      %v3521 = vld [vmem:[%s2 + $0x70] sm:$0xff]
      %v3522 = vld [vmem:[%s2 + $0x78] sm:$0xff]
      %v3523 = vld [vmem:[%s2 + $0x80] sm:$0xff]
      %v3524 = vld [vmem:[%s2 + $0x88] sm:$0xff]
      %v3525 = vld [vmem:[%s2 + $0x90] sm:$0xff]
      %v3526 = vld [vmem:[%s2 + $0x98] sm:$0xff]
      %v3527 = vld [vmem:[%s2 + $0xa0] sm:$0xff]
      %v3528 = vld [vmem:[%s2 + $0xa8] sm:$0xff]
      %v3529 = vld [vmem:[%s2 + $0xb0] sm:$0xff]
      %v3530 = vld [vmem:[%s2 + $0xb8] sm:$0xff]
      %v3531 = vld [vmem:[%s2 + $0xc0] sm:$0xff]
      %v3532 = vld [vmem:[%s2 + $0xc8] sm:$0xff]
      %v3533 = vld [vmem:[%s2 + $0xd0] sm:$0xff]
      %v3534 = vld [vmem:[%s2 + $0xd8] sm:$0xff]
      %v3535 = vld [vmem:[%s2 + $0xe0] sm:$0xff]
      %v3536 = vld [vmem:[%s2 + $0xe8] sm:$0xff]
      %v3537 = vld [vmem:[%s2 + $0xf0] sm:$0xff]
      %v3538 = vld [vmem:[%s2 + $0xf8] sm:$0xff]
      %v3539 = vld [vmem:[%s2 + $0x100] sm:$0xff]
      %v3540 = vld [vmem:[%s2 + $0x108] sm:$0xff]
      %v3541 = vld [vmem:[%s2 + $0x110] sm:$0xff]
      %v3542 = vld [vmem:[%s2 + $0x118] sm:$0xff]
      %3544 = vset.pattern.permute.xlu0 0
      %3545 = vperm.xlu0 %3544, %v3507
      %v3546 = vpop.permute.xlu0 %3545
      %3549 = vset.pattern.permute.xlu0 0
      %3550 = vperm.xlu0 %3549, %v3508
      %v3551 = vpop.permute.xlu0 %3550
      %3554 = vset.pattern.permute.xlu0 0
      %3555 = vperm.xlu0 %3554, %v3509
      %v3556 = vpop.permute.xlu0 %3555
      %3559 = vset.pattern.permute.xlu0 0
      %3560 = vperm.xlu0 %3559, %v3510
      %v3561 = vpop.permute.xlu0 %3560
      %3564 = vset.pattern.permute.xlu0 0
      %3565 = vperm.xlu0 %3564, %v3511
      %v3566 = vpop.permute.xlu0 %3565
      %3569 = vset.pattern.permute.xlu0 0
      %3570 = vperm.xlu0 %3569, %v3512
      %v3571 = vpop.permute.xlu0 %3570
      %3574 = vset.pattern.permute.xlu0 0
      %3575 = vperm.xlu0 %3574, %v3513
      %v3576 = vpop.permute.xlu0 %3575
      %3579 = vset.pattern.permute.xlu0 0
      %3580 = vperm.xlu0 %3579, %v3514
      %v3581 = vpop.permute.xlu0 %3580
      %3584 = vset.pattern.permute.xlu0 0
      %3585 = vperm.xlu0 %3584, %v3515
      %v3586 = vpop.permute.xlu0 %3585
      %3589 = vset.pattern.permute.xlu0 0
      %3590 = vperm.xlu0 %3589, %v3516
      %v3591 = vpop.permute.xlu0 %3590
      %3594 = vset.pattern.permute.xlu0 0
      %3595 = vperm.xlu0 %3594, %v3517
      %v3596 = vpop.permute.xlu0 %3595
      %3599 = vset.pattern.permute.xlu0 0
      %3600 = vperm.xlu0 %3599, %v3518
      %v3601 = vpop.permute.xlu0 %3600
      %3604 = vset.pattern.permute.xlu0 0
      %3605 = vperm.xlu0 %3604, %v3519
      %v3606 = vpop.permute.xlu0 %3605
      %3609 = vset.pattern.permute.xlu0 0
      %3610 = vperm.xlu0 %3609, %v3520
      %v3611 = vpop.permute.xlu0 %3610
      %3614 = vset.pattern.permute.xlu0 0
      %3615 = vperm.xlu0 %3614, %v3521
      %v3616 = vpop.permute.xlu0 %3615
      %3619 = vset.pattern.permute.xlu0 0
      %3620 = vperm.xlu0 %3619, %v3522
      %v3621 = vpop.permute.xlu0 %3620
      %3624 = vset.pattern.permute.xlu0 0
      %3625 = vperm.xlu0 %3624, %v3523
      %v3626 = vpop.permute.xlu0 %3625
      %3629 = vset.pattern.permute.xlu0 0
      %3630 = vperm.xlu0 %3629, %v3524
      %v3631 = vpop.permute.xlu0 %3630
      %3634 = vset.pattern.permute.xlu0 0
      %3635 = vperm.xlu0 %3634, %v3525
      %v3636 = vpop.permute.xlu0 %3635
      %3639 = vset.pattern.permute.xlu0 0
      %3640 = vperm.xlu0 %3639, %v3526
      %v3641 = vpop.permute.xlu0 %3640
      %3644 = vset.pattern.permute.xlu0 0
      %3645 = vperm.xlu0 %3644, %v3527
      %v3646 = vpop.permute.xlu0 %3645
      %3649 = vset.pattern.permute.xlu0 0
      %3650 = vperm.xlu0 %3649, %v3528
      %v3651 = vpop.permute.xlu0 %3650
      %3654 = vset.pattern.permute.xlu0 0
      %3655 = vperm.xlu0 %3654, %v3529
      %v3656 = vpop.permute.xlu0 %3655
      %3659 = vset.pattern.permute.xlu0 0
      %3660 = vperm.xlu0 %3659, %v3530
      %v3661 = vpop.permute.xlu0 %3660
      %3664 = vset.pattern.permute.xlu0 0
      %3665 = vperm.xlu0 %3664, %v3531
      %v3666 = vpop.permute.xlu0 %3665
      %3669 = vset.pattern.permute.xlu0 0
      %3670 = vperm.xlu0 %3669, %v3532
      %v3671 = vpop.permute.xlu0 %3670
      %3674 = vset.pattern.permute.xlu0 0
      %3675 = vperm.xlu0 %3674, %v3533
      %v3676 = vpop.permute.xlu0 %3675
      %3679 = vset.pattern.permute.xlu0 0
      %3680 = vperm.xlu0 %3679, %v3534
      %v3681 = vpop.permute.xlu0 %3680
      %3684 = vset.pattern.permute.xlu0 0
      %3685 = vperm.xlu0 %3684, %v3535
      %v3686 = vpop.permute.xlu0 %3685
      %3689 = vset.pattern.permute.xlu0 0
      %3690 = vperm.xlu0 %3689, %v3536
      %v3691 = vpop.permute.xlu0 %3690
      %3694 = vset.pattern.permute.xlu0 0
      %3695 = vperm.xlu0 %3694, %v3537
      %v3696 = vpop.permute.xlu0 %3695
      %3699 = vset.pattern.permute.xlu0 0
      %3700 = vperm.xlu0 %3699, %v3538
      %v3701 = vpop.permute.xlu0 %3700
      %3704 = vset.pattern.permute.xlu0 0
      %3705 = vperm.xlu0 %3704, %v3539
      %v3706 = vpop.permute.xlu0 %3705
      %3709 = vset.pattern.permute.xlu0 0
      %3710 = vperm.xlu0 %3709, %v3540
      %v3711 = vpop.permute.xlu0 %3710
      %3714 = vset.pattern.permute.xlu0 0
      %3715 = vperm.xlu0 %3714, %v3541
      %v3716 = vpop.permute.xlu0 %3715
      %3719 = vset.pattern.permute.xlu0 0
      %3720 = vperm.xlu0 %3719, %v3542
      %v3721 = vpop.permute.xlu0 %3720
      %v3723 = vmul.f32 %v3399, %v3546
      %v3724 = vmul.f32 %v3400, %v3551
      %v3725 = vmul.f32 %v3401, %v3556
      %v3726 = vmul.f32 %v3402, %v3561
      %v3727 = vmul.f32 %v3403, %v3566
      %v3728 = vmul.f32 %v3404, %v3571
      %v3729 = vmul.f32 %v3405, %v3576
      %v3730 = vmul.f32 %v3406, %v3581
      %v3731 = vmul.f32 %v3407, %v3586
      %v3732 = vmul.f32 %v3408, %v3591
      %v3733 = vmul.f32 %v3409, %v3596
      %v3734 = vmul.f32 %v3410, %v3601
      %v3735 = vmul.f32 %v3411, %v3606
      %v3736 = vmul.f32 %v3412, %v3611
      %v3737 = vmul.f32 %v3413, %v3616
      %v3738 = vmul.f32 %v3414, %v3621
      %v3739 = vmul.f32 %v3415, %v3626
      %v3740 = vmul.f32 %v3416, %v3631
      %v3741 = vmul.f32 %v3417, %v3636
      %v3742 = vmul.f32 %v3418, %v3641
      %v3743 = vmul.f32 %v3419, %v3646
      %v3744 = vmul.f32 %v3420, %v3651
      %v3745 = vmul.f32 %v3421, %v3656
      %v3746 = vmul.f32 %v3422, %v3661
      %v3747 = vmul.f32 %v3423, %v3666
      %v3748 = vmul.f32 %v3424, %v3671
      %v3749 = vmul.f32 %v3425, %v3676
      %v3750 = vmul.f32 %v3426, %v3681
      %v3751 = vmul.f32 %v3427, %v3686
      %v3752 = vmul.f32 %v3428, %v3691
      %v3753 = vmul.f32 %v3429, %v3696
      %v3754 = vmul.f32 %v3430, %v3701
      %v3755 = vmul.f32 %v3431, %v3706
      %v3756 = vmul.f32 %v3432, %v3711
      %v3757 = vmul.f32 %v3433, %v3716
      %v3758 = vmul.f32 %v3434, %v3721
      %v3759 = vadd.f32 %v3723, %v3724
      %v3760 = vadd.f32 %v3759, %v3725
      %v3761 = vadd.f32 %v3760, %v3726
      %v3762 = vadd.f32 %v3761, %v3727
      %v3763 = vadd.f32 %v3762, %v3728
      %v3764 = vadd.f32 %v3763, %v3729
      %v3765 = vadd.f32 %v3764, %v3730
      %v3766 = vadd.f32 %v3765, %v3731
      %v3767 = vadd.f32 %v3766, %v3732
      %v3768 = vadd.f32 %v3767, %v3733
      %v3769 = vadd.f32 %v3768, %v3734
      %v3770 = vadd.f32 %v3769, %v3735
      %v3771 = vadd.f32 %v3770, %v3736
      %v3772 = vadd.f32 %v3771, %v3737
      %v3773 = vadd.f32 %v3772, %v3738
      %v3774 = vadd.f32 %v3773, %v3739
      %v3775 = vadd.f32 %v3774, %v3740
      %v3776 = vadd.f32 %v3775, %v3741
      %v3777 = vadd.f32 %v3776, %v3742
      %v3778 = vadd.f32 %v3777, %v3743
      %v3779 = vadd.f32 %v3778, %v3744
      %v3780 = vadd.f32 %v3779, %v3745
      %v3781 = vadd.f32 %v3780, %v3746
      %v3782 = vadd.f32 %v3781, %v3747
      %v3783 = vadd.f32 %v3782, %v3748
      %v3784 = vadd.f32 %v3783, %v3749
      %v3785 = vadd.f32 %v3784, %v3750
      %v3786 = vadd.f32 %v3785, %v3751
      %v3787 = vadd.f32 %v3786, %v3752
      %v3788 = vadd.f32 %v3787, %v3753
      %v3789 = vadd.f32 %v3788, %v3754
      %v3790 = vadd.f32 %v3789, %v3755
      %v3791 = vadd.f32 %v3790, %v3756
      %v3792 = vadd.f32 %v3791, %v3757
      %v3793 = vadd.f32 %v3792, %v3758
      %v3794 = vrot.slane %v3793, 4
      %v3795 = vadd.f32 %v3793, %v3794
      %v3796 = vrot.slane %v3795, 2
      %v3797 = vadd.f32 %v3795, %v3796
      %v3798 = vrot.slane %v3797, 1
      %v3799 = vadd.f32 %v3797, %v3798
      %3800 = vst [vmem:[%s238] sm:$0x1] %v3799
      %v3801 = vmul.f32 %v3399, %v3399
      %v3802 = vmul.f32 %v3400, %v3400
      %v3803 = vmul.f32 %v3401, %v3401
      %v3804 = vmul.f32 %v3402, %v3402
      %v3805 = vmul.f32 %v3403, %v3403
      %v3806 = vmul.f32 %v3404, %v3404
      %v3807 = vmul.f32 %v3405, %v3405
      %v3808 = vmul.f32 %v3406, %v3406
      %v3809 = vmul.f32 %v3407, %v3407
      %v3810 = vmul.f32 %v3408, %v3408
      %v3811 = vmul.f32 %v3409, %v3409
      %v3812 = vmul.f32 %v3410, %v3410
      %v3813 = vmul.f32 %v3411, %v3411
      %v3814 = vmul.f32 %v3412, %v3412
      %v3815 = vmul.f32 %v3413, %v3413
      %v3816 = vmul.f32 %v3414, %v3414
      %v3817 = vmul.f32 %v3415, %v3415
      %v3818 = vmul.f32 %v3416, %v3416
      %v3819 = vmul.f32 %v3417, %v3417
      %v3820 = vmul.f32 %v3418, %v3418
      %v3821 = vmul.f32 %v3419, %v3419
      %v3822 = vmul.f32 %v3420, %v3420
      %v3823 = vmul.f32 %v3421, %v3421
      %v3824 = vmul.f32 %v3422, %v3422
      %v3825 = vmul.f32 %v3423, %v3423
      %v3826 = vmul.f32 %v3424, %v3424
      %v3827 = vmul.f32 %v3425, %v3425
      %v3828 = vmul.f32 %v3426, %v3426
      %v3829 = vmul.f32 %v3427, %v3427
      %v3830 = vmul.f32 %v3428, %v3428
      %v3831 = vmul.f32 %v3429, %v3429
      %v3832 = vmul.f32 %v3430, %v3430
      %v3833 = vmul.f32 %v3431, %v3431
      %v3834 = vmul.f32 %v3432, %v3432
      %v3835 = vmul.f32 %v3433, %v3433
      %v3836 = vmul.f32 %v3434, %v3434
      %v3837 = vmul.f32 %v3801, %v3546
      %v3838 = vmul.f32 %v3802, %v3551
      %v3839 = vmul.f32 %v3803, %v3556
      %v3840 = vmul.f32 %v3804, %v3561
      %v3841 = vmul.f32 %v3805, %v3566
      %v3842 = vmul.f32 %v3806, %v3571
      %v3843 = vmul.f32 %v3807, %v3576
      %v3844 = vmul.f32 %v3808, %v3581
      %v3845 = vmul.f32 %v3809, %v3586
      %v3846 = vmul.f32 %v3810, %v3591
      %v3847 = vmul.f32 %v3811, %v3596
      %v3848 = vmul.f32 %v3812, %v3601
      %v3849 = vmul.f32 %v3813, %v3606
      %v3850 = vmul.f32 %v3814, %v3611
      %v3851 = vmul.f32 %v3815, %v3616
      %v3852 = vmul.f32 %v3816, %v3621
      %v3853 = vmul.f32 %v3817, %v3626
      %v3854 = vmul.f32 %v3818, %v3631
      %v3855 = vmul.f32 %v3819, %v3636
      %v3856 = vmul.f32 %v3820, %v3641
      %v3857 = vmul.f32 %v3821, %v3646
      %v3858 = vmul.f32 %v3822, %v3651
      %v3859 = vmul.f32 %v3823, %v3656
      %v3860 = vmul.f32 %v3824, %v3661
      %v3861 = vmul.f32 %v3825, %v3666
      %v3862 = vmul.f32 %v3826, %v3671
      %v3863 = vmul.f32 %v3827, %v3676
      %v3864 = vmul.f32 %v3828, %v3681
      %v3865 = vmul.f32 %v3829, %v3686
      %v3866 = vmul.f32 %v3830, %v3691
      %v3867 = vmul.f32 %v3831, %v3696
      %v3868 = vmul.f32 %v3832, %v3701
      %v3869 = vmul.f32 %v3833, %v3706
      %v3870 = vmul.f32 %v3834, %v3711
      %v3871 = vmul.f32 %v3835, %v3716
      %v3872 = vmul.f32 %v3836, %v3721
      %v3873 = vadd.f32 %v3837, %v3838
      %v3874 = vadd.f32 %v3873, %v3839
      %v3875 = vadd.f32 %v3874, %v3840
      %v3876 = vadd.f32 %v3875, %v3841
      %v3877 = vadd.f32 %v3876, %v3842
      %v3878 = vadd.f32 %v3877, %v3843
      %v3879 = vadd.f32 %v3878, %v3844
      %v3880 = vadd.f32 %v3879, %v3845
      %v3881 = vadd.f32 %v3880, %v3846
      %v3882 = vadd.f32 %v3881, %v3847
      %v3883 = vadd.f32 %v3882, %v3848
      %v3884 = vadd.f32 %v3883, %v3849
      %v3885 = vadd.f32 %v3884, %v3850
      %v3886 = vadd.f32 %v3885, %v3851
      %v3887 = vadd.f32 %v3886, %v3852
      %v3888 = vadd.f32 %v3887, %v3853
      %v3889 = vadd.f32 %v3888, %v3854
      %v3890 = vadd.f32 %v3889, %v3855
      %v3891 = vadd.f32 %v3890, %v3856
      %v3892 = vadd.f32 %v3891, %v3857
      %v3893 = vadd.f32 %v3892, %v3858
      %v3894 = vadd.f32 %v3893, %v3859
      %v3895 = vadd.f32 %v3894, %v3860
      %v3896 = vadd.f32 %v3895, %v3861
      %v3897 = vadd.f32 %v3896, %v3862
      %v3898 = vadd.f32 %v3897, %v3863
      %v3899 = vadd.f32 %v3898, %v3864
      %v3900 = vadd.f32 %v3899, %v3865
      %v3901 = vadd.f32 %v3900, %v3866
      %v3902 = vadd.f32 %v3901, %v3867
      %v3903 = vadd.f32 %v3902, %v3868
      %v3904 = vadd.f32 %v3903, %v3869
      %v3905 = vadd.f32 %v3904, %v3870
      %v3906 = vadd.f32 %v3905, %v3871
      %v3907 = vadd.f32 %v3906, %v3872
      %v3908 = vrot.slane %v3907, 4
      %v3909 = vadd.f32 %v3907, %v3908
      %v3910 = vrot.slane %v3909, 2
      %v3911 = vadd.f32 %v3909, %v3910
      %v3912 = vrot.slane %v3911, 1
      %v3913 = vadd.f32 %v3911, %v3912
      %3914 = vst [vmem:[%s241] sm:$0x1] %v3913
      %p3915 = scmp.lt.s32.totalorder %s17, 1
      %s3916 = scalar_select %p3915, %s17, 1
      %s3917 = smul.addr %s3916, 36
      %s3918 = smul.addr %s3917, 4
      %s3919 = scalar_lea.vmem %s3, %s3918
      %p3920 = scmp.lt.s32.totalorder %s17, 1
      %s3921 = scalar_select %p3920, %s17, 1
      %s3922 = scalar_lea.vmem %s4, %s3921
      %p3923 = scmp.lt.s32.totalorder %s17, 1
      %s3924 = scalar_select %p3923, %s17, 1
      %s3925 = scalar_lea.vmem %s5, %s3924
      // Predicated region
      $region33: #{trans_conv_layer.2} parent=31 // pred_check
        %p3926 = pneg %p103
      $region34: #{trans_conv_layer.2} parent=31 // pred_check_branch
        %3928 = sbr.rel (%p3926) target = $region36
      $region35: #{trans_conv_layer.2} parent=31 // pred_region
        _
      $region36: #{trans_conv_layer.2} parent=31 // pred_fallthru
        _
      // Predicated region
      $region37: #{trans_conv_layer.2} parent=31 // pred_check
        %p3929 = pneg %p129
      $region38: #{trans_conv_layer.2} parent=31 // pred_check_branch
        %3931 = sbr.rel (%p3929) target = $region40
      $region39: #{trans_conv_layer.2} parent=31 // pred_region
        _
      $region40: #{trans_conv_layer.2} parent=31 // pred_fallthru
        _
      // Predicated region
      $region41: #{trans_conv_layer.2} parent=31 // pred_check
        %p3932 = pneg %p155
      $region42: #{trans_conv_layer.2} parent=31 // pred_check_branch
        %3934 = sbr.rel (%p3932) target = $region44
      $region43: #{trans_conv_layer.2} parent=31 // pred_region
        _
      $region44: #{trans_conv_layer.2} parent=31 // pred_fallthru
        _
    $region32: #{trans_conv_layer.2} parent=5 // pred_fallthru
      _
    %p3935 = scmp.le.s32.totalorder 2, %s12
    // Predicated region
    $region45: #{trans_conv_layer.2} parent=5 // pred_check
      %p3936 = pneg %p3935
    $region46: #{trans_conv_layer.2} parent=5 // pred_check_branch
      %3938 = sbr.rel (%p3936) target = $region48
    $region47: #{trans_conv_layer.2} parent=5 // pred_region
      %s3939 = ssub.s32 %s12, 2
      // Predicated region
      $region49: #{trans_conv_layer.2} parent=47 // pred_check
        %p3940 = pneg %p109
      $region50: #{trans_conv_layer.2} parent=47 // pred_check_branch
        %3942 = sbr.rel (%p3940) target = $region52
      $region51: #{trans_conv_layer.2} parent=47 // pred_region
        %p3943 = scmp.lt.s32.totalorder %s18, 1
        %s3944 = scalar_select %p3943, %s18, 1
        %s3945 = smul.addr %s3944, 36
        %s3946 = smul.addr %s3945, 4
        %s3947 = scalar_lea.vmem %s3, %s3946
      $region52: #{trans_conv_layer.2} parent=47 // pred_fallthru
        _
      // Predicated region
      $region53: #{trans_conv_layer.2} parent=47 // pred_check
        %p3948 = pneg %p135
      $region54: #{trans_conv_layer.2} parent=47 // pred_check_branch
        %3950 = sbr.rel (%p3948) target = $region56
      $region55: #{trans_conv_layer.2} parent=47 // pred_region
        %p3951 = scmp.lt.s32.totalorder %s18, 1
        %s3952 = scalar_select %p3951, %s18, 1
        %s3953 = scalar_lea.vmem %s4, %s3952
      $region56: #{trans_conv_layer.2} parent=47 // pred_fallthru
        _
      // Predicated region
      $region57: #{trans_conv_layer.2} parent=47 // pred_check
        %p3954 = pneg %p161
      $region58: #{trans_conv_layer.2} parent=47 // pred_check_branch
        %3956 = sbr.rel (%p3954) target = $region60
      $region59: #{trans_conv_layer.2} parent=47 // pred_region
        %p3957 = scmp.lt.s32.totalorder %s18, 1
        %s3958 = scalar_select %p3957, %s18, 1
        %s3959 = scalar_lea.vmem %s5, %s3958
      $region60: #{trans_conv_layer.2} parent=47 // pred_fallthru
        _
    $region48: #{trans_conv_layer.2} parent=5 // pred_fallthru
      _
  $region6: #{trans_conv_layer.2} parent=0 // loop_footer
    %s16 = sadd.s32 1, %s12
  $region7: #{trans_conv_layer.2} parent=0 // loop_footer_branch
    %11 = sbr.rel target = $region3
  $region8: #{trans_conv_layer.2} parent=0 // loop_exit
    _

</llo_original>
